<compile_context>
chip_gen: v7x
topology: tpu7x:2x2x1
jax: 0.10.0
libtpu: 0.0.40
codegen_flags: <defaults>
</compile_context>

<pallas_src>
import math

import jax
import jax.numpy as jnp
from jax.experimental import pallas as pl
from jax.experimental.pallas import tpu as pltpu

HIDDEN = 32            # hidden_channels
HEADS = 4              # num_heads
HEAD_DIM = HIDDEN // HEADS
NUM_LAYERS = 2
LEAKY_SLOPE = 0.2      # PyG GATv2Conv default negative_slope
NEG_INF = -1e30
LN_EPS = 1e-5
LOGIT_DIM = 2
LOGIT_PAD = 128        # lane-dense padded classifier output width
SLAB_W = 128           # parameter-slab lane width


# ---------------------------------------------------------------------------
# Host-side parameter slab packing
# ---------------------------------------------------------------------------
def _pack_params(named_arrays):
    """Pack 2-D f32 params into one (rows, 128) slab; each block 8-row aligned.

    Returns (slab, layout) where layout[name] = (row_offset, rows, cols) for
    static in-kernel slicing.
    """
    layout = {}
    blocks = []
    off = 0
    for name, a in named_arrays:
        a = jnp.asarray(a, jnp.float32)
        r, c = a.shape
        rp = ((r + 7) // 8) * 8                      # sublane-group aligned
        blk = jnp.zeros((rp, SLAB_W), jnp.float32).at[:r, :c].set(a)
        layout[name] = (off, r, c)
        blocks.append(blk)
        off += rp
    return jnp.concatenate(blocks, axis=0), layout


# ---------------------------------------------------------------------------
# In-kernel building blocks (jnp values, stay in VMEM/vregs)
# ---------------------------------------------------------------------------
def _gat_layer(x, adj_mask_hm, wlr, blr, att_rows, bo, head_base):
    """GATv2Conv(hidden, hidden//heads, heads) on dense adjacency + fused ReLU.

    e[(h,i), j] = att_h . leaky_relu(lin_r(x)[i] + lin_l(x)[j])   (j = source)
    alpha       = masked softmax over sources j (lane axis)
    out[i]      = concat_h( sum_j alpha[(h,i),j] * lin_l(x)[j]_h ) + bias ; ReLU
    """
    n = x.shape[0]
    glgr = jnp.dot(x, wlr, preferred_element_type=jnp.float32) + blr   # (N, 64)
    gl = glgr[:, :HIDDEN]            # lin_l(x): source transform / message payload
    gr = glgr[:, HIDDEN:]            # lin_r(x): target transform

    # pairwise pre-activation + leaky_relu once at full 32-lane width
    s = gr[:, None, :] + gl[None, :, :]                        # (N_dst, N_src, 32)
    s = jnp.where(s >= 0, s, LEAKY_SLOPE * s)

    # head-major logits (H*N_dst, N_src): softmax axis (src) lands on lanes.
    # att_rows[h] is the per-head att vector zero-padded to 32 lanes, so the
    # lane-reduce only picks up head-h's slice.
    e = jnp.concatenate(
        [jnp.sum(s * att_rows[hd:hd + 1], axis=-1) for hd in range(HEADS)],
        axis=0)                                                # (H*N, N)
    e = jnp.where(adj_mask_hm, e, NEG_INF)
    e = e - jnp.max(e, axis=-1, keepdims=True)
    p = jnp.exp(e)
    alpha = p / jnp.sum(p, axis=-1, keepdims=True)             # exact (no approx)

    # one matmul for all heads, then head-masked sublane-block fold -> concat
    z = jnp.dot(alpha, gl, preferred_element_type=jnp.float32)  # (H*N, 32)
    agg = z[0:n] * head_base[0:1]
    for hd in range(1, HEADS):
        agg = agg + z[hd * n:(hd + 1) * n] * head_base[hd:hd + 1]
    return jnp.maximum(agg + bo, 0.0)                           # (N, 32)


def _mha_layernorm(x, wqkv, bqkv, wo, bo, gamma, beta, head_base):
    """nn.MultiheadAttention self-attention (batch=1) + residual + LayerNorm."""
    n = x.shape[0]
    qkv = jnp.dot(x, wqkv, preferred_element_type=jnp.float32) + bqkv   # (N, 96)
    q = qkv[:, :HIDDEN] * (1.0 / math.sqrt(HEAD_DIM))
    k = qkv[:, HIDDEN:2 * HIDDEN]
    v = qkv[:, 2 * HIDDEN:]

    # block-diagonal packed queries -> one score matmul for all heads
    qb = jnp.concatenate([q * head_base[hd:hd + 1] for hd in range(HEADS)],
                         axis=0)                                # (H*N, 32)
    sc = jnp.dot(qb, k.T, preferred_element_type=jnp.float32)   # (H*N, N)
    sc = sc - jnp.max(sc, axis=-1, keepdims=True)
    p = jnp.exp(sc)
    alpha = p / jnp.sum(p, axis=-1, keepdims=True)              # exact

    z = jnp.dot(alpha, v, preferred_element_type=jnp.float32)   # (H*N, 32)
    attn = z[0:n] * head_base[0:1]
    for hd in range(1, HEADS):
        attn = attn + z[hd * n:(hd + 1) * n] * head_base[hd:hd + 1]
    attn = jnp.dot(attn, wo, preferred_element_type=jnp.float32) + bo

    y = x + attn                                                # residual
    mean = jnp.mean(y, axis=-1, keepdims=True)
    var = jnp.mean((y - mean) ** 2, axis=-1, keepdims=True)
    return (y - mean) * jax.lax.rsqrt(var + LN_EPS) * gamma + beta


# ---------------------------------------------------------------------------
# Single fused kernel (3 inputs, 1 output; whole forward stays on chip)
# ---------------------------------------------------------------------------
def _make_kernel(layout):
    def kernel(x_ref, adjm_ref, p_ref, o_ref):
        def get(name):
            off, r, c = layout[name]
            return p_ref[off:off + r, 0:c]          # static slice -> cheap view load

        # hoisted once, reused by both GAT layers (head-replicated (H*N, N) mask)
        adj_mask_hm = adjm_ref[...] > 0.0
        head_base = get("head_base")                 # (H, 32) per-head column mask

        # 1) node-type embedding Linear(-1, hidden) for 'news'
        h = (jnp.dot(x_ref[...], get("embed_news_w"),
                     preferred_element_type=jnp.float32) + get("embed_news_b"))

        # 2) two GATv2Conv layers + ReLU (F.dropout in eval mode == identity)
        for l in range(NUM_LAYERS):
            h = _gat_layer(h, adj_mask_hm, get(f"wlr{l}"), get(f"blr{l}"),
                           get(f"att{l}"), get(f"bog{l}"), head_base)

        # 3) entity-aware self-attention + residual LayerNorm
        h = _mha_layernorm(h, get("wqkv"), get("bqkv"), get("wo"), get("bo_mha"),
                           get("gamma"), get("beta"), head_base)

        # 4) classifier: Linear(H, H//2) -> ReLU -> Linear(H//2, 2), zero-padded
        #    to 128 lanes for one unmasked lane-dense store
        h1 = jnp.maximum(jnp.dot(h, get("w1"), preferred_element_type=jnp.float32)
                         + get("b1"), 0.0)
        o_ref[...] = (jnp.dot(h1, get("w2p"), preferred_element_type=jnp.float32)
                      + get("b2p"))
    return kernel


# ---------------------------------------------------------------------------
# Parameter init (deterministic, synthetic) + forward glue
# ---------------------------------------------------------------------------
def init_params(key, in_dims):
    def nrm(k, shape, scale=0.1):
        return scale * jax.random.normal(k, shape, dtype=jnp.float32)

    keys = iter(jax.random.split(key, 64))
    named = []

    # node-type embeddings (Linear(-1, hidden)).  Only 'news' feeds the logits
    # for model_type='GAT'; the entity embedding is dead w.r.t. the returned
    # logits and is therefore not shipped to the kernel.
    named.append(("embed_news_w", nrm(next(keys), (in_dims["news"], HIDDEN))))
    named.append(("embed_news_b", nrm(next(keys), (1, HIDDEN))))
    _ = nrm(next(keys), (in_dims["entity"], HIDDEN))   # unused entity embed W
    _ = nrm(next(keys), (1, HIDDEN))                   # unused entity embed b

    for l in range(NUM_LAYERS):
        wl = nrm(next(keys), (HIDDEN, HIDDEN)); bl = nrm(next(keys), (1, HIDDEN))
        wr = nrm(next(keys), (HIDDEN, HIDDEN)); br = nrm(next(keys), (1, HIDDEN))
        att = nrm(next(keys), (HEADS, HEAD_DIM))
        bog = nrm(next(keys), (1, HIDDEN))
        # concat lin_l | lin_r -> one matmul produces [gl | gr]
        wlr = jnp.concatenate([wl, wr], axis=1)        # (32, 64)
        blr = jnp.concatenate([bl, br], axis=1)        # (1, 64)
        # per-head att vectors zero-padded to 32 lanes (row h nonzero on head h)
        att_rows = jnp.zeros((HEADS, HIDDEN), jnp.float32)
        for h in range(HEADS):
            att_rows = att_rows.at[h, h * HEAD_DIM:(h + 1) * HEAD_DIM].set(att[h])
        named += [(f"wlr{l}", wlr), (f"blr{l}", blr),
                  (f"att{l}", att_rows), (f"bog{l}", bog)]

    named += [
        ("wqkv", nrm(next(keys), (HIDDEN, 3 * HIDDEN))),   # q|k|v concatenated
        ("bqkv", nrm(next(keys), (1, 3 * HIDDEN))),
        ("wo", nrm(next(keys), (HIDDEN, HIDDEN))),
        ("bo_mha", nrm(next(keys), (1, HIDDEN))),
        ("gamma", jnp.ones((1, HIDDEN), jnp.float32)),
        ("beta", jnp.zeros((1, HIDDEN), jnp.float32)),
    ]

    w1 = nrm(next(keys), (HIDDEN, HIDDEN // 2)); b1 = nrm(next(keys), (1, HIDDEN // 2))
    w2 = nrm(next(keys), (HIDDEN // 2, LOGIT_DIM)); b2 = nrm(next(keys), (1, LOGIT_DIM))
    w2p = jnp.zeros((HIDDEN // 2, LOGIT_PAD), jnp.float32).at[:, :LOGIT_DIM].set(w2)
    b2p = jnp.zeros((1, LOGIT_PAD), jnp.float32).at[:, :LOGIT_DIM].set(b2)
    named += [("w1", w1), ("b1", b1), ("w2p", w2p), ("b2p", b2p)]

    # per-head column indicator (row h = 1 on head-h's 8 columns)
    head_base = jnp.zeros((HEADS, HIDDEN), jnp.float32)
    for h in range(HEADS):
        head_base = head_base.at[h, h * HEAD_DIM:(h + 1) * HEAD_DIM].set(1.0)
    named.append(("head_base", head_base))

    slab, layout = _pack_params(named)
    return {"slab": slab, "layout": layout}


def forward(params, x_dict, adj_news):
    """Single fused pallas_call; returns logits (N_news, 2).

    adj_news[dst, src] must include self-loops (GATv2Conv add_self_loops=True),
    which also guarantees every softmax row has at least one unmasked source.
    """
    x = x_dict["news"]
    n = x.shape[0]
    # head-replicated adjacency so the (H*N_dst, N_src) softmax mask is a view
    adj_hm = jnp.tile(adj_news, (HEADS, 1))                   # (H*N, N)

    out_pad = pl.pallas_call(
        _make_kernel(params["layout"]),
        in_specs=[pl.BlockSpec(memory_space=pltpu.MemorySpace.VMEM)] * 3,
        out_specs=pl.BlockSpec(memory_space=pltpu.MemorySpace.VMEM),
        out_shape=jax.ShapeDtypeStruct((n, LOGIT_PAD), jnp.float32),
    )(x, adj_hm, params["slab"])
    return out_pad[:, :LOGIT_DIM]


# ---------------------------------------------------------------------------
if __name__ == "__main__":
    key = jax.random.PRNGKey(0)
    k_param, k_news, k_ent, k_src, k_dst = jax.random.split(key, 5)

    N_NEWS, NEWS_IN = 16, 20
    N_ENT, ENT_IN = 12, 24
    N_EDGES = 40

    params = init_params(k_param, {"news": NEWS_IN, "entity": ENT_IN})

    x_dict = {
        "news": jax.random.normal(k_news, (N_NEWS, NEWS_IN), dtype=jnp.float32),
        "entity": jax.random.normal(k_ent, (N_ENT, ENT_IN), dtype=jnp.float32),
    }

    # ('news','similar','news') edge_index -> dense adjacency adj[dst, src]
    src = jax.random.randint(k_src, (N_EDGES,), 0, N_NEWS)
    dst = jax.random.randint(k_dst, (N_EDGES,), 0, N_NEWS)
    adj = jnp.zeros((N_NEWS, N_NEWS), jnp.float32).at[dst, src].set(1.0)
    adj = jnp.maximum(adj, jnp.eye(N_NEWS, dtype=jnp.float32))  # add_self_loops

    logits = forward(params, x_dict, adj)
    jax.block_until_ready(logits)
    assert logits.shape == (N_NEWS, 2) and logits.dtype == jnp.float32
    assert bool(jnp.all(jnp.isfinite(logits)))
    print("KERNEL_OK")
</pallas_src>

<mosaic_0001>
module attributes {stable_mosaic.version = 11 : i64} {
  func.func @kernel(%arg0: memref<16x20xf32, #tpu.memory_space<vmem>>, %arg1: memref<64x16xf32, #tpu.memory_space<vmem>>, %arg2: memref<312x128xf32, #tpu.memory_space<vmem>>, %arg3: memref<16x128xf32, #tpu.memory_space<vmem>>) attributes {dimension_semantics = [], scalar_prefetch = 0 : i64, scratch_operands = 0 : i64, tpu.core_type = #tpu.core_type<tc>} {
    %c0 = arith.constant 0 : index
    %c0_0 = arith.constant 0 : index
    %0 = vector.load %arg1[%c0, %c0_0] : memref<64x16xf32, #tpu.memory_space<vmem>>, vector<64x16xf32>
    %cst = arith.constant 0.000000e+00 : f32
    %1 = vector.broadcast %cst : f32 to vector<64x16xf32>
    %2 = arith.cmpf ogt, %0, %1 : vector<64x16xf32>
    %c304 = arith.constant 304 : index
    %c0_1 = arith.constant 0 : index
    %3 = vector.load %arg2[%c304, %c0_1] : memref<312x128xf32, #tpu.memory_space<vmem>>, vector<4x32xf32>
    %c0_2 = arith.constant 0 : index
    %c0_3 = arith.constant 0 : index
    %4 = vector.load %arg0[%c0_2, %c0_3] : memref<16x20xf32, #tpu.memory_space<vmem>>, vector<16x20xf32>
    %c0_4 = arith.constant 0 : index
    %c0_5 = arith.constant 0 : index
    %5 = vector.load %arg2[%c0_4, %c0_5] : memref<312x128xf32, #tpu.memory_space<vmem>>, vector<20x32xf32>
    %cst_6 = arith.constant dense<0.000000e+00> : vector<16x32xf32>
    %6 = tpu.matmul %4, %5, %cst_6 {dimension_numbers = #tpu.dot_dimension_numbers<[1], [0], [0], [1], [0, 0, 1, 1], [], []>} : vector<16x20xf32>, vector<20x32xf32>, vector<16x32xf32> -> vector<16x32xf32>
    %c24 = arith.constant 24 : index
    %c0_7 = arith.constant 0 : index
    %7 = vector.load %arg2[%c24, %c0_7] : memref<312x128xf32, #tpu.memory_space<vmem>>, vector<1x32xf32>
    %8 = vector.broadcast %7 : vector<1x32xf32> to vector<16x32xf32>
    %9 = arith.addf %6, %8 : vector<16x32xf32>
    %c32 = arith.constant 32 : index
    %c0_8 = arith.constant 0 : index
    %10 = vector.load %arg2[%c32, %c0_8] : memref<312x128xf32, #tpu.memory_space<vmem>>, vector<32x64xf32>
    %c64 = arith.constant 64 : index
    %c0_9 = arith.constant 0 : index
    %11 = vector.load %arg2[%c64, %c0_9] : memref<312x128xf32, #tpu.memory_space<vmem>>, vector<1x64xf32>
    %c72 = arith.constant 72 : index
    %c0_10 = arith.constant 0 : index
    %12 = vector.load %arg2[%c72, %c0_10] : memref<312x128xf32, #tpu.memory_space<vmem>>, vector<4x32xf32>
    %c80 = arith.constant 80 : index
    %c0_11 = arith.constant 0 : index
    %13 = vector.load %arg2[%c80, %c0_11] : memref<312x128xf32, #tpu.memory_space<vmem>>, vector<1x32xf32>
    %cst_12 = arith.constant dense<0.000000e+00> : vector<16x64xf32>
    %14 = tpu.matmul %9, %10, %cst_12 {dimension_numbers = #tpu.dot_dimension_numbers<[1], [0], [0], [1], [0, 0, 1, 1], [], []>} : vector<16x32xf32>, vector<32x64xf32>, vector<16x64xf32> -> vector<16x64xf32>
    %15 = vector.broadcast %11 : vector<1x64xf32> to vector<16x64xf32>
    %16 = arith.addf %14, %15 : vector<16x64xf32>
    %17 = vector.extract_strided_slice %16 {offsets = [0, 0], sizes = [16, 32], strides = [1, 1]} : vector<16x64xf32> to vector<16x32xf32>
    %18 = vector.extract_strided_slice %16 {offsets = [0, 32], sizes = [16, 32], strides = [1, 1]} : vector<16x64xf32> to vector<16x32xf32>
    %19 = vector.shape_cast %18 : vector<16x32xf32> to vector<16x1x32xf32>
    %20 = vector.shape_cast %17 : vector<16x32xf32> to vector<1x16x32xf32>
    %21 = vector.broadcast %19 : vector<16x1x32xf32> to vector<16x16x32xf32>
    %22 = vector.broadcast %20 : vector<1x16x32xf32> to vector<16x16x32xf32>
    %23 = arith.addf %21, %22 : vector<16x16x32xf32>
    %cst_13 = arith.constant 0.000000e+00 : f32
    %24 = vector.broadcast %cst_13 : f32 to vector<16x16x32xf32>
    %25 = arith.cmpf oge, %23, %24 : vector<16x16x32xf32>
    %cst_14 = arith.constant 2.000000e-01 : f32
    %26 = vector.broadcast %cst_14 : f32 to vector<16x16x32xf32>
    %27 = arith.mulf %26, %23 : vector<16x16x32xf32>
    %28 = arith.select %25, %23, %27 : vector<16x16x32xi1>, vector<16x16x32xf32>
    %29 = vector.extract_strided_slice %12 {offsets = [0, 0], sizes = [1, 32], strides = [1, 1]} : vector<4x32xf32> to vector<1x32xf32>
    %30 = vector.shape_cast %29 : vector<1x32xf32> to vector<1x1x32xf32>
    %31 = vector.broadcast %30 : vector<1x1x32xf32> to vector<16x16x32xf32>
    %32 = arith.mulf %28, %31 : vector<16x16x32xf32>
    %cst_15 = arith.constant dense<0.000000e+00> : vector<16x16xf32>
    %33 = vector.multi_reduction <add>, %32, %cst_15 [2] : vector<16x16x32xf32> to vector<16x16xf32>
    %34 = vector.extract_strided_slice %12 {offsets = [1, 0], sizes = [1, 32], strides = [1, 1]} : vector<4x32xf32> to vector<1x32xf32>
    %35 = vector.shape_cast %34 : vector<1x32xf32> to vector<1x1x32xf32>
    %36 = vector.broadcast %35 : vector<1x1x32xf32> to vector<16x16x32xf32>
    %37 = arith.mulf %28, %36 : vector<16x16x32xf32>
    %cst_16 = arith.constant dense<0.000000e+00> : vector<16x16xf32>
    %38 = vector.multi_reduction <add>, %37, %cst_16 [2] : vector<16x16x32xf32> to vector<16x16xf32>
    %39 = vector.extract_strided_slice %12 {offsets = [2, 0], sizes = [1, 32], strides = [1, 1]} : vector<4x32xf32> to vector<1x32xf32>
    %40 = vector.shape_cast %39 : vector<1x32xf32> to vector<1x1x32xf32>
    %41 = vector.broadcast %40 : vector<1x1x32xf32> to vector<16x16x32xf32>
    %42 = arith.mulf %28, %41 : vector<16x16x32xf32>
    %cst_17 = arith.constant dense<0.000000e+00> : vector<16x16xf32>
    %43 = vector.multi_reduction <add>, %42, %cst_17 [2] : vector<16x16x32xf32> to vector<16x16xf32>
    %44 = vector.extract_strided_slice %12 {offsets = [3, 0], sizes = [1, 32], strides = [1, 1]} : vector<4x32xf32> to vector<1x32xf32>
    %45 = vector.shape_cast %44 : vector<1x32xf32> to vector<1x1x32xf32>
    %46 = vector.broadcast %45 : vector<1x1x32xf32> to vector<16x16x32xf32>
    %47 = arith.mulf %28, %46 : vector<16x16x32xf32>
    %cst_18 = arith.constant dense<0.000000e+00> : vector<16x16xf32>
    %48 = vector.multi_reduction <add>, %47, %cst_18 [2] : vector<16x16x32xf32> to vector<16x16xf32>
    %49 = tpu.concatenate %33, %38, %43, %48 in 0 : vector<16x16xf32>, vector<16x16xf32>, vector<16x16xf32>, vector<16x16xf32> -> vector<64x16xf32>
    %cst_19 = arith.constant -1.000000e+30 : f32
    %50 = vector.broadcast %cst_19 : f32 to vector<64x16xf32>
    %51 = arith.select %2, %49, %50 : vector<64x16xi1>, vector<64x16xf32>
    %cst_20 = arith.constant dense<0xFF800000> : vector<64xf32>
    %52 = vector.multi_reduction <maximumf>, %51, %cst_20 [1] : vector<64x16xf32> to vector<64xf32>
    %53 = vector.shape_cast %52 : vector<64xf32> to vector<64x1xf32>
    %54 = vector.broadcast %53 : vector<64x1xf32> to vector<64x16xf32>
    %55 = arith.subf %51, %54 : vector<64x16xf32>
    %56 = math.exp %55 : vector<64x16xf32>
    %cst_21 = arith.constant dense<0.000000e+00> : vector<64xf32>
    %57 = vector.multi_reduction <add>, %56, %cst_21 [1] : vector<64x16xf32> to vector<64xf32>
    %58 = vector.shape_cast %57 : vector<64xf32> to vector<64x1xf32>
    %59 = vector.broadcast %58 : vector<64x1xf32> to vector<64x16xf32>
    %60 = arith.divf %56, %59 : vector<64x16xf32>
    %cst_22 = arith.constant dense<0.000000e+00> : vector<64x32xf32>
    %61 = tpu.matmul %60, %17, %cst_22 {dimension_numbers = #tpu.dot_dimension_numbers<[1], [0], [0], [1], [0, 0, 1, 1], [], []>} : vector<64x16xf32>, vector<16x32xf32>, vector<64x32xf32> -> vector<64x32xf32>
    %62 = vector.extract_strided_slice %61 {offsets = [0, 0], sizes = [16, 32], strides = [1, 1]} : vector<64x32xf32> to vector<16x32xf32>
    %63 = vector.extract_strided_slice %3 {offsets = [0, 0], sizes = [1, 32], strides = [1, 1]} : vector<4x32xf32> to vector<1x32xf32>
    %64 = vector.broadcast %63 : vector<1x32xf32> to vector<16x32xf32>
    %65 = arith.mulf %62, %64 : vector<16x32xf32>
    %66 = vector.extract_strided_slice %61 {offsets = [16, 0], sizes = [16, 32], strides = [1, 1]} : vector<64x32xf32> to vector<16x32xf32>
    %67 = vector.extract_strided_slice %3 {offsets = [1, 0], sizes = [1, 32], strides = [1, 1]} : vector<4x32xf32> to vector<1x32xf32>
    %68 = vector.broadcast %67 : vector<1x32xf32> to vector<16x32xf32>
    %69 = arith.mulf %66, %68 : vector<16x32xf32>
    %70 = arith.addf %65, %69 : vector<16x32xf32>
    %71 = vector.extract_strided_slice %61 {offsets = [32, 0], sizes = [16, 32], strides = [1, 1]} : vector<64x32xf32> to vector<16x32xf32>
    %72 = vector.extract_strided_slice %3 {offsets = [2, 0], sizes = [1, 32], strides = [1, 1]} : vector<4x32xf32> to vector<1x32xf32>
    %73 = vector.broadcast %72 : vector<1x32xf32> to vector<16x32xf32>
    %74 = arith.mulf %71, %73 : vector<16x32xf32>
    %75 = arith.addf %70, %74 : vector<16x32xf32>
    %76 = vector.extract_strided_slice %61 {offsets = [48, 0], sizes = [16, 32], strides = [1, 1]} : vector<64x32xf32> to vector<16x32xf32>
    %77 = vector.extract_strided_slice %3 {offsets = [3, 0], sizes = [1, 32], strides = [1, 1]} : vector<4x32xf32> to vector<1x32xf32>
    %78 = vector.broadcast %77 : vector<1x32xf32> to vector<16x32xf32>
    %79 = arith.mulf %76, %78 : vector<16x32xf32>
    %80 = arith.addf %75, %79 : vector<16x32xf32>
    %81 = vector.broadcast %13 : vector<1x32xf32> to vector<16x32xf32>
    %82 = arith.addf %80, %81 : vector<16x32xf32>
    %cst_23 = arith.constant 0.000000e+00 : f32
    %83 = vector.broadcast %cst_23 : f32 to vector<16x32xf32>
    %84 = arith.maximumf %82, %83 : vector<16x32xf32>
    %c88 = arith.constant 88 : index
    %c0_24 = arith.constant 0 : index
    %85 = vector.load %arg2[%c88, %c0_24] : memref<312x128xf32, #tpu.memory_space<vmem>>, vector<32x64xf32>
    %c120 = arith.constant 120 : index
    %c0_25 = arith.constant 0 : index
    %86 = vector.load %arg2[%c120, %c0_25] : memref<312x128xf32, #tpu.memory_space<vmem>>, vector<1x64xf32>
    %c128 = arith.constant 128 : index
    %c0_26 = arith.constant 0 : index
    %87 = vector.load %arg2[%c128, %c0_26] : memref<312x128xf32, #tpu.memory_space<vmem>>, vector<4x32xf32>
    %c136 = arith.constant 136 : index
    %c0_27 = arith.constant 0 : index
    %88 = vector.load %arg2[%c136, %c0_27] : memref<312x128xf32, #tpu.memory_space<vmem>>, vector<1x32xf32>
    %cst_28 = arith.constant dense<0.000000e+00> : vector<16x64xf32>
    %89 = tpu.matmul %84, %85, %cst_28 {dimension_numbers = #tpu.dot_dimension_numbers<[1], [0], [0], [1], [0, 0, 1, 1], [], []>} : vector<16x32xf32>, vector<32x64xf32>, vector<16x64xf32> -> vector<16x64xf32>
    %90 = vector.broadcast %86 : vector<1x64xf32> to vector<16x64xf32>
    %91 = arith.addf %89, %90 : vector<16x64xf32>
    %92 = vector.extract_strided_slice %91 {offsets = [0, 0], sizes = [16, 32], strides = [1, 1]} : vector<16x64xf32> to vector<16x32xf32>
    %93 = vector.extract_strided_slice %91 {offsets = [0, 32], sizes = [16, 32], strides = [1, 1]} : vector<16x64xf32> to vector<16x32xf32>
    %94 = vector.shape_cast %93 : vector<16x32xf32> to vector<16x1x32xf32>
    %95 = vector.shape_cast %92 : vector<16x32xf32> to vector<1x16x32xf32>
    %96 = vector.broadcast %94 : vector<16x1x32xf32> to vector<16x16x32xf32>
    %97 = vector.broadcast %95 : vector<1x16x32xf32> to vector<16x16x32xf32>
    %98 = arith.addf %96, %97 : vector<16x16x32xf32>
    %cst_29 = arith.constant 0.000000e+00 : f32
    %99 = vector.broadcast %cst_29 : f32 to vector<16x16x32xf32>
    %100 = arith.cmpf oge, %98, %99 : vector<16x16x32xf32>
    %cst_30 = arith.constant 2.000000e-01 : f32
    %101 = vector.broadcast %cst_30 : f32 to vector<16x16x32xf32>
    %102 = arith.mulf %101, %98 : vector<16x16x32xf32>
    %103 = arith.select %100, %98, %102 : vector<16x16x32xi1>, vector<16x16x32xf32>
    %104 = vector.extract_strided_slice %87 {offsets = [0, 0], sizes = [1, 32], strides = [1, 1]} : vector<4x32xf32> to vector<1x32xf32>
    %105 = vector.shape_cast %104 : vector<1x32xf32> to vector<1x1x32xf32>
    %106 = vector.broadcast %105 : vector<1x1x32xf32> to vector<16x16x32xf32>
    %107 = arith.mulf %103, %106 : vector<16x16x32xf32>
    %cst_31 = arith.constant dense<0.000000e+00> : vector<16x16xf32>
    %108 = vector.multi_reduction <add>, %107, %cst_31 [2] : vector<16x16x32xf32> to vector<16x16xf32>
    %109 = vector.extract_strided_slice %87 {offsets = [1, 0], sizes = [1, 32], strides = [1, 1]} : vector<4x32xf32> to vector<1x32xf32>
    %110 = vector.shape_cast %109 : vector<1x32xf32> to vector<1x1x32xf32>
    %111 = vector.broadcast %110 : vector<1x1x32xf32> to vector<16x16x32xf32>
    %112 = arith.mulf %103, %111 : vector<16x16x32xf32>
    %cst_32 = arith.constant dense<0.000000e+00> : vector<16x16xf32>
    %113 = vector.multi_reduction <add>, %112, %cst_32 [2] : vector<16x16x32xf32> to vector<16x16xf32>
    %114 = vector.extract_strided_slice %87 {offsets = [2, 0], sizes = [1, 32], strides = [1, 1]} : vector<4x32xf32> to vector<1x32xf32>
    %115 = vector.shape_cast %114 : vector<1x32xf32> to vector<1x1x32xf32>
    %116 = vector.broadcast %115 : vector<1x1x32xf32> to vector<16x16x32xf32>
    %117 = arith.mulf %103, %116 : vector<16x16x32xf32>
    %cst_33 = arith.constant dense<0.000000e+00> : vector<16x16xf32>
    %118 = vector.multi_reduction <add>, %117, %cst_33 [2] : vector<16x16x32xf32> to vector<16x16xf32>
    %119 = vector.extract_strided_slice %87 {offsets = [3, 0], sizes = [1, 32], strides = [1, 1]} : vector<4x32xf32> to vector<1x32xf32>
    %120 = vector.shape_cast %119 : vector<1x32xf32> to vector<1x1x32xf32>
    %121 = vector.broadcast %120 : vector<1x1x32xf32> to vector<16x16x32xf32>
    %122 = arith.mulf %103, %121 : vector<16x16x32xf32>
    %cst_34 = arith.constant dense<0.000000e+00> : vector<16x16xf32>
    %123 = vector.multi_reduction <add>, %122, %cst_34 [2] : vector<16x16x32xf32> to vector<16x16xf32>
    %124 = tpu.concatenate %108, %113, %118, %123 in 0 : vector<16x16xf32>, vector<16x16xf32>, vector<16x16xf32>, vector<16x16xf32> -> vector<64x16xf32>
    %cst_35 = arith.constant -1.000000e+30 : f32
    %125 = vector.broadcast %cst_35 : f32 to vector<64x16xf32>
    %126 = arith.select %2, %124, %125 : vector<64x16xi1>, vector<64x16xf32>
    %cst_36 = arith.constant dense<0xFF800000> : vector<64xf32>
    %127 = vector.multi_reduction <maximumf>, %126, %cst_36 [1] : vector<64x16xf32> to vector<64xf32>
    %128 = vector.shape_cast %127 : vector<64xf32> to vector<64x1xf32>
    %129 = vector.broadcast %128 : vector<64x1xf32> to vector<64x16xf32>
    %130 = arith.subf %126, %129 : vector<64x16xf32>
    %131 = math.exp %130 : vector<64x16xf32>
    %cst_37 = arith.constant dense<0.000000e+00> : vector<64xf32>
    %132 = vector.multi_reduction <add>, %131, %cst_37 [1] : vector<64x16xf32> to vector<64xf32>
    %133 = vector.shape_cast %132 : vector<64xf32> to vector<64x1xf32>
    %134 = vector.broadcast %133 : vector<64x1xf32> to vector<64x16xf32>
    %135 = arith.divf %131, %134 : vector<64x16xf32>
    %cst_38 = arith.constant dense<0.000000e+00> : vector<64x32xf32>
    %136 = tpu.matmul %135, %92, %cst_38 {dimension_numbers = #tpu.dot_dimension_numbers<[1], [0], [0], [1], [0, 0, 1, 1], [], []>} : vector<64x16xf32>, vector<16x32xf32>, vector<64x32xf32> -> vector<64x32xf32>
    %137 = vector.extract_strided_slice %136 {offsets = [0, 0], sizes = [16, 32], strides = [1, 1]} : vector<64x32xf32> to vector<16x32xf32>
    %138 = vector.extract_strided_slice %3 {offsets = [0, 0], sizes = [1, 32], strides = [1, 1]} : vector<4x32xf32> to vector<1x32xf32>
    %139 = vector.broadcast %138 : vector<1x32xf32> to vector<16x32xf32>
    %140 = arith.mulf %137, %139 : vector<16x32xf32>
    %141 = vector.extract_strided_slice %136 {offsets = [16, 0], sizes = [16, 32], strides = [1, 1]} : vector<64x32xf32> to vector<16x32xf32>
    %142 = vector.extract_strided_slice %3 {offsets = [1, 0], sizes = [1, 32], strides = [1, 1]} : vector<4x32xf32> to vector<1x32xf32>
    %143 = vector.broadcast %142 : vector<1x32xf32> to vector<16x32xf32>
    %144 = arith.mulf %141, %143 : vector<16x32xf32>
    %145 = arith.addf %140, %144 : vector<16x32xf32>
    %146 = vector.extract_strided_slice %136 {offsets = [32, 0], sizes = [16, 32], strides = [1, 1]} : vector<64x32xf32> to vector<16x32xf32>
    %147 = vector.extract_strided_slice %3 {offsets = [2, 0], sizes = [1, 32], strides = [1, 1]} : vector<4x32xf32> to vector<1x32xf32>
    %148 = vector.broadcast %147 : vector<1x32xf32> to vector<16x32xf32>
    %149 = arith.mulf %146, %148 : vector<16x32xf32>
    %150 = arith.addf %145, %149 : vector<16x32xf32>
    %151 = vector.extract_strided_slice %136 {offsets = [48, 0], sizes = [16, 32], strides = [1, 1]} : vector<64x32xf32> to vector<16x32xf32>
    %152 = vector.extract_strided_slice %3 {offsets = [3, 0], sizes = [1, 32], strides = [1, 1]} : vector<4x32xf32> to vector<1x32xf32>
    %153 = vector.broadcast %152 : vector<1x32xf32> to vector<16x32xf32>
    %154 = arith.mulf %151, %153 : vector<16x32xf32>
    %155 = arith.addf %150, %154 : vector<16x32xf32>
    %156 = vector.broadcast %88 : vector<1x32xf32> to vector<16x32xf32>
    %157 = arith.addf %155, %156 : vector<16x32xf32>
    %cst_39 = arith.constant 0.000000e+00 : f32
    %158 = vector.broadcast %cst_39 : f32 to vector<16x32xf32>
    %159 = arith.maximumf %157, %158 : vector<16x32xf32>
    %c144 = arith.constant 144 : index
    %c0_40 = arith.constant 0 : index
    %160 = vector.load %arg2[%c144, %c0_40] : memref<312x128xf32, #tpu.memory_space<vmem>>, vector<32x96xf32>
    %c176 = arith.constant 176 : index
    %c0_41 = arith.constant 0 : index
    %161 = vector.load %arg2[%c176, %c0_41] : memref<312x128xf32, #tpu.memory_space<vmem>>, vector<1x96xf32>
    %c184 = arith.constant 184 : index
    %c0_42 = arith.constant 0 : index
    %162 = vector.load %arg2[%c184, %c0_42] : memref<312x128xf32, #tpu.memory_space<vmem>>, vector<32x32xf32>
    %c216 = arith.constant 216 : index
    %c0_43 = arith.constant 0 : index
    %163 = vector.load %arg2[%c216, %c0_43] : memref<312x128xf32, #tpu.memory_space<vmem>>, vector<1x32xf32>
    %c224 = arith.constant 224 : index
    %c0_44 = arith.constant 0 : index
    %164 = vector.load %arg2[%c224, %c0_44] : memref<312x128xf32, #tpu.memory_space<vmem>>, vector<1x32xf32>
    %c232 = arith.constant 232 : index
    %c0_45 = arith.constant 0 : index
    %165 = vector.load %arg2[%c232, %c0_45] : memref<312x128xf32, #tpu.memory_space<vmem>>, vector<1x32xf32>
    %cst_46 = arith.constant dense<0.000000e+00> : vector<16x96xf32>
    %166 = tpu.matmul %159, %160, %cst_46 {dimension_numbers = #tpu.dot_dimension_numbers<[1], [0], [0], [1], [0, 0, 1, 1], [], []>} : vector<16x32xf32>, vector<32x96xf32>, vector<16x96xf32> -> vector<16x96xf32>
    %167 = vector.broadcast %161 : vector<1x96xf32> to vector<16x96xf32>
    %168 = arith.addf %166, %167 : vector<16x96xf32>
    %169 = vector.extract_strided_slice %168 {offsets = [0, 0], sizes = [16, 32], strides = [1, 1]} : vector<16x96xf32> to vector<16x32xf32>
    %cst_47 = arith.constant 0.353553385 : f32
    %170 = vector.broadcast %cst_47 : f32 to vector<16x32xf32>
    %171 = arith.mulf %169, %170 : vector<16x32xf32>
    %172 = vector.extract_strided_slice %168 {offsets = [0, 32], sizes = [16, 32], strides = [1, 1]} : vector<16x96xf32> to vector<16x32xf32>
    %173 = vector.extract_strided_slice %168 {offsets = [0, 64], sizes = [16, 32], strides = [1, 1]} : vector<16x96xf32> to vector<16x32xf32>
    %174 = vector.extract_strided_slice %3 {offsets = [0, 0], sizes = [1, 32], strides = [1, 1]} : vector<4x32xf32> to vector<1x32xf32>
    %175 = vector.broadcast %174 : vector<1x32xf32> to vector<16x32xf32>
    %176 = arith.mulf %171, %175 : vector<16x32xf32>
    %177 = vector.extract_strided_slice %3 {offsets = [1, 0], sizes = [1, 32], strides = [1, 1]} : vector<4x32xf32> to vector<1x32xf32>
    %178 = vector.broadcast %177 : vector<1x32xf32> to vector<16x32xf32>
    %179 = arith.mulf %171, %178 : vector<16x32xf32>
    %180 = vector.extract_strided_slice %3 {offsets = [2, 0], sizes = [1, 32], strides = [1, 1]} : vector<4x32xf32> to vector<1x32xf32>
    %181 = vector.broadcast %180 : vector<1x32xf32> to vector<16x32xf32>
    %182 = arith.mulf %171, %181 : vector<16x32xf32>
    %183 = vector.extract_strided_slice %3 {offsets = [3, 0], sizes = [1, 32], strides = [1, 1]} : vector<4x32xf32> to vector<1x32xf32>
    %184 = vector.broadcast %183 : vector<1x32xf32> to vector<16x32xf32>
    %185 = arith.mulf %171, %184 : vector<16x32xf32>
    %186 = tpu.concatenate %176, %179, %182, %185 in 0 : vector<16x32xf32>, vector<16x32xf32>, vector<16x32xf32>, vector<16x32xf32> -> vector<64x32xf32>
    %187 = tpu.transpose %172, [1, 0] : vector<16x32xf32> -> vector<32x16xf32>
    %cst_48 = arith.constant dense<0.000000e+00> : vector<64x16xf32>
    %188 = tpu.matmul %186, %187, %cst_48 {dimension_numbers = #tpu.dot_dimension_numbers<[1], [0], [0], [1], [0, 0, 1, 1], [], []>} : vector<64x32xf32>, vector<32x16xf32>, vector<64x16xf32> -> vector<64x16xf32>
    %cst_49 = arith.constant dense<0xFF800000> : vector<64xf32>
    %189 = vector.multi_reduction <maximumf>, %188, %cst_49 [1] : vector<64x16xf32> to vector<64xf32>
    %190 = vector.shape_cast %189 : vector<64xf32> to vector<64x1xf32>
    %191 = vector.broadcast %190 : vector<64x1xf32> to vector<64x16xf32>
    %192 = arith.subf %188, %191 : vector<64x16xf32>
    %193 = math.exp %192 : vector<64x16xf32>
    %cst_50 = arith.constant dense<0.000000e+00> : vector<64xf32>
    %194 = vector.multi_reduction <add>, %193, %cst_50 [1] : vector<64x16xf32> to vector<64xf32>
    %195 = vector.shape_cast %194 : vector<64xf32> to vector<64x1xf32>
    %196 = vector.broadcast %195 : vector<64x1xf32> to vector<64x16xf32>
    %197 = arith.divf %193, %196 : vector<64x16xf32>
    %cst_51 = arith.constant dense<0.000000e+00> : vector<64x32xf32>
    %198 = tpu.matmul %197, %173, %cst_51 {dimension_numbers = #tpu.dot_dimension_numbers<[1], [0], [0], [1], [0, 0, 1, 1], [], []>} : vector<64x16xf32>, vector<16x32xf32>, vector<64x32xf32> -> vector<64x32xf32>
    %199 = vector.extract_strided_slice %198 {offsets = [0, 0], sizes = [16, 32], strides = [1, 1]} : vector<64x32xf32> to vector<16x32xf32>
    %200 = vector.extract_strided_slice %3 {offsets = [0, 0], sizes = [1, 32], strides = [1, 1]} : vector<4x32xf32> to vector<1x32xf32>
    %201 = vector.broadcast %200 : vector<1x32xf32> to vector<16x32xf32>
    %202 = arith.mulf %199, %201 : vector<16x32xf32>
    %203 = vector.extract_strided_slice %198 {offsets = [16, 0], sizes = [16, 32], strides = [1, 1]} : vector<64x32xf32> to vector<16x32xf32>
    %204 = vector.extract_strided_slice %3 {offsets = [1, 0], sizes = [1, 32], strides = [1, 1]} : vector<4x32xf32> to vector<1x32xf32>
    %205 = vector.broadcast %204 : vector<1x32xf32> to vector<16x32xf32>
    %206 = arith.mulf %203, %205 : vector<16x32xf32>
    %207 = arith.addf %202, %206 : vector<16x32xf32>
    %208 = vector.extract_strided_slice %198 {offsets = [32, 0], sizes = [16, 32], strides = [1, 1]} : vector<64x32xf32> to vector<16x32xf32>
    %209 = vector.extract_strided_slice %3 {offsets = [2, 0], sizes = [1, 32], strides = [1, 1]} : vector<4x32xf32> to vector<1x32xf32>
    %210 = vector.broadcast %209 : vector<1x32xf32> to vector<16x32xf32>
    %211 = arith.mulf %208, %210 : vector<16x32xf32>
    %212 = arith.addf %207, %211 : vector<16x32xf32>
    %213 = vector.extract_strided_slice %198 {offsets = [48, 0], sizes = [16, 32], strides = [1, 1]} : vector<64x32xf32> to vector<16x32xf32>
    %214 = vector.extract_strided_slice %3 {offsets = [3, 0], sizes = [1, 32], strides = [1, 1]} : vector<4x32xf32> to vector<1x32xf32>
    %215 = vector.broadcast %214 : vector<1x32xf32> to vector<16x32xf32>
    %216 = arith.mulf %213, %215 : vector<16x32xf32>
    %217 = arith.addf %212, %216 : vector<16x32xf32>
    %cst_52 = arith.constant dense<0.000000e+00> : vector<16x32xf32>
    %218 = tpu.matmul %217, %162, %cst_52 {dimension_numbers = #tpu.dot_dimension_numbers<[1], [0], [0], [1], [0, 0, 1, 1], [], []>} : vector<16x32xf32>, vector<32x32xf32>, vector<16x32xf32> -> vector<16x32xf32>
    %219 = vector.broadcast %163 : vector<1x32xf32> to vector<16x32xf32>
    %220 = arith.addf %218, %219 : vector<16x32xf32>
    %221 = arith.addf %159, %220 : vector<16x32xf32>
    %cst_53 = arith.constant dense<0.000000e+00> : vector<16xf32>
    %222 = vector.multi_reduction <add>, %221, %cst_53 [1] : vector<16x32xf32> to vector<16xf32>
    %223 = vector.shape_cast %222 : vector<16xf32> to vector<16x1xf32>
    %cst_54 = arith.constant 3.200000e+01 : f32
    %224 = vector.broadcast %cst_54 : f32 to vector<16x1xf32>
    %225 = arith.divf %223, %224 : vector<16x1xf32>
    %226 = vector.broadcast %225 : vector<16x1xf32> to vector<16x32xf32>
    %227 = arith.subf %221, %226 : vector<16x32xf32>
    %228 = arith.mulf %227, %227 : vector<16x32xf32>
    %cst_55 = arith.constant dense<0.000000e+00> : vector<16xf32>
    %229 = vector.multi_reduction <add>, %228, %cst_55 [1] : vector<16x32xf32> to vector<16xf32>
    %230 = vector.shape_cast %229 : vector<16xf32> to vector<16x1xf32>
    %cst_56 = arith.constant 3.200000e+01 : f32
    %231 = vector.broadcast %cst_56 : f32 to vector<16x1xf32>
    %232 = arith.divf %230, %231 : vector<16x1xf32>
    %233 = vector.broadcast %225 : vector<16x1xf32> to vector<16x32xf32>
    %234 = arith.subf %221, %233 : vector<16x32xf32>
    %cst_57 = arith.constant 9.99999974E-6 : f32
    %235 = vector.broadcast %cst_57 : f32 to vector<16x1xf32>
    %236 = arith.addf %232, %235 : vector<16x1xf32>
    %237 = math.rsqrt %236 : vector<16x1xf32>
    %238 = vector.broadcast %237 : vector<16x1xf32> to vector<16x32xf32>
    %239 = arith.mulf %234, %238 : vector<16x32xf32>
    %240 = vector.broadcast %164 : vector<1x32xf32> to vector<16x32xf32>
    %241 = arith.mulf %239, %240 : vector<16x32xf32>
    %242 = vector.broadcast %165 : vector<1x32xf32> to vector<16x32xf32>
    %243 = arith.addf %241, %242 : vector<16x32xf32>
    %c240 = arith.constant 240 : index
    %c0_58 = arith.constant 0 : index
    %244 = vector.load %arg2[%c240, %c0_58] : memref<312x128xf32, #tpu.memory_space<vmem>>, vector<32x16xf32>
    %cst_59 = arith.constant dense<0.000000e+00> : vector<16x16xf32>
    %245 = tpu.matmul %243, %244, %cst_59 {dimension_numbers = #tpu.dot_dimension_numbers<[1], [0], [0], [1], [0, 0, 1, 1], [], []>} : vector<16x32xf32>, vector<32x16xf32>, vector<16x16xf32> -> vector<16x16xf32>
    %c272 = arith.constant 272 : index
    %c0_60 = arith.constant 0 : index
    %246 = vector.load %arg2[%c272, %c0_60] : memref<312x128xf32, #tpu.memory_space<vmem>>, vector<1x16xf32>
    %247 = vector.broadcast %246 : vector<1x16xf32> to vector<16x16xf32>
    %248 = arith.addf %245, %247 : vector<16x16xf32>
    %cst_61 = arith.constant 0.000000e+00 : f32
    %249 = vector.broadcast %cst_61 : f32 to vector<16x16xf32>
    %250 = arith.maximumf %248, %249 : vector<16x16xf32>
    %c280 = arith.constant 280 : index
    %c0_62 = arith.constant 0 : index
    %251 = vector.load %arg2[%c280, %c0_62] : memref<312x128xf32, #tpu.memory_space<vmem>>, vector<16x128xf32>
    %cst_63 = arith.constant dense<0.000000e+00> : vector<16x128xf32>
    %252 = tpu.matmul %250, %251, %cst_63 {dimension_numbers = #tpu.dot_dimension_numbers<[1], [0], [0], [1], [0, 0, 1, 1], [], []>} : vector<16x16xf32>, vector<16x128xf32>, vector<16x128xf32> -> vector<16x128xf32>
    %c296 = arith.constant 296 : index
    %c0_64 = arith.constant 0 : index
    %253 = vector.load %arg2[%c296, %c0_64] : memref<312x128xf32, #tpu.memory_space<vmem>>, vector<1x128xf32>
    %254 = vector.broadcast %253 : vector<1x128xf32> to vector<16x128xf32>
    %255 = arith.addf %252, %254 : vector<16x128xf32>
    %c0_65 = arith.constant 0 : index
    %c0_66 = arith.constant 0 : index
    %256 = vector.load %arg3[%c0_65, %c0_66] : memref<16x128xf32, #tpu.memory_space<vmem>>, vector<16x128xf32>
    tpu.vector_store %arg3[%c0_65, %c0_66], %255 {strides = array<i32>} : memref<16x128xf32, #tpu.memory_space<vmem>>, vector<16x128xf32>,
    return
  }
}

</mosaic_0001>

<llo_original>
// kernel: tpu_custom_call.1
$region0: #{tpu_custom_call.1}
  #allocation0 [shape = 'u32[]', space=smem, size = 0x4, offset = 0x4, fixed_abs, tag = 'smem constant byte address 0x4 - core index']
  #allocation1 [shape = 'u32[144,128]{1,0:T(1,128)}', space=vmem, size = 0x12000, scoped, tag = 'internal scratch']
  %s0 = inlined_call_operand.vmem [shape: f32[16,20], index: 0, kind: input, shape index: {}]
  %s1 = inlined_call_operand.vmem [shape: f32[64,16], index: 1, kind: input, shape index: {}]
  %s2 = inlined_call_operand.hbm [shape: f32[312,128], index: 2, kind: input, shape index: {}]
  %s3 = inlined_call_operand.hbm [shape: f32[16,128], index: 3, kind: output, shape index: {}]
  %s4 = sld [smem:[#allocation0]]
  $region26: #{tpu_custom_call.1} parent=0
    _
  %s6 = ssub.s32 1, %s4
  %s7 = scalar_select 0, %s6, %s4
  $region1: #{tpu_custom_call.1} parent=0
    #allocation2 [shape = 'u8[159744]{0}', space=vmem, size = 0x27000, scoped, tag = 'input window, operand 2, single buffered']
    #allocation3 [shape = 's32[1]{0}', space=sflag, size = 0x4, scoped, tag = 'scoped memory for tpu_custom_call.1']
    #allocation4 [shape = 's32[1]{0}', space=sflag, size = 0x4, scoped, tag = 'scoped memory for tpu_custom_call.1']
    #allocation5 [shape = 'u8[8192]{0}', space=vmem, size = 0x2000, scoped, tag = 'output window, operand 0, single buffered']
    %8 = vsyncpa [#allocation3], 0
    %9 = vsyncpa [#allocation4], 0
    // Predicated region
    $region2: #{tpu_custom_call.1} parent=1 // pred_check
      _
    $region3: #{tpu_custom_call.1} parent=1 // pred_check_branch
      %11 = sbr.rel (0) target = $region5
    $region4: #{tpu_custom_call.1} parent=1 // pred_region
      _
    $region5: #{tpu_custom_call.1} parent=1 // pred_fallthru
      _
    // Predicated region
    $region6: #{tpu_custom_call.1} parent=1 // pred_check
      _
    $region7: #{tpu_custom_call.1} parent=1 // pred_check_branch
      %13 = sbr.rel (0) target = $region9
    $region8: #{tpu_custom_call.1} parent=1 // pred_region
      _
    $region9: #{tpu_custom_call.1} parent=1 // pred_fallthru
      _
    // Predicated region
    $region10: #{tpu_custom_call.1} parent=1 // pred_check
      _
    $region11: #{tpu_custom_call.1} parent=1 // pred_check_branch
      %15 = sbr.rel (0) target = $region13
    $region12: #{tpu_custom_call.1} parent=1 // pred_region
      %s17 = ssub.s32 4992, 4992
      %18 = vsyncadd [#allocation3], %s17
      %s19 = sshll.u32 [#allocation2], 4
      %s20 = int_to_ptr.vmem [resolvable:$true] %s19
      %25 = dma.hbm_to_vmem [thread:$0]  %s2, 4992, %s20, [#allocation3], 128, 128, 8
    $region13: #{tpu_custom_call.1} parent=1 // pred_fallthru
      _
    // Predicated region
    $region14: #{tpu_custom_call.1} parent=1 // pred_check
      _
    $region15: #{tpu_custom_call.1} parent=1 // pred_check_branch
      %27 = sbr.rel (0) target = $region17
    $region16: #{tpu_custom_call.1} parent=1 // pred_region
      %28 = dma.done [#allocation3], 4992
    $region17: #{tpu_custom_call.1} parent=1 // pred_fallthru
      _
    %v29 = vld [vmem:[%s1] sm:$0xff]
    %v30 = vld [vmem:[%s1 + $0x8] sm:$0xff]
    %v31 = vld [vmem:[%s1 + $0x10] sm:$0xff]
    %v32 = vld [vmem:[%s1 + $0x18] sm:$0xff]
    %v33 = vld [vmem:[%s1 + $0x20] sm:$0xff]
    %v34 = vld [vmem:[%s1 + $0x28] sm:$0xff]
    %v35 = vld [vmem:[%s1 + $0x30] sm:$0xff]
    %v36 = vld [vmem:[%s1 + $0x38] sm:$0xff]
    %vm37 = vcmp.gt.f32.partialorder %v29, 0.0
    %vm38 = vcmp.gt.f32.partialorder %v30, 0.0
    %vm39 = vcmp.gt.f32.partialorder %v31, 0.0
    %vm40 = vcmp.gt.f32.partialorder %v32, 0.0
    %vm41 = vcmp.gt.f32.partialorder %v33, 0.0
    %vm42 = vcmp.gt.f32.partialorder %v34, 0.0
    %vm43 = vcmp.gt.f32.partialorder %v35, 0.0
    %vm44 = vcmp.gt.f32.partialorder %v36, 0.0
    %v45 = vld [vmem:[#allocation2 + $0x130] sm:$0xf]
    %v46 = vld [vmem:[%s0] sm:$0xff]
    %v47 = vld [vmem:[%s0 + $0x8] sm:$0xff]
    %v48 = vld [vmem:[#allocation2] sm:$0xff]
    %v49 = vld [vmem:[#allocation2 + $0x8] sm:$0xff]
    %v50 = vld [vmem:[#allocation2 + $0x10] sm:$0xf]
    %v51 = vld [vmem:[#allocation2 + $0x18] sm:$0x1]
    %v52 = vlaneseq
    %v53 = vshrl.u32 %v52, 7
    %v54 = vsub.s32 0, %v53
    %v55 = vrot.slane %v51, %v54
    %vm56 = vcmask 162816
    %v58 = vsel %vm56, %v46, 0
    %v61 = vsel %vm56, %v47, 0
    %vm63 = vcmask 1043456
    %v65 = vsel %vm63, %v50, 0
    %67 = vmatprep.subr.mxu0 0.0
    %68 = vmatpush1.msra.mxu0 %v48
    %69 = vmatprep.subr.mxu0 0.0
    %70 = vmatpush1.msra.mxu0 %v49
    %71 = vmatprep.subr.mxu0 0.0
    %72 = vmatpush1.msra.mxu0 %v65
    %73 = vmatprep.subr.mxu0 0.0
    %74 = vmatpush1.msra.mxu0 0.0
    %75 = vmatprep.subr.mxu0 0.0
    %76 = vmatpush1.msra.mxu0 0.0
    %77 = vmatprep.subr.mxu0 0.0
    %78 = vmatpush1.msra.mxu0 0.0
    %79 = vmatprep.subr.mxu0 0.0
    %80 = vmatpush1.msra.mxu0 0.0
    %81 = vmatprep.subr.mxu0 0.0
    %82 = vmatpush1.msra.mxu0 0.0
    %83 = vmatprep.subr.mxu0 0.0
    %84 = vmatpush1.msra.mxu0 0.0
    %85 = vmatprep.subr.mxu0 0.0
    %86 = vmatpush1.msra.mxu0 0.0
    %87 = vmatprep.subr.mxu0 0.0
    %88 = vmatpush1.msra.mxu0 0.0
    %89 = vmatprep.subr.mxu0 0.0
    %90 = vmatpush1.msra.mxu0 0.0
    %91 = vmatprep.subr.mxu0 0.0
    %92 = vmatpush1.msra.mxu0 0.0
    %93 = vmatprep.subr.mxu0 0.0
    %94 = vmatpush1.msra.mxu0 0.0
    %95 = vmatprep.subr.mxu0 0.0
    %96 = vmatpush1.msra.mxu0 0.0
    %97 = vmatprep.subr.mxu0 0.0
    %98 = vmatpush1.msra.mxu0 0.0
    %99 = vmatprep.subr.mxu0 0.0
    %100 = vmatpush1.msra.mxu0 0.0
    %101 = vmatprep.subr.mxu0 0.0
    %102 = vmatpush1.msra.mxu0 0.0
    %103 = vmatprep.subr.mxu0 0.0
    %104 = vmatpush1.msra.mxu0 0.0
    %105 = vmatprep.subr.mxu0 0.0
    %106 = vmatpush1.msra.mxu0 0.0
    %107 = vmatprep.subr.mxu0 0.0
    %108 = vmatpush1.msra.mxu0 0.0
    %109 = vmatprep.subr.mxu0 0.0
    %110 = vmatpush1.msra.mxu0 0.0
    %111 = vmatprep.subr.mxu0 0.0
    %112 = vmatpush1.msra.mxu0 0.0
    %113 = vmatprep.subr.mxu0 0.0
    %114 = vmatpush1.msra.mxu0 0.0
    %115 = vmatprep.subr.mxu0 0.0
    %116 = vmatpush1.msra.mxu0 0.0
    %117 = vmatprep.subr.mxu0 0.0
    %118 = vmatpush1.msra.mxu0 0.0
    %119 = vmatprep.subr.mxu0 0.0
    %120 = vmatpush1.msra.mxu0 0.0
    %121 = vmatprep.subr.mxu0 0.0
    %122 = vmatpush1.msra.mxu0 0.0
    %123 = vmatprep.subr.mxu0 0.0
    %124 = vmatpush1.msra.mxu0 0.0
    %125 = vmatprep.subr.mxu0 0.0
    %126 = vmatpush1.msra.mxu0 0.0
    %127 = vmatprep.subr.mxu0 0.0
    %128 = vmatpush1.msra.mxu0 0.0
    %129 = vmatprep.subr.mxu0 0.0
    %130 = vmatpush1.msra.mxu0 0.0
    %131 = vmatprep.mubr.f32.mxu0 0.0
    %132 = vmatmul.mubr.f32.gmra.mrb[0].mxu0 %v58
    %v133 = vpop.f32.mrb[0].mxu0
    %v134 = vadd.f32 %v55, %v133
    %v135 = vpop.f32.mrb[0].mxu0
    %136 = vmatprep.mubr.f32.mxu0 0.0
    %137 = vmatmul.mubr.f32.gmra.mrb[0].mxu0 %v61
    %v138 = vpop.f32.mrb[0].mxu0
    %v139 = vadd.f32 %v55, %v138
    %v140 = vpop.f32.mrb[0].mxu0
    %141 = vdwg.mxu0
    %v142 = vld [vmem:[#allocation2 + $0x20] sm:$0xff]
    %v143 = vld [vmem:[#allocation2 + $0x28] sm:$0xff]
    %v144 = vld [vmem:[#allocation2 + $0x30] sm:$0xff]
    %v145 = vld [vmem:[#allocation2 + $0x38] sm:$0xff]
    %v146 = vld [vmem:[#allocation2 + $0x40] sm:$0x1]
    %v147 = vld [vmem:[#allocation2 + $0x48] sm:$0xf]
    %v148 = vld [vmem:[#allocation2 + $0x50] sm:$0x1]
    %v149 = vlaneseq
    %v150 = vshrl.u32 %v149, 7
    %v151 = vsub.s32 0, %v150
    %v152 = vrot.slane %v146, %v151
    %vm153 = vcmask 261120
    %v155 = vsel %vm153, %v134, 0
    %v158 = vsel %vm153, %v139, 0
    %160 = vmatprep.subr.mxu0 0.0
    %161 = vmatpush1.msra.mxu0 %v142
    %162 = vmatprep.subr.mxu0 0.0
    %163 = vmatpush1.msra.mxu0 %v143
    %164 = vmatprep.subr.mxu0 0.0
    %165 = vmatpush1.msra.mxu0 %v144
    %166 = vmatprep.subr.mxu0 0.0
    %167 = vmatpush1.msra.mxu0 %v145
    %168 = vmatprep.subr.mxu0 0.0
    %169 = vmatpush1.msra.mxu0 0.0
    %170 = vmatprep.subr.mxu0 0.0
    %171 = vmatpush1.msra.mxu0 0.0
    %172 = vmatprep.subr.mxu0 0.0
    %173 = vmatpush1.msra.mxu0 0.0
    %174 = vmatprep.subr.mxu0 0.0
    %175 = vmatpush1.msra.mxu0 0.0
    %176 = vmatprep.subr.mxu0 0.0
    %177 = vmatpush1.msra.mxu0 0.0
    %178 = vmatprep.subr.mxu0 0.0
    %179 = vmatpush1.msra.mxu0 0.0
    %180 = vmatprep.subr.mxu0 0.0
    %181 = vmatpush1.msra.mxu0 0.0
    %182 = vmatprep.subr.mxu0 0.0
    %183 = vmatpush1.msra.mxu0 0.0
    %184 = vmatprep.subr.mxu0 0.0
    %185 = vmatpush1.msra.mxu0 0.0
    %186 = vmatprep.subr.mxu0 0.0
    %187 = vmatpush1.msra.mxu0 0.0
    %188 = vmatprep.subr.mxu0 0.0
    %189 = vmatpush1.msra.mxu0 0.0
    %190 = vmatprep.subr.mxu0 0.0
    %191 = vmatpush1.msra.mxu0 0.0
    %192 = vmatprep.subr.mxu0 0.0
    %193 = vmatpush1.msra.mxu0 0.0
    %194 = vmatprep.subr.mxu0 0.0
    %195 = vmatpush1.msra.mxu0 0.0
    %196 = vmatprep.subr.mxu0 0.0
    %197 = vmatpush1.msra.mxu0 0.0
    %198 = vmatprep.subr.mxu0 0.0
    %199 = vmatpush1.msra.mxu0 0.0
    %200 = vmatprep.subr.mxu0 0.0
    %201 = vmatpush1.msra.mxu0 0.0
    %202 = vmatprep.subr.mxu0 0.0
    %203 = vmatpush1.msra.mxu0 0.0
    %204 = vmatprep.subr.mxu0 0.0
    %205 = vmatpush1.msra.mxu0 0.0
    %206 = vmatprep.subr.mxu0 0.0
    %207 = vmatpush1.msra.mxu0 0.0
    %208 = vmatprep.subr.mxu0 0.0
    %209 = vmatpush1.msra.mxu0 0.0
    %210 = vmatprep.subr.mxu0 0.0
    %211 = vmatpush1.msra.mxu0 0.0
    %212 = vmatprep.subr.mxu0 0.0
    %213 = vmatpush1.msra.mxu0 0.0
    %214 = vmatprep.subr.mxu0 0.0
    %215 = vmatpush1.msra.mxu0 0.0
    %216 = vmatprep.subr.mxu0 0.0
    %217 = vmatpush1.msra.mxu0 0.0
    %218 = vmatprep.subr.mxu0 0.0
    %219 = vmatpush1.msra.mxu0 0.0
    %220 = vmatprep.subr.mxu0 0.0
    %221 = vmatpush1.msra.mxu0 0.0
    %222 = vmatprep.subr.mxu0 0.0
    %223 = vmatpush1.msra.mxu0 0.0
    %224 = vmatprep.mubr.f32.mxu0 0.0
    %225 = vmatmul.mubr.f32.gmra.mrb[0].mxu0 %v155
    %v226 = vpop.f32.mrb[0].mxu0
    %v227 = vadd.f32 %v152, %v226
    %v228 = vpop.f32.mrb[0].mxu0
    %229 = vmatprep.mubr.f32.mxu0 0.0
    %230 = vmatmul.mubr.f32.gmra.mrb[0].mxu0 %v158
    %v231 = vpop.f32.mrb[0].mxu0
    %v232 = vadd.f32 %v152, %v231
    %v233 = vpop.f32.mrb[0].mxu0
    %234 = vdwg.mxu0
    %v237 = vcombine.high %v227, %v227
    %v239 = vunpack.c.l.s4 1966171168
    %v240 = vunpack.c.0.s8 %v239
    %v241 = vlaneseq
    %v242 = vshrl.u32 %v241, 7
    %v243 = vsub.s32 %v240, %v242
    %v244 = vrot.slane %v227, %v243
    %v246 = vunpack.c.l.s4 1966171168
    %v247 = vunpack.c.0.s8 %v246
    %v248 = vlaneseq
    %v249 = vshrl.u32 %v248, 7
    %v250 = vsub.s32 %v247, %v249
    %v251 = vrot.slane %v237, %v250
    %v252 = vcombine.high %v244, %v244
    %v253 = vcombine.high %v251, %v251
    %v255 = vunpack.c.l.s4 1966171168
    %v256 = vunpack.c.0.s8 %v255
    %v257 = vlaneseq
    %v258 = vshrl.u32 %v257, 7
    %v259 = vsub.s32 %v256, %v258
    %v260 = vrot.slane %v244, %v259
    %v262 = vunpack.c.l.s4 1966171168
    %v263 = vunpack.c.0.s8 %v262
    %v264 = vlaneseq
    %v265 = vshrl.u32 %v264, 7
    %v266 = vsub.s32 %v263, %v265
    %v267 = vrot.slane %v251, %v266
    %v269 = vunpack.c.l.s4 1966171168
    %v270 = vunpack.c.0.s8 %v269
    %v271 = vlaneseq
    %v272 = vshrl.u32 %v271, 7
    %v273 = vsub.s32 %v270, %v272
    %v274 = vrot.slane %v252, %v273
    %v276 = vunpack.c.l.s4 1966171168
    %v277 = vunpack.c.0.s8 %v276
    %v278 = vlaneseq
    %v279 = vshrl.u32 %v278, 7
    %v280 = vsub.s32 %v277, %v279
    %v281 = vrot.slane %v253, %v280
    %v282 = vcombine.high %v260, %v260
    %v283 = vcombine.high %v267, %v267
    %v284 = vcombine.high %v274, %v274
    %v285 = vcombine.high %v281, %v281
    %v286 = vcombine.high %v232, %v232
    %v288 = vunpack.c.l.s4 1966171168
    %v289 = vunpack.c.0.s8 %v288
    %v290 = vlaneseq
    %v291 = vshrl.u32 %v290, 7
    %v292 = vsub.s32 %v289, %v291
    %v293 = vrot.slane %v232, %v292
    %v295 = vunpack.c.l.s4 1966171168
    %v296 = vunpack.c.0.s8 %v295
    %v297 = vlaneseq
    %v298 = vshrl.u32 %v297, 7
    %v299 = vsub.s32 %v296, %v298
    %v300 = vrot.slane %v286, %v299
    %v301 = vcombine.high %v293, %v293
    %v302 = vcombine.high %v300, %v300
    %v304 = vunpack.c.l.s4 1966171168
    %v305 = vunpack.c.0.s8 %v304
    %v306 = vlaneseq
    %v307 = vshrl.u32 %v306, 7
    %v308 = vsub.s32 %v305, %v307
    %v309 = vrot.slane %v293, %v308
    %v311 = vunpack.c.l.s4 1966171168
    %v312 = vunpack.c.0.s8 %v311
    %v313 = vlaneseq
    %v314 = vshrl.u32 %v313, 7
    %v315 = vsub.s32 %v312, %v314
    %v316 = vrot.slane %v300, %v315
    %v318 = vunpack.c.l.s4 1966171168
    %v319 = vunpack.c.0.s8 %v318
    %v320 = vlaneseq
    %v321 = vshrl.u32 %v320, 7
    %v322 = vsub.s32 %v319, %v321
    %v323 = vrot.slane %v301, %v322
    %v325 = vunpack.c.l.s4 1966171168
    %v326 = vunpack.c.0.s8 %v325
    %v327 = vlaneseq
    %v328 = vshrl.u32 %v327, 7
    %v329 = vsub.s32 %v326, %v328
    %v330 = vrot.slane %v302, %v329
    %v331 = vcombine.high %v309, %v309
    %v332 = vcombine.high %v316, %v316
    %v333 = vcombine.high %v323, %v323
    %v334 = vcombine.high %v330, %v330
    %v335 = vlaneseq
    %v336 = vshrl.u32 %v335, 7
    %v337 = vsub.s32 0, %v336
    %v338 = vrot.slane %v260, %v337
    %v339 = vlaneseq
    %v340 = vshrl.u32 %v339, 7
    %v341 = vsub.s32 0, %v340
    %v342 = vrot.slane %v274, %v341
    %v343 = vlaneseq
    %v344 = vshrl.u32 %v343, 7
    %v345 = vsub.s32 0, %v344
    %v346 = vrot.slane %v282, %v345
    %v347 = vlaneseq
    %v348 = vshrl.u32 %v347, 7
    %v349 = vsub.s32 0, %v348
    %v350 = vrot.slane %v284, %v349
    %v351 = vlaneseq
    %v352 = vshrl.u32 %v351, 7
    %v353 = vsub.s32 0, %v352
    %v354 = vrot.slane %v267, %v353
    %v355 = vlaneseq
    %v356 = vshrl.u32 %v355, 7
    %v357 = vsub.s32 0, %v356
    %v358 = vrot.slane %v281, %v357
    %v359 = vlaneseq
    %v360 = vshrl.u32 %v359, 7
    %v361 = vsub.s32 0, %v360
    %v362 = vrot.slane %v283, %v361
    %v363 = vlaneseq
    %v364 = vshrl.u32 %v363, 7
    %v365 = vsub.s32 0, %v364
    %v366 = vrot.slane %v285, %v365
    %v367 = vlaneseq
    %v368 = vshrl.u32 %v367, 7
    %v369 = vsub.s32 0, %v368
    %v370 = vrot.slane %v309, %v369
    %v371 = vlaneseq
    %v372 = vshrl.u32 %v371, 7
    %v373 = vsub.s32 0, %v372
    %v374 = vrot.slane %v323, %v373
    %v375 = vlaneseq
    %v376 = vshrl.u32 %v375, 7
    %v377 = vsub.s32 0, %v376
    %v378 = vrot.slane %v331, %v377
    %v379 = vlaneseq
    %v380 = vshrl.u32 %v379, 7
    %v381 = vsub.s32 0, %v380
    %v382 = vrot.slane %v333, %v381
    %v383 = vlaneseq
    %v384 = vshrl.u32 %v383, 7
    %v385 = vsub.s32 0, %v384
    %v386 = vrot.slane %v316, %v385
    %v387 = vlaneseq
    %v388 = vshrl.u32 %v387, 7
    %v389 = vsub.s32 0, %v388
    %v390 = vrot.slane %v330, %v389
    %v391 = vlaneseq
    %v392 = vshrl.u32 %v391, 7
    %v393 = vsub.s32 0, %v392
    %v394 = vrot.slane %v332, %v393
    %v395 = vlaneseq
    %v396 = vshrl.u32 %v395, 7
    %v397 = vsub.s32 0, %v396
    %v398 = vrot.slane %v334, %v397
    %415 = vrot.lane.b32.xlu0 %v227, 32
    %v416 = vpop.permute.xlu0 %415
    %417 = vrot.lane.b32.xlu0 %v232, 32
    %v418 = vpop.permute.xlu0 %417
    %v421 = vadd.f32 %v338, %v416
    %v422 = vadd.f32 %v338, %v418
    %v423 = vadd.f32 %v342, %v416
    %v424 = vadd.f32 %v342, %v418
    %v425 = vadd.f32 %v346, %v416
    %v426 = vadd.f32 %v346, %v418
    %v427 = vadd.f32 %v350, %v416
    %v428 = vadd.f32 %v350, %v418
    %v429 = vadd.f32 %v354, %v416
    %v430 = vadd.f32 %v354, %v418
    %v431 = vadd.f32 %v358, %v416
    %v432 = vadd.f32 %v358, %v418
    %v433 = vadd.f32 %v362, %v416
    %v434 = vadd.f32 %v362, %v418
    %v435 = vadd.f32 %v366, %v416
    %v436 = vadd.f32 %v366, %v418
    %v437 = vadd.f32 %v370, %v416
    %v438 = vadd.f32 %v370, %v418
    %v439 = vadd.f32 %v374, %v416
    %v440 = vadd.f32 %v374, %v418
    %v441 = vadd.f32 %v378, %v416
    %v442 = vadd.f32 %v378, %v418
    %v443 = vadd.f32 %v382, %v416
    %v444 = vadd.f32 %v382, %v418
    %v445 = vadd.f32 %v386, %v416
    %v446 = vadd.f32 %v386, %v418
    %v447 = vadd.f32 %v390, %v416
    %v448 = vadd.f32 %v390, %v418
    %v449 = vadd.f32 %v394, %v416
    %v450 = vadd.f32 %v394, %v418
    %v451 = vadd.f32 %v398, %v416
    %v452 = vadd.f32 %v398, %v418
    %vm453 = vcmp.ge.f32.partialorder %v421, 0.0
    %vm454 = vcmp.ge.f32.partialorder %v422, 0.0
    %vm455 = vcmp.ge.f32.partialorder %v423, 0.0
    %vm456 = vcmp.ge.f32.partialorder %v424, 0.0
    %vm457 = vcmp.ge.f32.partialorder %v425, 0.0
    %vm458 = vcmp.ge.f32.partialorder %v426, 0.0
    %vm459 = vcmp.ge.f32.partialorder %v427, 0.0
    %vm460 = vcmp.ge.f32.partialorder %v428, 0.0
    %vm461 = vcmp.ge.f32.partialorder %v429, 0.0
    %vm462 = vcmp.ge.f32.partialorder %v430, 0.0
    %vm463 = vcmp.ge.f32.partialorder %v431, 0.0
    %vm464 = vcmp.ge.f32.partialorder %v432, 0.0
    %vm465 = vcmp.ge.f32.partialorder %v433, 0.0
    %vm466 = vcmp.ge.f32.partialorder %v434, 0.0
    %vm467 = vcmp.ge.f32.partialorder %v435, 0.0
    %vm468 = vcmp.ge.f32.partialorder %v436, 0.0
    %vm469 = vcmp.ge.f32.partialorder %v437, 0.0
    %vm470 = vcmp.ge.f32.partialorder %v438, 0.0
    %vm471 = vcmp.ge.f32.partialorder %v439, 0.0
    %vm472 = vcmp.ge.f32.partialorder %v440, 0.0
    %vm473 = vcmp.ge.f32.partialorder %v441, 0.0
    %vm474 = vcmp.ge.f32.partialorder %v442, 0.0
    %vm475 = vcmp.ge.f32.partialorder %v443, 0.0
    %vm476 = vcmp.ge.f32.partialorder %v444, 0.0
    %vm477 = vcmp.ge.f32.partialorder %v445, 0.0
    %vm478 = vcmp.ge.f32.partialorder %v446, 0.0
    %vm479 = vcmp.ge.f32.partialorder %v447, 0.0
    %vm480 = vcmp.ge.f32.partialorder %v448, 0.0
    %vm481 = vcmp.ge.f32.partialorder %v449, 0.0
    %vm482 = vcmp.ge.f32.partialorder %v450, 0.0
    %vm483 = vcmp.ge.f32.partialorder %v451, 0.0
    %vm484 = vcmp.ge.f32.partialorder %v452, 0.0
    %v485 = vmul.f32 %v421, 0.2
    %v486 = vmul.f32 %v422, 0.2
    %v487 = vmul.f32 %v423, 0.2
    %v488 = vmul.f32 %v424, 0.2
    %v489 = vmul.f32 %v425, 0.2
    %v490 = vmul.f32 %v426, 0.2
    %v491 = vmul.f32 %v427, 0.2
    %v492 = vmul.f32 %v428, 0.2
    %v493 = vmul.f32 %v429, 0.2
    %v494 = vmul.f32 %v430, 0.2
    %v495 = vmul.f32 %v431, 0.2
    %v496 = vmul.f32 %v432, 0.2
    %v497 = vmul.f32 %v433, 0.2
    %v498 = vmul.f32 %v434, 0.2
    %v499 = vmul.f32 %v435, 0.2
    %v500 = vmul.f32 %v436, 0.2
    %v501 = vmul.f32 %v437, 0.2
    %v502 = vmul.f32 %v438, 0.2
    %v503 = vmul.f32 %v439, 0.2
    %v504 = vmul.f32 %v440, 0.2
    %v505 = vmul.f32 %v441, 0.2
    %v506 = vmul.f32 %v442, 0.2
    %v507 = vmul.f32 %v443, 0.2
    %v508 = vmul.f32 %v444, 0.2
    %v509 = vmul.f32 %v445, 0.2
    %v510 = vmul.f32 %v446, 0.2
    %v511 = vmul.f32 %v447, 0.2
    %v512 = vmul.f32 %v448, 0.2
    %v513 = vmul.f32 %v449, 0.2
    %v514 = vmul.f32 %v450, 0.2
    %v515 = vmul.f32 %v451, 0.2
    %v516 = vmul.f32 %v452, 0.2
    %v517 = vsel %vm453, %v421, %v485
    %v518 = vsel %vm454, %v422, %v486
    %v519 = vsel %vm455, %v423, %v487
    %v520 = vsel %vm456, %v424, %v488
    %v521 = vsel %vm457, %v425, %v489
    %v522 = vsel %vm458, %v426, %v490
    %v523 = vsel %vm459, %v427, %v491
    %v524 = vsel %vm460, %v428, %v492
    %v525 = vsel %vm461, %v429, %v493
    %v526 = vsel %vm462, %v430, %v494
    %v527 = vsel %vm463, %v431, %v495
    %v528 = vsel %vm464, %v432, %v496
    %v529 = vsel %vm465, %v433, %v497
    %v530 = vsel %vm466, %v434, %v498
    %v531 = vsel %vm467, %v435, %v499
    %v532 = vsel %vm468, %v436, %v500
    %v533 = vsel %vm469, %v437, %v501
    %v534 = vsel %vm470, %v438, %v502
    %v535 = vsel %vm471, %v439, %v503
    %v536 = vsel %vm472, %v440, %v504
    %v537 = vsel %vm473, %v441, %v505
    %v538 = vsel %vm474, %v442, %v506
    %v539 = vsel %vm475, %v443, %v507
    %v540 = vsel %vm476, %v444, %v508
    %v541 = vsel %vm477, %v445, %v509
    %v542 = vsel %vm478, %v446, %v510
    %v543 = vsel %vm479, %v447, %v511
    %v544 = vsel %vm480, %v448, %v512
    %v545 = vsel %vm481, %v449, %v513
    %v546 = vsel %vm482, %v450, %v514
    %v547 = vsel %vm483, %v451, %v515
    %v548 = vsel %vm484, %v452, %v516
    %v549 = vlaneseq
    %v550 = vshrl.u32 %v549, 7
    %v551 = vsub.s32 0, %v550
    %v552 = vrot.slane %v147, %v551
    %554 = vrot.lane.b32.xlu0 %v552, 32
    %v555 = vpop.permute.xlu0 %554
    %v557 = vmul.f32 %v517, %v555
    %v558 = vmul.f32 %v518, %v555
    %v559 = vmul.f32 %v519, %v555
    %v560 = vmul.f32 %v520, %v555
    %v561 = vmul.f32 %v521, %v555
    %v562 = vmul.f32 %v522, %v555
    %v563 = vmul.f32 %v523, %v555
    %v564 = vmul.f32 %v524, %v555
    %v565 = vmul.f32 %v525, %v555
    %v566 = vmul.f32 %v526, %v555
    %v567 = vmul.f32 %v527, %v555
    %v568 = vmul.f32 %v528, %v555
    %v569 = vmul.f32 %v529, %v555
    %v570 = vmul.f32 %v530, %v555
    %v571 = vmul.f32 %v531, %v555
    %v572 = vmul.f32 %v532, %v555
    %v573 = vmul.f32 %v533, %v555
    %v574 = vmul.f32 %v534, %v555
    %v575 = vmul.f32 %v535, %v555
    %v576 = vmul.f32 %v536, %v555
    %v577 = vmul.f32 %v537, %v555
    %v578 = vmul.f32 %v538, %v555
    %v579 = vmul.f32 %v539, %v555
    %v580 = vmul.f32 %v540, %v555
    %v581 = vmul.f32 %v541, %v555
    %v582 = vmul.f32 %v542, %v555
    %v583 = vmul.f32 %v543, %v555
    %v584 = vmul.f32 %v544, %v555
    %v585 = vmul.f32 %v545, %v555
    %v586 = vmul.f32 %v546, %v555
    %v587 = vmul.f32 %v547, %v555
    %v588 = vmul.f32 %v548, %v555
    %621 = vrot.lane.b32.xlu0 %v557, 96
    %v622 = vpop.permute.xlu0 %621
    %623 = vrot.lane.b32.xlu0 %v558, 96
    %v624 = vpop.permute.xlu0 %623
    %625 = vrot.lane.b32.xlu0 %v559, 96
    %v626 = vpop.permute.xlu0 %625
    %627 = vrot.lane.b32.xlu0 %v560, 96
    %v628 = vpop.permute.xlu0 %627
    %629 = vrot.lane.b32.xlu0 %v561, 96
    %v630 = vpop.permute.xlu0 %629
    %631 = vrot.lane.b32.xlu0 %v562, 96
    %v632 = vpop.permute.xlu0 %631
    %633 = vrot.lane.b32.xlu0 %v563, 96
    %v634 = vpop.permute.xlu0 %633
    %635 = vrot.lane.b32.xlu0 %v564, 96
    %v636 = vpop.permute.xlu0 %635
    %637 = vrot.lane.b32.xlu0 %v565, 96
    %v638 = vpop.permute.xlu0 %637
    %639 = vrot.lane.b32.xlu0 %v566, 96
    %v640 = vpop.permute.xlu0 %639
    %641 = vrot.lane.b32.xlu0 %v567, 96
    %v642 = vpop.permute.xlu0 %641
    %643 = vrot.lane.b32.xlu0 %v568, 96
    %v644 = vpop.permute.xlu0 %643
    %645 = vrot.lane.b32.xlu0 %v569, 96
    %v646 = vpop.permute.xlu0 %645
    %647 = vrot.lane.b32.xlu0 %v570, 96
    %v648 = vpop.permute.xlu0 %647
    %649 = vrot.lane.b32.xlu0 %v571, 96
    %v650 = vpop.permute.xlu0 %649
    %651 = vrot.lane.b32.xlu0 %v572, 96
    %v652 = vpop.permute.xlu0 %651
    %653 = vrot.lane.b32.xlu0 %v573, 96
    %v654 = vpop.permute.xlu0 %653
    %655 = vrot.lane.b32.xlu0 %v574, 96
    %v656 = vpop.permute.xlu0 %655
    %657 = vrot.lane.b32.xlu0 %v575, 96
    %v658 = vpop.permute.xlu0 %657
    %659 = vrot.lane.b32.xlu0 %v576, 96
    %v660 = vpop.permute.xlu0 %659
    %661 = vrot.lane.b32.xlu0 %v577, 96
    %v662 = vpop.permute.xlu0 %661
    %663 = vrot.lane.b32.xlu0 %v578, 96
    %v664 = vpop.permute.xlu0 %663
    %665 = vrot.lane.b32.xlu0 %v579, 96
    %v666 = vpop.permute.xlu0 %665
    %667 = vrot.lane.b32.xlu0 %v580, 96
    %v668 = vpop.permute.xlu0 %667
    %669 = vrot.lane.b32.xlu0 %v581, 96
    %v670 = vpop.permute.xlu0 %669
    %671 = vrot.lane.b32.xlu0 %v582, 96
    %v672 = vpop.permute.xlu0 %671
    %673 = vrot.lane.b32.xlu0 %v583, 96
    %v674 = vpop.permute.xlu0 %673
    %675 = vrot.lane.b32.xlu0 %v584, 96
    %v676 = vpop.permute.xlu0 %675
    %677 = vrot.lane.b32.xlu0 %v585, 96
    %v678 = vpop.permute.xlu0 %677
    %679 = vrot.lane.b32.xlu0 %v586, 96
    %v680 = vpop.permute.xlu0 %679
    %681 = vrot.lane.b32.xlu0 %v587, 96
    %v682 = vpop.permute.xlu0 %681
    %683 = vrot.lane.b32.xlu0 %v588, 96
    %v684 = vpop.permute.xlu0 %683
    %v717 = vsel %vm153, %v622, 0.0
    %718 = vadd.xlane.f32.xlu0 %v717
    %v719 = vpop.xlane.xlu0 %718
    %v720 = vsel %vm153, %v624, 0.0
    %721 = vadd.xlane.f32.xlu0 %v720
    %v722 = vpop.xlane.xlu0 %721
    %v723 = vsel %vm153, %v626, 0.0
    %724 = vadd.xlane.f32.xlu0 %v723
    %v725 = vpop.xlane.xlu0 %724
    %v726 = vsel %vm153, %v628, 0.0
    %727 = vadd.xlane.f32.xlu0 %v726
    %v728 = vpop.xlane.xlu0 %727
    %v729 = vsel %vm153, %v630, 0.0
    %730 = vadd.xlane.f32.xlu0 %v729
    %v731 = vpop.xlane.xlu0 %730
    %v732 = vsel %vm153, %v632, 0.0
    %733 = vadd.xlane.f32.xlu0 %v732
    %v734 = vpop.xlane.xlu0 %733
    %v735 = vsel %vm153, %v634, 0.0
    %736 = vadd.xlane.f32.xlu0 %v735
    %v737 = vpop.xlane.xlu0 %736
    %v738 = vsel %vm153, %v636, 0.0
    %739 = vadd.xlane.f32.xlu0 %v738
    %v740 = vpop.xlane.xlu0 %739
    %v741 = vsel %vm153, %v638, 0.0
    %742 = vadd.xlane.f32.xlu0 %v741
    %v743 = vpop.xlane.xlu0 %742
    %v744 = vsel %vm153, %v640, 0.0
    %745 = vadd.xlane.f32.xlu0 %v744
    %v746 = vpop.xlane.xlu0 %745
    %v747 = vsel %vm153, %v642, 0.0
    %748 = vadd.xlane.f32.xlu0 %v747
    %v749 = vpop.xlane.xlu0 %748
    %v750 = vsel %vm153, %v644, 0.0
    %751 = vadd.xlane.f32.xlu0 %v750
    %v752 = vpop.xlane.xlu0 %751
    %v753 = vsel %vm153, %v646, 0.0
    %754 = vadd.xlane.f32.xlu0 %v753
    %v755 = vpop.xlane.xlu0 %754
    %v756 = vsel %vm153, %v648, 0.0
    %757 = vadd.xlane.f32.xlu0 %v756
    %v758 = vpop.xlane.xlu0 %757
    %v759 = vsel %vm153, %v650, 0.0
    %760 = vadd.xlane.f32.xlu0 %v759
    %v761 = vpop.xlane.xlu0 %760
    %v762 = vsel %vm153, %v652, 0.0
    %763 = vadd.xlane.f32.xlu0 %v762
    %v764 = vpop.xlane.xlu0 %763
    %v765 = vsel %vm153, %v654, 0.0
    %766 = vadd.xlane.f32.xlu0 %v765
    %v767 = vpop.xlane.xlu0 %766
    %v768 = vsel %vm153, %v656, 0.0
    %769 = vadd.xlane.f32.xlu0 %v768
    %v770 = vpop.xlane.xlu0 %769
    %v771 = vsel %vm153, %v658, 0.0
    %772 = vadd.xlane.f32.xlu0 %v771
    %v773 = vpop.xlane.xlu0 %772
    %v774 = vsel %vm153, %v660, 0.0
    %775 = vadd.xlane.f32.xlu0 %v774
    %v776 = vpop.xlane.xlu0 %775
    %v777 = vsel %vm153, %v662, 0.0
    %778 = vadd.xlane.f32.xlu0 %v777
    %v779 = vpop.xlane.xlu0 %778
    %v780 = vsel %vm153, %v664, 0.0
    %781 = vadd.xlane.f32.xlu0 %v780
    %v782 = vpop.xlane.xlu0 %781
    %v783 = vsel %vm153, %v666, 0.0
    %784 = vadd.xlane.f32.xlu0 %v783
    %v785 = vpop.xlane.xlu0 %784
    %v786 = vsel %vm153, %v668, 0.0
    %787 = vadd.xlane.f32.xlu0 %v786
    %v788 = vpop.xlane.xlu0 %787
    %v789 = vsel %vm153, %v670, 0.0
    %790 = vadd.xlane.f32.xlu0 %v789
    %v791 = vpop.xlane.xlu0 %790
    %v792 = vsel %vm153, %v672, 0.0
    %793 = vadd.xlane.f32.xlu0 %v792
    %v794 = vpop.xlane.xlu0 %793
    %v795 = vsel %vm153, %v674, 0.0
    %796 = vadd.xlane.f32.xlu0 %v795
    %v797 = vpop.xlane.xlu0 %796
    %v798 = vsel %vm153, %v676, 0.0
    %799 = vadd.xlane.f32.xlu0 %v798
    %v800 = vpop.xlane.xlu0 %799
    %v801 = vsel %vm153, %v678, 0.0
    %802 = vadd.xlane.f32.xlu0 %v801
    %v803 = vpop.xlane.xlu0 %802
    %v804 = vsel %vm153, %v680, 0.0
    %805 = vadd.xlane.f32.xlu0 %v804
    %v806 = vpop.xlane.xlu0 %805
    %v807 = vsel %vm153, %v682, 0.0
    %808 = vadd.xlane.f32.xlu0 %v807
    %v809 = vpop.xlane.xlu0 %808
    %v810 = vsel %vm153, %v684, 0.0
    %811 = vadd.xlane.f32.xlu0 %v810
    %v812 = vpop.xlane.xlu0 %811
    %v813 = vlaneseq
    %v814 = vshrl.u32 %v813, 7
    %v815 = vsub.s32 1, %v814
    %v816 = vrot.slane %v147, %v815
    %818 = vrot.lane.b32.xlu0 %v816, 32
    %v819 = vpop.permute.xlu0 %818
    %v821 = vmul.f32 %v517, %v819
    %v822 = vmul.f32 %v518, %v819
    %v823 = vmul.f32 %v519, %v819
    %v824 = vmul.f32 %v520, %v819
    %v825 = vmul.f32 %v521, %v819
    %v826 = vmul.f32 %v522, %v819
    %v827 = vmul.f32 %v523, %v819
    %v828 = vmul.f32 %v524, %v819
    %v829 = vmul.f32 %v525, %v819
    %v830 = vmul.f32 %v526, %v819
    %v831 = vmul.f32 %v527, %v819
    %v832 = vmul.f32 %v528, %v819
    %v833 = vmul.f32 %v529, %v819
    %v834 = vmul.f32 %v530, %v819
    %v835 = vmul.f32 %v531, %v819
    %v836 = vmul.f32 %v532, %v819
    %v837 = vmul.f32 %v533, %v819
    %v838 = vmul.f32 %v534, %v819
    %v839 = vmul.f32 %v535, %v819
    %v840 = vmul.f32 %v536, %v819
    %v841 = vmul.f32 %v537, %v819
    %v842 = vmul.f32 %v538, %v819
    %v843 = vmul.f32 %v539, %v819
    %v844 = vmul.f32 %v540, %v819
    %v845 = vmul.f32 %v541, %v819
    %v846 = vmul.f32 %v542, %v819
    %v847 = vmul.f32 %v543, %v819
    %v848 = vmul.f32 %v544, %v819
    %v849 = vmul.f32 %v545, %v819
    %v850 = vmul.f32 %v546, %v819
    %v851 = vmul.f32 %v547, %v819
    %v852 = vmul.f32 %v548, %v819
    %885 = vrot.lane.b32.xlu0 %v821, 96
    %v886 = vpop.permute.xlu0 %885
    %887 = vrot.lane.b32.xlu0 %v822, 96
    %v888 = vpop.permute.xlu0 %887
    %889 = vrot.lane.b32.xlu0 %v823, 96
    %v890 = vpop.permute.xlu0 %889
    %891 = vrot.lane.b32.xlu0 %v824, 96
    %v892 = vpop.permute.xlu0 %891
    %893 = vrot.lane.b32.xlu0 %v825, 96
    %v894 = vpop.permute.xlu0 %893
    %895 = vrot.lane.b32.xlu0 %v826, 96
    %v896 = vpop.permute.xlu0 %895
    %897 = vrot.lane.b32.xlu0 %v827, 96
    %v898 = vpop.permute.xlu0 %897
    %899 = vrot.lane.b32.xlu0 %v828, 96
    %v900 = vpop.permute.xlu0 %899
    %901 = vrot.lane.b32.xlu0 %v829, 96
    %v902 = vpop.permute.xlu0 %901
    %903 = vrot.lane.b32.xlu0 %v830, 96
    %v904 = vpop.permute.xlu0 %903
    %905 = vrot.lane.b32.xlu0 %v831, 96
    %v906 = vpop.permute.xlu0 %905
    %907 = vrot.lane.b32.xlu0 %v832, 96
    %v908 = vpop.permute.xlu0 %907
    %909 = vrot.lane.b32.xlu0 %v833, 96
    %v910 = vpop.permute.xlu0 %909
    %911 = vrot.lane.b32.xlu0 %v834, 96
    %v912 = vpop.permute.xlu0 %911
    %913 = vrot.lane.b32.xlu0 %v835, 96
    %v914 = vpop.permute.xlu0 %913
    %915 = vrot.lane.b32.xlu0 %v836, 96
    %v916 = vpop.permute.xlu0 %915
    %917 = vrot.lane.b32.xlu0 %v837, 96
    %v918 = vpop.permute.xlu0 %917
    %919 = vrot.lane.b32.xlu0 %v838, 96
    %v920 = vpop.permute.xlu0 %919
    %921 = vrot.lane.b32.xlu0 %v839, 96
    %v922 = vpop.permute.xlu0 %921
    %923 = vrot.lane.b32.xlu0 %v840, 96
    %v924 = vpop.permute.xlu0 %923
    %925 = vrot.lane.b32.xlu0 %v841, 96
    %v926 = vpop.permute.xlu0 %925
    %927 = vrot.lane.b32.xlu0 %v842, 96
    %v928 = vpop.permute.xlu0 %927
    %929 = vrot.lane.b32.xlu0 %v843, 96
    %v930 = vpop.permute.xlu0 %929
    %931 = vrot.lane.b32.xlu0 %v844, 96
    %v932 = vpop.permute.xlu0 %931
    %933 = vrot.lane.b32.xlu0 %v845, 96
    %v934 = vpop.permute.xlu0 %933
    %935 = vrot.lane.b32.xlu0 %v846, 96
    %v936 = vpop.permute.xlu0 %935
    %937 = vrot.lane.b32.xlu0 %v847, 96
    %v938 = vpop.permute.xlu0 %937
    %939 = vrot.lane.b32.xlu0 %v848, 96
    %v940 = vpop.permute.xlu0 %939
    %941 = vrot.lane.b32.xlu0 %v849, 96
    %v942 = vpop.permute.xlu0 %941
    %943 = vrot.lane.b32.xlu0 %v850, 96
    %v944 = vpop.permute.xlu0 %943
    %945 = vrot.lane.b32.xlu0 %v851, 96
    %v946 = vpop.permute.xlu0 %945
    %947 = vrot.lane.b32.xlu0 %v852, 96
    %v948 = vpop.permute.xlu0 %947
    %v981 = vsel %vm153, %v886, 0.0
    %982 = vadd.xlane.f32.xlu0 %v981
    %v983 = vpop.xlane.xlu0 %982
    %v984 = vsel %vm153, %v888, 0.0
    %985 = vadd.xlane.f32.xlu0 %v984
    %v986 = vpop.xlane.xlu0 %985
    %v987 = vsel %vm153, %v890, 0.0
    %988 = vadd.xlane.f32.xlu0 %v987
    %v989 = vpop.xlane.xlu0 %988
    %v990 = vsel %vm153, %v892, 0.0
    %991 = vadd.xlane.f32.xlu0 %v990
    %v992 = vpop.xlane.xlu0 %991
    %v993 = vsel %vm153, %v894, 0.0
    %994 = vadd.xlane.f32.xlu0 %v993
    %v995 = vpop.xlane.xlu0 %994
    %v996 = vsel %vm153, %v896, 0.0
    %997 = vadd.xlane.f32.xlu0 %v996
    %v998 = vpop.xlane.xlu0 %997
    %v999 = vsel %vm153, %v898, 0.0
    %1000 = vadd.xlane.f32.xlu0 %v999
    %v1001 = vpop.xlane.xlu0 %1000
    %v1002 = vsel %vm153, %v900, 0.0
    %1003 = vadd.xlane.f32.xlu0 %v1002
    %v1004 = vpop.xlane.xlu0 %1003
    %v1005 = vsel %vm153, %v902, 0.0
    %1006 = vadd.xlane.f32.xlu0 %v1005
    %v1007 = vpop.xlane.xlu0 %1006
    %v1008 = vsel %vm153, %v904, 0.0
    %1009 = vadd.xlane.f32.xlu0 %v1008
    %v1010 = vpop.xlane.xlu0 %1009
    %v1011 = vsel %vm153, %v906, 0.0
    %1012 = vadd.xlane.f32.xlu0 %v1011
    %v1013 = vpop.xlane.xlu0 %1012
    %v1014 = vsel %vm153, %v908, 0.0
    %1015 = vadd.xlane.f32.xlu0 %v1014
    %v1016 = vpop.xlane.xlu0 %1015
    %v1017 = vsel %vm153, %v910, 0.0
    %1018 = vadd.xlane.f32.xlu0 %v1017
    %v1019 = vpop.xlane.xlu0 %1018
    %v1020 = vsel %vm153, %v912, 0.0
    %1021 = vadd.xlane.f32.xlu0 %v1020
    %v1022 = vpop.xlane.xlu0 %1021
    %v1023 = vsel %vm153, %v914, 0.0
    %1024 = vadd.xlane.f32.xlu0 %v1023
    %v1025 = vpop.xlane.xlu0 %1024
    %v1026 = vsel %vm153, %v916, 0.0
    %1027 = vadd.xlane.f32.xlu0 %v1026
    %v1028 = vpop.xlane.xlu0 %1027
    %v1029 = vsel %vm153, %v918, 0.0
    %1030 = vadd.xlane.f32.xlu0 %v1029
    %v1031 = vpop.xlane.xlu0 %1030
    %v1032 = vsel %vm153, %v920, 0.0
    %1033 = vadd.xlane.f32.xlu0 %v1032
    %v1034 = vpop.xlane.xlu0 %1033
    %v1035 = vsel %vm153, %v922, 0.0
    %1036 = vadd.xlane.f32.xlu0 %v1035
    %v1037 = vpop.xlane.xlu0 %1036
    %v1038 = vsel %vm153, %v924, 0.0
    %1039 = vadd.xlane.f32.xlu0 %v1038
    %v1040 = vpop.xlane.xlu0 %1039
    %v1041 = vsel %vm153, %v926, 0.0
    %1042 = vadd.xlane.f32.xlu0 %v1041
    %v1043 = vpop.xlane.xlu0 %1042
    %v1044 = vsel %vm153, %v928, 0.0
    %1045 = vadd.xlane.f32.xlu0 %v1044
    %v1046 = vpop.xlane.xlu0 %1045
    %v1047 = vsel %vm153, %v930, 0.0
    %1048 = vadd.xlane.f32.xlu0 %v1047
    %v1049 = vpop.xlane.xlu0 %1048
    %v1050 = vsel %vm153, %v932, 0.0
    %1051 = vadd.xlane.f32.xlu0 %v1050
    %v1052 = vpop.xlane.xlu0 %1051
    %v1053 = vsel %vm153, %v934, 0.0
    %1054 = vadd.xlane.f32.xlu0 %v1053
    %v1055 = vpop.xlane.xlu0 %1054
    %v1056 = vsel %vm153, %v936, 0.0
    %1057 = vadd.xlane.f32.xlu0 %v1056
    %v1058 = vpop.xlane.xlu0 %1057
    %v1059 = vsel %vm153, %v938, 0.0
    %1060 = vadd.xlane.f32.xlu0 %v1059
    %v1061 = vpop.xlane.xlu0 %1060
    %v1062 = vsel %vm153, %v940, 0.0
    %1063 = vadd.xlane.f32.xlu0 %v1062
    %v1064 = vpop.xlane.xlu0 %1063
    %v1065 = vsel %vm153, %v942, 0.0
    %1066 = vadd.xlane.f32.xlu0 %v1065
    %v1067 = vpop.xlane.xlu0 %1066
    %v1068 = vsel %vm153, %v944, 0.0
    %1069 = vadd.xlane.f32.xlu0 %v1068
    %v1070 = vpop.xlane.xlu0 %1069
    %v1071 = vsel %vm153, %v946, 0.0
    %1072 = vadd.xlane.f32.xlu0 %v1071
    %v1073 = vpop.xlane.xlu0 %1072
    %v1074 = vsel %vm153, %v948, 0.0
    %1075 = vadd.xlane.f32.xlu0 %v1074
    %v1076 = vpop.xlane.xlu0 %1075
    %v1077 = vlaneseq
    %v1078 = vshrl.u32 %v1077, 7
    %v1079 = vsub.s32 2, %v1078
    %v1080 = vrot.slane %v147, %v1079
    %1082 = vrot.lane.b32.xlu0 %v1080, 32
    %v1083 = vpop.permute.xlu0 %1082
    %v1085 = vmul.f32 %v517, %v1083
    %v1086 = vmul.f32 %v518, %v1083
    %v1087 = vmul.f32 %v519, %v1083
    %v1088 = vmul.f32 %v520, %v1083
    %v1089 = vmul.f32 %v521, %v1083
    %v1090 = vmul.f32 %v522, %v1083
    %v1091 = vmul.f32 %v523, %v1083
    %v1092 = vmul.f32 %v524, %v1083
    %v1093 = vmul.f32 %v525, %v1083
    %v1094 = vmul.f32 %v526, %v1083
    %v1095 = vmul.f32 %v527, %v1083
    %v1096 = vmul.f32 %v528, %v1083
    %v1097 = vmul.f32 %v529, %v1083
    %v1098 = vmul.f32 %v530, %v1083
    %v1099 = vmul.f32 %v531, %v1083
    %v1100 = vmul.f32 %v532, %v1083
    %v1101 = vmul.f32 %v533, %v1083
    %v1102 = vmul.f32 %v534, %v1083
    %v1103 = vmul.f32 %v535, %v1083
    %v1104 = vmul.f32 %v536, %v1083
    %v1105 = vmul.f32 %v537, %v1083
    %v1106 = vmul.f32 %v538, %v1083
    %v1107 = vmul.f32 %v539, %v1083
    %v1108 = vmul.f32 %v540, %v1083
    %v1109 = vmul.f32 %v541, %v1083
    %v1110 = vmul.f32 %v542, %v1083
    %v1111 = vmul.f32 %v543, %v1083
    %v1112 = vmul.f32 %v544, %v1083
    %v1113 = vmul.f32 %v545, %v1083
    %v1114 = vmul.f32 %v546, %v1083
    %v1115 = vmul.f32 %v547, %v1083
    %v1116 = vmul.f32 %v548, %v1083
    %1149 = vrot.lane.b32.xlu0 %v1085, 96
    %v1150 = vpop.permute.xlu0 %1149
    %1151 = vrot.lane.b32.xlu0 %v1086, 96
    %v1152 = vpop.permute.xlu0 %1151
    %1153 = vrot.lane.b32.xlu0 %v1087, 96
    %v1154 = vpop.permute.xlu0 %1153
    %1155 = vrot.lane.b32.xlu0 %v1088, 96
    %v1156 = vpop.permute.xlu0 %1155
    %1157 = vrot.lane.b32.xlu0 %v1089, 96
    %v1158 = vpop.permute.xlu0 %1157
    %1159 = vrot.lane.b32.xlu0 %v1090, 96
    %v1160 = vpop.permute.xlu0 %1159
    %1161 = vrot.lane.b32.xlu0 %v1091, 96
    %v1162 = vpop.permute.xlu0 %1161
    %1163 = vrot.lane.b32.xlu0 %v1092, 96
    %v1164 = vpop.permute.xlu0 %1163
    %1165 = vrot.lane.b32.xlu0 %v1093, 96
    %v1166 = vpop.permute.xlu0 %1165
    %1167 = vrot.lane.b32.xlu0 %v1094, 96
    %v1168 = vpop.permute.xlu0 %1167
    %1169 = vrot.lane.b32.xlu0 %v1095, 96
    %v1170 = vpop.permute.xlu0 %1169
    %1171 = vrot.lane.b32.xlu0 %v1096, 96
    %v1172 = vpop.permute.xlu0 %1171
    %1173 = vrot.lane.b32.xlu0 %v1097, 96
    %v1174 = vpop.permute.xlu0 %1173
    %1175 = vrot.lane.b32.xlu0 %v1098, 96
    %v1176 = vpop.permute.xlu0 %1175
    %1177 = vrot.lane.b32.xlu0 %v1099, 96
    %v1178 = vpop.permute.xlu0 %1177
    %1179 = vrot.lane.b32.xlu0 %v1100, 96
    %v1180 = vpop.permute.xlu0 %1179
    %1181 = vrot.lane.b32.xlu0 %v1101, 96
    %v1182 = vpop.permute.xlu0 %1181
    %1183 = vrot.lane.b32.xlu0 %v1102, 96
    %v1184 = vpop.permute.xlu0 %1183
    %1185 = vrot.lane.b32.xlu0 %v1103, 96
    %v1186 = vpop.permute.xlu0 %1185
    %1187 = vrot.lane.b32.xlu0 %v1104, 96
    %v1188 = vpop.permute.xlu0 %1187
    %1189 = vrot.lane.b32.xlu0 %v1105, 96
    %v1190 = vpop.permute.xlu0 %1189
    %1191 = vrot.lane.b32.xlu0 %v1106, 96
    %v1192 = vpop.permute.xlu0 %1191
    %1193 = vrot.lane.b32.xlu0 %v1107, 96
    %v1194 = vpop.permute.xlu0 %1193
    %1195 = vrot.lane.b32.xlu0 %v1108, 96
    %v1196 = vpop.permute.xlu0 %1195
    %1197 = vrot.lane.b32.xlu0 %v1109, 96
    %v1198 = vpop.permute.xlu0 %1197
    %1199 = vrot.lane.b32.xlu0 %v1110, 96
    %v1200 = vpop.permute.xlu0 %1199
    %1201 = vrot.lane.b32.xlu0 %v1111, 96
    %v1202 = vpop.permute.xlu0 %1201
    %1203 = vrot.lane.b32.xlu0 %v1112, 96
    %v1204 = vpop.permute.xlu0 %1203
    %1205 = vrot.lane.b32.xlu0 %v1113, 96
    %v1206 = vpop.permute.xlu0 %1205
    %1207 = vrot.lane.b32.xlu0 %v1114, 96
    %v1208 = vpop.permute.xlu0 %1207
    %1209 = vrot.lane.b32.xlu0 %v1115, 96
    %v1210 = vpop.permute.xlu0 %1209
    %1211 = vrot.lane.b32.xlu0 %v1116, 96
    %v1212 = vpop.permute.xlu0 %1211
    %v1245 = vsel %vm153, %v1150, 0.0
    %1246 = vadd.xlane.f32.xlu0 %v1245
    %v1247 = vpop.xlane.xlu0 %1246
    %v1248 = vsel %vm153, %v1152, 0.0
    %1249 = vadd.xlane.f32.xlu0 %v1248
    %v1250 = vpop.xlane.xlu0 %1249
    %v1251 = vsel %vm153, %v1154, 0.0
    %1252 = vadd.xlane.f32.xlu0 %v1251
    %v1253 = vpop.xlane.xlu0 %1252
    %v1254 = vsel %vm153, %v1156, 0.0
    %1255 = vadd.xlane.f32.xlu0 %v1254
    %v1256 = vpop.xlane.xlu0 %1255
    %v1257 = vsel %vm153, %v1158, 0.0
    %1258 = vadd.xlane.f32.xlu0 %v1257
    %v1259 = vpop.xlane.xlu0 %1258
    %v1260 = vsel %vm153, %v1160, 0.0
    %1261 = vadd.xlane.f32.xlu0 %v1260
    %v1262 = vpop.xlane.xlu0 %1261
    %v1263 = vsel %vm153, %v1162, 0.0
    %1264 = vadd.xlane.f32.xlu0 %v1263
    %v1265 = vpop.xlane.xlu0 %1264
    %v1266 = vsel %vm153, %v1164, 0.0
    %1267 = vadd.xlane.f32.xlu0 %v1266
    %v1268 = vpop.xlane.xlu0 %1267
    %v1269 = vsel %vm153, %v1166, 0.0
    %1270 = vadd.xlane.f32.xlu0 %v1269
    %v1271 = vpop.xlane.xlu0 %1270
    %v1272 = vsel %vm153, %v1168, 0.0
    %1273 = vadd.xlane.f32.xlu0 %v1272
    %v1274 = vpop.xlane.xlu0 %1273
    %v1275 = vsel %vm153, %v1170, 0.0
    %1276 = vadd.xlane.f32.xlu0 %v1275
    %v1277 = vpop.xlane.xlu0 %1276
    %v1278 = vsel %vm153, %v1172, 0.0
    %1279 = vadd.xlane.f32.xlu0 %v1278
    %v1280 = vpop.xlane.xlu0 %1279
    %v1281 = vsel %vm153, %v1174, 0.0
    %1282 = vadd.xlane.f32.xlu0 %v1281
    %v1283 = vpop.xlane.xlu0 %1282
    %v1284 = vsel %vm153, %v1176, 0.0
    %1285 = vadd.xlane.f32.xlu0 %v1284
    %v1286 = vpop.xlane.xlu0 %1285
    %v1287 = vsel %vm153, %v1178, 0.0
    %1288 = vadd.xlane.f32.xlu0 %v1287
    %v1289 = vpop.xlane.xlu0 %1288
    %v1290 = vsel %vm153, %v1180, 0.0
    %1291 = vadd.xlane.f32.xlu0 %v1290
    %v1292 = vpop.xlane.xlu0 %1291
    %v1293 = vsel %vm153, %v1182, 0.0
    %1294 = vadd.xlane.f32.xlu0 %v1293
    %v1295 = vpop.xlane.xlu0 %1294
    %v1296 = vsel %vm153, %v1184, 0.0
    %1297 = vadd.xlane.f32.xlu0 %v1296
    %v1298 = vpop.xlane.xlu0 %1297
    %v1299 = vsel %vm153, %v1186, 0.0
    %1300 = vadd.xlane.f32.xlu0 %v1299
    %v1301 = vpop.xlane.xlu0 %1300
    %v1302 = vsel %vm153, %v1188, 0.0
    %1303 = vadd.xlane.f32.xlu0 %v1302
    %v1304 = vpop.xlane.xlu0 %1303
    %v1305 = vsel %vm153, %v1190, 0.0
    %1306 = vadd.xlane.f32.xlu0 %v1305
    %v1307 = vpop.xlane.xlu0 %1306
    %v1308 = vsel %vm153, %v1192, 0.0
    %1309 = vadd.xlane.f32.xlu0 %v1308
    %v1310 = vpop.xlane.xlu0 %1309
    %v1311 = vsel %vm153, %v1194, 0.0
    %1312 = vadd.xlane.f32.xlu0 %v1311
    %v1313 = vpop.xlane.xlu0 %1312
    %v1314 = vsel %vm153, %v1196, 0.0
    %1315 = vadd.xlane.f32.xlu0 %v1314
    %v1316 = vpop.xlane.xlu0 %1315
    %v1317 = vsel %vm153, %v1198, 0.0
    %1318 = vadd.xlane.f32.xlu0 %v1317
    %v1319 = vpop.xlane.xlu0 %1318
    %v1320 = vsel %vm153, %v1200, 0.0
    %1321 = vadd.xlane.f32.xlu0 %v1320
    %v1322 = vpop.xlane.xlu0 %1321
    %v1323 = vsel %vm153, %v1202, 0.0
    %1324 = vadd.xlane.f32.xlu0 %v1323
    %v1325 = vpop.xlane.xlu0 %1324
    %v1326 = vsel %vm153, %v1204, 0.0
    %1327 = vadd.xlane.f32.xlu0 %v1326
    %v1328 = vpop.xlane.xlu0 %1327
    %v1329 = vsel %vm153, %v1206, 0.0
    %1330 = vadd.xlane.f32.xlu0 %v1329
    %v1331 = vpop.xlane.xlu0 %1330
    %v1332 = vsel %vm153, %v1208, 0.0
    %1333 = vadd.xlane.f32.xlu0 %v1332
    %v1334 = vpop.xlane.xlu0 %1333
    %v1335 = vsel %vm153, %v1210, 0.0
    %1336 = vadd.xlane.f32.xlu0 %v1335
    %v1337 = vpop.xlane.xlu0 %1336
    %v1338 = vsel %vm153, %v1212, 0.0
    %1339 = vadd.xlane.f32.xlu0 %v1338
    %v1340 = vpop.xlane.xlu0 %1339
    %v1341 = vlaneseq
    %v1342 = vshrl.u32 %v1341, 7
    %v1343 = vsub.s32 3, %v1342
    %v1344 = vrot.slane %v147, %v1343
    %1346 = vrot.lane.b32.xlu0 %v1344, 32
    %v1347 = vpop.permute.xlu0 %1346
    %v1349 = vmul.f32 %v517, %v1347
    %v1350 = vmul.f32 %v518, %v1347
    %v1351 = vmul.f32 %v519, %v1347
    %v1352 = vmul.f32 %v520, %v1347
    %v1353 = vmul.f32 %v521, %v1347
    %v1354 = vmul.f32 %v522, %v1347
    %v1355 = vmul.f32 %v523, %v1347
    %v1356 = vmul.f32 %v524, %v1347
    %v1357 = vmul.f32 %v525, %v1347
    %v1358 = vmul.f32 %v526, %v1347
    %v1359 = vmul.f32 %v527, %v1347
    %v1360 = vmul.f32 %v528, %v1347
    %v1361 = vmul.f32 %v529, %v1347
    %v1362 = vmul.f32 %v530, %v1347
    %v1363 = vmul.f32 %v531, %v1347
    %v1364 = vmul.f32 %v532, %v1347
    %v1365 = vmul.f32 %v533, %v1347
    %v1366 = vmul.f32 %v534, %v1347
    %v1367 = vmul.f32 %v535, %v1347
    %v1368 = vmul.f32 %v536, %v1347
    %v1369 = vmul.f32 %v537, %v1347
    %v1370 = vmul.f32 %v538, %v1347
    %v1371 = vmul.f32 %v539, %v1347
    %v1372 = vmul.f32 %v540, %v1347
    %v1373 = vmul.f32 %v541, %v1347
    %v1374 = vmul.f32 %v542, %v1347
    %v1375 = vmul.f32 %v543, %v1347
    %v1376 = vmul.f32 %v544, %v1347
    %v1377 = vmul.f32 %v545, %v1347
    %v1378 = vmul.f32 %v546, %v1347
    %v1379 = vmul.f32 %v547, %v1347
    %v1380 = vmul.f32 %v548, %v1347
    %1413 = vrot.lane.b32.xlu0 %v1349, 96
    %v1414 = vpop.permute.xlu0 %1413
    %1415 = vrot.lane.b32.xlu0 %v1350, 96
    %v1416 = vpop.permute.xlu0 %1415
    %1417 = vrot.lane.b32.xlu0 %v1351, 96
    %v1418 = vpop.permute.xlu0 %1417
    %1419 = vrot.lane.b32.xlu0 %v1352, 96
    %v1420 = vpop.permute.xlu0 %1419
    %1421 = vrot.lane.b32.xlu0 %v1353, 96
    %v1422 = vpop.permute.xlu0 %1421
    %1423 = vrot.lane.b32.xlu0 %v1354, 96
    %v1424 = vpop.permute.xlu0 %1423
    %1425 = vrot.lane.b32.xlu0 %v1355, 96
    %v1426 = vpop.permute.xlu0 %1425
    %1427 = vrot.lane.b32.xlu0 %v1356, 96
    %v1428 = vpop.permute.xlu0 %1427
    %1429 = vrot.lane.b32.xlu0 %v1357, 96
    %v1430 = vpop.permute.xlu0 %1429
    %1431 = vrot.lane.b32.xlu0 %v1358, 96
    %v1432 = vpop.permute.xlu0 %1431
    %1433 = vrot.lane.b32.xlu0 %v1359, 96
    %v1434 = vpop.permute.xlu0 %1433
    %1435 = vrot.lane.b32.xlu0 %v1360, 96
    %v1436 = vpop.permute.xlu0 %1435
    %1437 = vrot.lane.b32.xlu0 %v1361, 96
    %v1438 = vpop.permute.xlu0 %1437
    %1439 = vrot.lane.b32.xlu0 %v1362, 96
    %v1440 = vpop.permute.xlu0 %1439
    %1441 = vrot.lane.b32.xlu0 %v1363, 96
    %v1442 = vpop.permute.xlu0 %1441
    %1443 = vrot.lane.b32.xlu0 %v1364, 96
    %v1444 = vpop.permute.xlu0 %1443
    %1445 = vrot.lane.b32.xlu0 %v1365, 96
    %v1446 = vpop.permute.xlu0 %1445
    %1447 = vrot.lane.b32.xlu0 %v1366, 96
    %v1448 = vpop.permute.xlu0 %1447
    %1449 = vrot.lane.b32.xlu0 %v1367, 96
    %v1450 = vpop.permute.xlu0 %1449
    %1451 = vrot.lane.b32.xlu0 %v1368, 96
    %v1452 = vpop.permute.xlu0 %1451
    %1453 = vrot.lane.b32.xlu0 %v1369, 96
    %v1454 = vpop.permute.xlu0 %1453
    %1455 = vrot.lane.b32.xlu0 %v1370, 96
    %v1456 = vpop.permute.xlu0 %1455
    %1457 = vrot.lane.b32.xlu0 %v1371, 96
    %v1458 = vpop.permute.xlu0 %1457
    %1459 = vrot.lane.b32.xlu0 %v1372, 96
    %v1460 = vpop.permute.xlu0 %1459
    %1461 = vrot.lane.b32.xlu0 %v1373, 96
    %v1462 = vpop.permute.xlu0 %1461
    %1463 = vrot.lane.b32.xlu0 %v1374, 96
    %v1464 = vpop.permute.xlu0 %1463
    %1465 = vrot.lane.b32.xlu0 %v1375, 96
    %v1466 = vpop.permute.xlu0 %1465
    %1467 = vrot.lane.b32.xlu0 %v1376, 96
    %v1468 = vpop.permute.xlu0 %1467
    %1469 = vrot.lane.b32.xlu0 %v1377, 96
    %v1470 = vpop.permute.xlu0 %1469
    %1471 = vrot.lane.b32.xlu0 %v1378, 96
    %v1472 = vpop.permute.xlu0 %1471
    %1473 = vrot.lane.b32.xlu0 %v1379, 96
    %v1474 = vpop.permute.xlu0 %1473
    %1475 = vrot.lane.b32.xlu0 %v1380, 96
    %v1476 = vpop.permute.xlu0 %1475
    %v1509 = vsel %vm153, %v1414, 0.0
    %1510 = vadd.xlane.f32.xlu0 %v1509
    %v1511 = vpop.xlane.xlu0 %1510
    %v1512 = vsel %vm153, %v1416, 0.0
    %1513 = vadd.xlane.f32.xlu0 %v1512
    %v1514 = vpop.xlane.xlu0 %1513
    %v1515 = vsel %vm153, %v1418, 0.0
    %1516 = vadd.xlane.f32.xlu0 %v1515
    %v1517 = vpop.xlane.xlu0 %1516
    %v1518 = vsel %vm153, %v1420, 0.0
    %1519 = vadd.xlane.f32.xlu0 %v1518
    %v1520 = vpop.xlane.xlu0 %1519
    %v1521 = vsel %vm153, %v1422, 0.0
    %1522 = vadd.xlane.f32.xlu0 %v1521
    %v1523 = vpop.xlane.xlu0 %1522
    %v1524 = vsel %vm153, %v1424, 0.0
    %1525 = vadd.xlane.f32.xlu0 %v1524
    %v1526 = vpop.xlane.xlu0 %1525
    %v1527 = vsel %vm153, %v1426, 0.0
    %1528 = vadd.xlane.f32.xlu0 %v1527
    %v1529 = vpop.xlane.xlu0 %1528
    %v1530 = vsel %vm153, %v1428, 0.0
    %1531 = vadd.xlane.f32.xlu0 %v1530
    %v1532 = vpop.xlane.xlu0 %1531
    %v1533 = vsel %vm153, %v1430, 0.0
    %1534 = vadd.xlane.f32.xlu0 %v1533
    %v1535 = vpop.xlane.xlu0 %1534
    %v1536 = vsel %vm153, %v1432, 0.0
    %1537 = vadd.xlane.f32.xlu0 %v1536
    %v1538 = vpop.xlane.xlu0 %1537
    %v1539 = vsel %vm153, %v1434, 0.0
    %1540 = vadd.xlane.f32.xlu0 %v1539
    %v1541 = vpop.xlane.xlu0 %1540
    %v1542 = vsel %vm153, %v1436, 0.0
    %1543 = vadd.xlane.f32.xlu0 %v1542
    %v1544 = vpop.xlane.xlu0 %1543
    %v1545 = vsel %vm153, %v1438, 0.0
    %1546 = vadd.xlane.f32.xlu0 %v1545
    %v1547 = vpop.xlane.xlu0 %1546
    %v1548 = vsel %vm153, %v1440, 0.0
    %1549 = vadd.xlane.f32.xlu0 %v1548
    %v1550 = vpop.xlane.xlu0 %1549
    %v1551 = vsel %vm153, %v1442, 0.0
    %1552 = vadd.xlane.f32.xlu0 %v1551
    %v1553 = vpop.xlane.xlu0 %1552
    %v1554 = vsel %vm153, %v1444, 0.0
    %1555 = vadd.xlane.f32.xlu0 %v1554
    %v1556 = vpop.xlane.xlu0 %1555
    %v1557 = vsel %vm153, %v1446, 0.0
    %1558 = vadd.xlane.f32.xlu0 %v1557
    %v1559 = vpop.xlane.xlu0 %1558
    %v1560 = vsel %vm153, %v1448, 0.0
    %1561 = vadd.xlane.f32.xlu0 %v1560
    %v1562 = vpop.xlane.xlu0 %1561
    %v1563 = vsel %vm153, %v1450, 0.0
    %1564 = vadd.xlane.f32.xlu0 %v1563
    %v1565 = vpop.xlane.xlu0 %1564
    %v1566 = vsel %vm153, %v1452, 0.0
    %1567 = vadd.xlane.f32.xlu0 %v1566
    %v1568 = vpop.xlane.xlu0 %1567
    %v1569 = vsel %vm153, %v1454, 0.0
    %1570 = vadd.xlane.f32.xlu0 %v1569
    %v1571 = vpop.xlane.xlu0 %1570
    %v1572 = vsel %vm153, %v1456, 0.0
    %1573 = vadd.xlane.f32.xlu0 %v1572
    %v1574 = vpop.xlane.xlu0 %1573
    %v1575 = vsel %vm153, %v1458, 0.0
    %1576 = vadd.xlane.f32.xlu0 %v1575
    %v1577 = vpop.xlane.xlu0 %1576
    %v1578 = vsel %vm153, %v1460, 0.0
    %1579 = vadd.xlane.f32.xlu0 %v1578
    %v1580 = vpop.xlane.xlu0 %1579
    %v1581 = vsel %vm153, %v1462, 0.0
    %1582 = vadd.xlane.f32.xlu0 %v1581
    %v1583 = vpop.xlane.xlu0 %1582
    %v1584 = vsel %vm153, %v1464, 0.0
    %1585 = vadd.xlane.f32.xlu0 %v1584
    %v1586 = vpop.xlane.xlu0 %1585
    %v1587 = vsel %vm153, %v1466, 0.0
    %1588 = vadd.xlane.f32.xlu0 %v1587
    %v1589 = vpop.xlane.xlu0 %1588
    %v1590 = vsel %vm153, %v1468, 0.0
    %1591 = vadd.xlane.f32.xlu0 %v1590
    %v1592 = vpop.xlane.xlu0 %1591
    %v1593 = vsel %vm153, %v1470, 0.0
    %1594 = vadd.xlane.f32.xlu0 %v1593
    %v1595 = vpop.xlane.xlu0 %1594
    %v1596 = vsel %vm153, %v1472, 0.0
    %1597 = vadd.xlane.f32.xlu0 %v1596
    %v1598 = vpop.xlane.xlu0 %1597
    %v1599 = vsel %vm153, %v1474, 0.0
    %1600 = vadd.xlane.f32.xlu0 %v1599
    %v1601 = vpop.xlane.xlu0 %1600
    %v1602 = vsel %vm153, %v1476, 0.0
    %1603 = vadd.xlane.f32.xlu0 %v1602
    %v1604 = vpop.xlane.xlu0 %1603
    %v1637 = vlaneseq
    %v1638 = vand.u32 %v1637, 127
    %v1639 = vlaneseq
    %v1640 = vshrl.u32 %v1639, 7
    %v1641 = vsub.s32 %v1638, %v1640
    %v1642 = vrot.slane %v719, %v1641
    %v1643 = vadd.s32 %v1638, 4294967288
    %v1644 = vlaneseq
    %v1645 = vshrl.u32 %v1644, 7
    %v1646 = vsub.s32 %v1643, %v1645
    %v1647 = vrot.slane %v722, %v1646
    %vm1648 = vcmask 130112
    %v1649 = vsel %vm1648, %v1647, %v1642
    %v1650 = vlaneseq
    %v1651 = vshrl.u32 %v1650, 7
    %v1652 = vsub.s32 %v1638, %v1651
    %v1653 = vrot.slane %v725, %v1652
    %v1654 = vlaneseq
    %v1655 = vshrl.u32 %v1654, 7
    %v1656 = vsub.s32 %v1643, %v1655
    %v1657 = vrot.slane %v728, %v1656
    %v1658 = vsel %vm1648, %v1657, %v1653
    %v1659 = vlaneseq
    %v1660 = vshrl.u32 %v1659, 7
    %v1661 = vsub.s32 %v1638, %v1660
    %v1662 = vrot.slane %v731, %v1661
    %v1663 = vlaneseq
    %v1664 = vshrl.u32 %v1663, 7
    %v1665 = vsub.s32 %v1643, %v1664
    %v1666 = vrot.slane %v734, %v1665
    %v1667 = vsel %vm1648, %v1666, %v1662
    %v1668 = vlaneseq
    %v1669 = vshrl.u32 %v1668, 7
    %v1670 = vsub.s32 %v1638, %v1669
    %v1671 = vrot.slane %v737, %v1670
    %v1672 = vlaneseq
    %v1673 = vshrl.u32 %v1672, 7
    %v1674 = vsub.s32 %v1643, %v1673
    %v1675 = vrot.slane %v740, %v1674
    %v1676 = vsel %vm1648, %v1675, %v1671
    %v1677 = vlaneseq
    %v1678 = vshrl.u32 %v1677, 7
    %v1679 = vsub.s32 %v1638, %v1678
    %v1680 = vrot.slane %v743, %v1679
    %v1681 = vlaneseq
    %v1682 = vshrl.u32 %v1681, 7
    %v1683 = vsub.s32 %v1643, %v1682
    %v1684 = vrot.slane %v746, %v1683
    %v1685 = vsel %vm1648, %v1684, %v1680
    %v1686 = vlaneseq
    %v1687 = vshrl.u32 %v1686, 7
    %v1688 = vsub.s32 %v1638, %v1687
    %v1689 = vrot.slane %v749, %v1688
    %v1690 = vlaneseq
    %v1691 = vshrl.u32 %v1690, 7
    %v1692 = vsub.s32 %v1643, %v1691
    %v1693 = vrot.slane %v752, %v1692
    %v1694 = vsel %vm1648, %v1693, %v1689
    %v1695 = vlaneseq
    %v1696 = vshrl.u32 %v1695, 7
    %v1697 = vsub.s32 %v1638, %v1696
    %v1698 = vrot.slane %v755, %v1697
    %v1699 = vlaneseq
    %v1700 = vshrl.u32 %v1699, 7
    %v1701 = vsub.s32 %v1643, %v1700
    %v1702 = vrot.slane %v758, %v1701
    %v1703 = vsel %vm1648, %v1702, %v1698
    %v1704 = vlaneseq
    %v1705 = vshrl.u32 %v1704, 7
    %v1706 = vsub.s32 %v1638, %v1705
    %v1707 = vrot.slane %v761, %v1706
    %v1708 = vlaneseq
    %v1709 = vshrl.u32 %v1708, 7
    %v1710 = vsub.s32 %v1643, %v1709
    %v1711 = vrot.slane %v764, %v1710
    %v1712 = vsel %vm1648, %v1711, %v1707
    %v1713 = vlaneseq
    %v1714 = vshrl.u32 %v1713, 7
    %v1715 = vsub.s32 %v1638, %v1714
    %v1716 = vrot.slane %v767, %v1715
    %v1717 = vlaneseq
    %v1718 = vshrl.u32 %v1717, 7
    %v1719 = vsub.s32 %v1643, %v1718
    %v1720 = vrot.slane %v770, %v1719
    %v1721 = vsel %vm1648, %v1720, %v1716
    %v1722 = vlaneseq
    %v1723 = vshrl.u32 %v1722, 7
    %v1724 = vsub.s32 %v1638, %v1723
    %v1725 = vrot.slane %v773, %v1724
    %v1726 = vlaneseq
    %v1727 = vshrl.u32 %v1726, 7
    %v1728 = vsub.s32 %v1643, %v1727
    %v1729 = vrot.slane %v776, %v1728
    %v1730 = vsel %vm1648, %v1729, %v1725
    %v1731 = vlaneseq
    %v1732 = vshrl.u32 %v1731, 7
    %v1733 = vsub.s32 %v1638, %v1732
    %v1734 = vrot.slane %v779, %v1733
    %v1735 = vlaneseq
    %v1736 = vshrl.u32 %v1735, 7
    %v1737 = vsub.s32 %v1643, %v1736
    %v1738 = vrot.slane %v782, %v1737
    %v1739 = vsel %vm1648, %v1738, %v1734
    %v1740 = vlaneseq
    %v1741 = vshrl.u32 %v1740, 7
    %v1742 = vsub.s32 %v1638, %v1741
    %v1743 = vrot.slane %v785, %v1742
    %v1744 = vlaneseq
    %v1745 = vshrl.u32 %v1744, 7
    %v1746 = vsub.s32 %v1643, %v1745
    %v1747 = vrot.slane %v788, %v1746
    %v1748 = vsel %vm1648, %v1747, %v1743
    %v1749 = vlaneseq
    %v1750 = vshrl.u32 %v1749, 7
    %v1751 = vsub.s32 %v1638, %v1750
    %v1752 = vrot.slane %v791, %v1751
    %v1753 = vlaneseq
    %v1754 = vshrl.u32 %v1753, 7
    %v1755 = vsub.s32 %v1643, %v1754
    %v1756 = vrot.slane %v794, %v1755
    %v1757 = vsel %vm1648, %v1756, %v1752
    %v1758 = vlaneseq
    %v1759 = vshrl.u32 %v1758, 7
    %v1760 = vsub.s32 %v1638, %v1759
    %v1761 = vrot.slane %v797, %v1760
    %v1762 = vlaneseq
    %v1763 = vshrl.u32 %v1762, 7
    %v1764 = vsub.s32 %v1643, %v1763
    %v1765 = vrot.slane %v800, %v1764
    %v1766 = vsel %vm1648, %v1765, %v1761
    %v1767 = vlaneseq
    %v1768 = vshrl.u32 %v1767, 7
    %v1769 = vsub.s32 %v1638, %v1768
    %v1770 = vrot.slane %v803, %v1769
    %v1771 = vlaneseq
    %v1772 = vshrl.u32 %v1771, 7
    %v1773 = vsub.s32 %v1643, %v1772
    %v1774 = vrot.slane %v806, %v1773
    %v1775 = vsel %vm1648, %v1774, %v1770
    %v1776 = vlaneseq
    %v1777 = vshrl.u32 %v1776, 7
    %v1778 = vsub.s32 %v1638, %v1777
    %v1779 = vrot.slane %v809, %v1778
    %v1780 = vlaneseq
    %v1781 = vshrl.u32 %v1780, 7
    %v1782 = vsub.s32 %v1643, %v1781
    %v1783 = vrot.slane %v812, %v1782
    %v1784 = vsel %vm1648, %v1783, %v1779
    %vm1785 = vcmask 1041409
    %v1786 = vsel %vm1785, %v1658, %v1649
    %vm1787 = vcmask 1042434
    %v1788 = vsel %vm1787, %v1667, %v1786
    %vm1789 = vcmask 1043459
    %v1790 = vsel %vm1789, %v1676, %v1788
    %vm1791 = vcmask 1044484
    %v1792 = vsel %vm1791, %v1685, %v1790
    %vm1793 = vcmask 1045509
    %v1794 = vsel %vm1793, %v1694, %v1792
    %vm1795 = vcmask 1046534
    %v1796 = vsel %vm1795, %v1703, %v1794
    %vm1797 = vcmask 1047559
    %v1798 = vsel %vm1797, %v1712, %v1796
    %v1799 = vsel %vm1785, %v1730, %v1721
    %v1800 = vsel %vm1787, %v1739, %v1799
    %v1801 = vsel %vm1789, %v1748, %v1800
    %v1802 = vsel %vm1791, %v1757, %v1801
    %v1803 = vsel %vm1793, %v1766, %v1802
    %v1804 = vsel %vm1795, %v1775, %v1803
    %v1805 = vsel %vm1797, %v1784, %v1804
    %v1840 = vlaneseq
    %v1841 = vshrl.u32 %v1840, 7
    %v1842 = vsub.s32 %v1638, %v1841
    %v1843 = vrot.slane %v983, %v1842
    %v1844 = vlaneseq
    %v1845 = vshrl.u32 %v1844, 7
    %v1846 = vsub.s32 %v1643, %v1845
    %v1847 = vrot.slane %v986, %v1846
    %v1848 = vsel %vm1648, %v1847, %v1843
    %v1849 = vlaneseq
    %v1850 = vshrl.u32 %v1849, 7
    %v1851 = vsub.s32 %v1638, %v1850
    %v1852 = vrot.slane %v989, %v1851
    %v1853 = vlaneseq
    %v1854 = vshrl.u32 %v1853, 7
    %v1855 = vsub.s32 %v1643, %v1854
    %v1856 = vrot.slane %v992, %v1855
    %v1857 = vsel %vm1648, %v1856, %v1852
    %v1858 = vlaneseq
    %v1859 = vshrl.u32 %v1858, 7
    %v1860 = vsub.s32 %v1638, %v1859
    %v1861 = vrot.slane %v995, %v1860
    %v1862 = vlaneseq
    %v1863 = vshrl.u32 %v1862, 7
    %v1864 = vsub.s32 %v1643, %v1863
    %v1865 = vrot.slane %v998, %v1864
    %v1866 = vsel %vm1648, %v1865, %v1861
    %v1867 = vlaneseq
    %v1868 = vshrl.u32 %v1867, 7
    %v1869 = vsub.s32 %v1638, %v1868
    %v1870 = vrot.slane %v1001, %v1869
    %v1871 = vlaneseq
    %v1872 = vshrl.u32 %v1871, 7
    %v1873 = vsub.s32 %v1643, %v1872
    %v1874 = vrot.slane %v1004, %v1873
    %v1875 = vsel %vm1648, %v1874, %v1870
    %v1876 = vlaneseq
    %v1877 = vshrl.u32 %v1876, 7
    %v1878 = vsub.s32 %v1638, %v1877
    %v1879 = vrot.slane %v1007, %v1878
    %v1880 = vlaneseq
    %v1881 = vshrl.u32 %v1880, 7
    %v1882 = vsub.s32 %v1643, %v1881
    %v1883 = vrot.slane %v1010, %v1882
    %v1884 = vsel %vm1648, %v1883, %v1879
    %v1885 = vlaneseq
    %v1886 = vshrl.u32 %v1885, 7
    %v1887 = vsub.s32 %v1638, %v1886
    %v1888 = vrot.slane %v1013, %v1887
    %v1889 = vlaneseq
    %v1890 = vshrl.u32 %v1889, 7
    %v1891 = vsub.s32 %v1643, %v1890
    %v1892 = vrot.slane %v1016, %v1891
    %v1893 = vsel %vm1648, %v1892, %v1888
    %v1894 = vlaneseq
    %v1895 = vshrl.u32 %v1894, 7
    %v1896 = vsub.s32 %v1638, %v1895
    %v1897 = vrot.slane %v1019, %v1896
    %v1898 = vlaneseq
    %v1899 = vshrl.u32 %v1898, 7
    %v1900 = vsub.s32 %v1643, %v1899
    %v1901 = vrot.slane %v1022, %v1900
    %v1902 = vsel %vm1648, %v1901, %v1897
    %v1903 = vlaneseq
    %v1904 = vshrl.u32 %v1903, 7
    %v1905 = vsub.s32 %v1638, %v1904
    %v1906 = vrot.slane %v1025, %v1905
    %v1907 = vlaneseq
    %v1908 = vshrl.u32 %v1907, 7
    %v1909 = vsub.s32 %v1643, %v1908
    %v1910 = vrot.slane %v1028, %v1909
    %v1911 = vsel %vm1648, %v1910, %v1906
    %v1912 = vlaneseq
    %v1913 = vshrl.u32 %v1912, 7
    %v1914 = vsub.s32 %v1638, %v1913
    %v1915 = vrot.slane %v1031, %v1914
    %v1916 = vlaneseq
    %v1917 = vshrl.u32 %v1916, 7
    %v1918 = vsub.s32 %v1643, %v1917
    %v1919 = vrot.slane %v1034, %v1918
    %v1920 = vsel %vm1648, %v1919, %v1915
    %v1921 = vlaneseq
    %v1922 = vshrl.u32 %v1921, 7
    %v1923 = vsub.s32 %v1638, %v1922
    %v1924 = vrot.slane %v1037, %v1923
    %v1925 = vlaneseq
    %v1926 = vshrl.u32 %v1925, 7
    %v1927 = vsub.s32 %v1643, %v1926
    %v1928 = vrot.slane %v1040, %v1927
    %v1929 = vsel %vm1648, %v1928, %v1924
    %v1930 = vlaneseq
    %v1931 = vshrl.u32 %v1930, 7
    %v1932 = vsub.s32 %v1638, %v1931
    %v1933 = vrot.slane %v1043, %v1932
    %v1934 = vlaneseq
    %v1935 = vshrl.u32 %v1934, 7
    %v1936 = vsub.s32 %v1643, %v1935
    %v1937 = vrot.slane %v1046, %v1936
    %v1938 = vsel %vm1648, %v1937, %v1933
    %v1939 = vlaneseq
    %v1940 = vshrl.u32 %v1939, 7
    %v1941 = vsub.s32 %v1638, %v1940
    %v1942 = vrot.slane %v1049, %v1941
    %v1943 = vlaneseq
    %v1944 = vshrl.u32 %v1943, 7
    %v1945 = vsub.s32 %v1643, %v1944
    %v1946 = vrot.slane %v1052, %v1945
    %v1947 = vsel %vm1648, %v1946, %v1942
    %v1948 = vlaneseq
    %v1949 = vshrl.u32 %v1948, 7
    %v1950 = vsub.s32 %v1638, %v1949
    %v1951 = vrot.slane %v1055, %v1950
    %v1952 = vlaneseq
    %v1953 = vshrl.u32 %v1952, 7
    %v1954 = vsub.s32 %v1643, %v1953
    %v1955 = vrot.slane %v1058, %v1954
    %v1956 = vsel %vm1648, %v1955, %v1951
    %v1957 = vlaneseq
    %v1958 = vshrl.u32 %v1957, 7
    %v1959 = vsub.s32 %v1638, %v1958
    %v1960 = vrot.slane %v1061, %v1959
    %v1961 = vlaneseq
    %v1962 = vshrl.u32 %v1961, 7
    %v1963 = vsub.s32 %v1643, %v1962
    %v1964 = vrot.slane %v1064, %v1963
    %v1965 = vsel %vm1648, %v1964, %v1960
    %v1966 = vlaneseq
    %v1967 = vshrl.u32 %v1966, 7
    %v1968 = vsub.s32 %v1638, %v1967
    %v1969 = vrot.slane %v1067, %v1968
    %v1970 = vlaneseq
    %v1971 = vshrl.u32 %v1970, 7
    %v1972 = vsub.s32 %v1643, %v1971
    %v1973 = vrot.slane %v1070, %v1972
    %v1974 = vsel %vm1648, %v1973, %v1969
    %v1975 = vlaneseq
    %v1976 = vshrl.u32 %v1975, 7
    %v1977 = vsub.s32 %v1638, %v1976
    %v1978 = vrot.slane %v1073, %v1977
    %v1979 = vlaneseq
    %v1980 = vshrl.u32 %v1979, 7
    %v1981 = vsub.s32 %v1643, %v1980
    %v1982 = vrot.slane %v1076, %v1981
    %v1983 = vsel %vm1648, %v1982, %v1978
    %v1984 = vsel %vm1785, %v1857, %v1848
    %v1985 = vsel %vm1787, %v1866, %v1984
    %v1986 = vsel %vm1789, %v1875, %v1985
    %v1987 = vsel %vm1791, %v1884, %v1986
    %v1988 = vsel %vm1793, %v1893, %v1987
    %v1989 = vsel %vm1795, %v1902, %v1988
    %v1990 = vsel %vm1797, %v1911, %v1989
    %v1991 = vsel %vm1785, %v1929, %v1920
    %v1992 = vsel %vm1787, %v1938, %v1991
    %v1993 = vsel %vm1789, %v1947, %v1992
    %v1994 = vsel %vm1791, %v1956, %v1993
    %v1995 = vsel %vm1793, %v1965, %v1994
    %v1996 = vsel %vm1795, %v1974, %v1995
    %v1997 = vsel %vm1797, %v1983, %v1996
    %v2032 = vlaneseq
    %v2033 = vshrl.u32 %v2032, 7
    %v2034 = vsub.s32 %v1638, %v2033
    %v2035 = vrot.slane %v1247, %v2034
    %v2036 = vlaneseq
    %v2037 = vshrl.u32 %v2036, 7
    %v2038 = vsub.s32 %v1643, %v2037
    %v2039 = vrot.slane %v1250, %v2038
    %v2040 = vsel %vm1648, %v2039, %v2035
    %v2041 = vlaneseq
    %v2042 = vshrl.u32 %v2041, 7
    %v2043 = vsub.s32 %v1638, %v2042
    %v2044 = vrot.slane %v1253, %v2043
    %v2045 = vlaneseq
    %v2046 = vshrl.u32 %v2045, 7
    %v2047 = vsub.s32 %v1643, %v2046
    %v2048 = vrot.slane %v1256, %v2047
    %v2049 = vsel %vm1648, %v2048, %v2044
    %v2050 = vlaneseq
    %v2051 = vshrl.u32 %v2050, 7
    %v2052 = vsub.s32 %v1638, %v2051
    %v2053 = vrot.slane %v1259, %v2052
    %v2054 = vlaneseq
    %v2055 = vshrl.u32 %v2054, 7
    %v2056 = vsub.s32 %v1643, %v2055
    %v2057 = vrot.slane %v1262, %v2056
    %v2058 = vsel %vm1648, %v2057, %v2053
    %v2059 = vlaneseq
    %v2060 = vshrl.u32 %v2059, 7
    %v2061 = vsub.s32 %v1638, %v2060
    %v2062 = vrot.slane %v1265, %v2061
    %v2063 = vlaneseq
    %v2064 = vshrl.u32 %v2063, 7
    %v2065 = vsub.s32 %v1643, %v2064
    %v2066 = vrot.slane %v1268, %v2065
    %v2067 = vsel %vm1648, %v2066, %v2062
    %v2068 = vlaneseq
    %v2069 = vshrl.u32 %v2068, 7
    %v2070 = vsub.s32 %v1638, %v2069
    %v2071 = vrot.slane %v1271, %v2070
    %v2072 = vlaneseq
    %v2073 = vshrl.u32 %v2072, 7
    %v2074 = vsub.s32 %v1643, %v2073
    %v2075 = vrot.slane %v1274, %v2074
    %v2076 = vsel %vm1648, %v2075, %v2071
    %v2077 = vlaneseq
    %v2078 = vshrl.u32 %v2077, 7
    %v2079 = vsub.s32 %v1638, %v2078
    %v2080 = vrot.slane %v1277, %v2079
    %v2081 = vlaneseq
    %v2082 = vshrl.u32 %v2081, 7
    %v2083 = vsub.s32 %v1643, %v2082
    %v2084 = vrot.slane %v1280, %v2083
    %v2085 = vsel %vm1648, %v2084, %v2080
    %v2086 = vlaneseq
    %v2087 = vshrl.u32 %v2086, 7
    %v2088 = vsub.s32 %v1638, %v2087
    %v2089 = vrot.slane %v1283, %v2088
    %v2090 = vlaneseq
    %v2091 = vshrl.u32 %v2090, 7
    %v2092 = vsub.s32 %v1643, %v2091
    %v2093 = vrot.slane %v1286, %v2092
    %v2094 = vsel %vm1648, %v2093, %v2089
    %v2095 = vlaneseq
    %v2096 = vshrl.u32 %v2095, 7
    %v2097 = vsub.s32 %v1638, %v2096
    %v2098 = vrot.slane %v1289, %v2097
    %v2099 = vlaneseq
    %v2100 = vshrl.u32 %v2099, 7
    %v2101 = vsub.s32 %v1643, %v2100
    %v2102 = vrot.slane %v1292, %v2101
    %v2103 = vsel %vm1648, %v2102, %v2098
    %v2104 = vlaneseq
    %v2105 = vshrl.u32 %v2104, 7
    %v2106 = vsub.s32 %v1638, %v2105
    %v2107 = vrot.slane %v1295, %v2106
    %v2108 = vlaneseq
    %v2109 = vshrl.u32 %v2108, 7
    %v2110 = vsub.s32 %v1643, %v2109
    %v2111 = vrot.slane %v1298, %v2110
    %v2112 = vsel %vm1648, %v2111, %v2107
    %v2113 = vlaneseq
    %v2114 = vshrl.u32 %v2113, 7
    %v2115 = vsub.s32 %v1638, %v2114
    %v2116 = vrot.slane %v1301, %v2115
    %v2117 = vlaneseq
    %v2118 = vshrl.u32 %v2117, 7
    %v2119 = vsub.s32 %v1643, %v2118
    %v2120 = vrot.slane %v1304, %v2119
    %v2121 = vsel %vm1648, %v2120, %v2116
    %v2122 = vlaneseq
    %v2123 = vshrl.u32 %v2122, 7
    %v2124 = vsub.s32 %v1638, %v2123
    %v2125 = vrot.slane %v1307, %v2124
    %v2126 = vlaneseq
    %v2127 = vshrl.u32 %v2126, 7
    %v2128 = vsub.s32 %v1643, %v2127
    %v2129 = vrot.slane %v1310, %v2128
    %v2130 = vsel %vm1648, %v2129, %v2125
    %v2131 = vlaneseq
    %v2132 = vshrl.u32 %v2131, 7
    %v2133 = vsub.s32 %v1638, %v2132
    %v2134 = vrot.slane %v1313, %v2133
    %v2135 = vlaneseq
    %v2136 = vshrl.u32 %v2135, 7
    %v2137 = vsub.s32 %v1643, %v2136
    %v2138 = vrot.slane %v1316, %v2137
    %v2139 = vsel %vm1648, %v2138, %v2134
    %v2140 = vlaneseq
    %v2141 = vshrl.u32 %v2140, 7
    %v2142 = vsub.s32 %v1638, %v2141
    %v2143 = vrot.slane %v1319, %v2142
    %v2144 = vlaneseq
    %v2145 = vshrl.u32 %v2144, 7
    %v2146 = vsub.s32 %v1643, %v2145
    %v2147 = vrot.slane %v1322, %v2146
    %v2148 = vsel %vm1648, %v2147, %v2143
    %v2149 = vlaneseq
    %v2150 = vshrl.u32 %v2149, 7
    %v2151 = vsub.s32 %v1638, %v2150
    %v2152 = vrot.slane %v1325, %v2151
    %v2153 = vlaneseq
    %v2154 = vshrl.u32 %v2153, 7
    %v2155 = vsub.s32 %v1643, %v2154
    %v2156 = vrot.slane %v1328, %v2155
    %v2157 = vsel %vm1648, %v2156, %v2152
    %v2158 = vlaneseq
    %v2159 = vshrl.u32 %v2158, 7
    %v2160 = vsub.s32 %v1638, %v2159
    %v2161 = vrot.slane %v1331, %v2160
    %v2162 = vlaneseq
    %v2163 = vshrl.u32 %v2162, 7
    %v2164 = vsub.s32 %v1643, %v2163
    %v2165 = vrot.slane %v1334, %v2164
    %v2166 = vsel %vm1648, %v2165, %v2161
    %v2167 = vlaneseq
    %v2168 = vshrl.u32 %v2167, 7
    %v2169 = vsub.s32 %v1638, %v2168
    %v2170 = vrot.slane %v1337, %v2169
    %v2171 = vlaneseq
    %v2172 = vshrl.u32 %v2171, 7
    %v2173 = vsub.s32 %v1643, %v2172
    %v2174 = vrot.slane %v1340, %v2173
    %v2175 = vsel %vm1648, %v2174, %v2170
    %v2176 = vsel %vm1785, %v2049, %v2040
    %v2177 = vsel %vm1787, %v2058, %v2176
    %v2178 = vsel %vm1789, %v2067, %v2177
    %v2179 = vsel %vm1791, %v2076, %v2178
    %v2180 = vsel %vm1793, %v2085, %v2179
    %v2181 = vsel %vm1795, %v2094, %v2180
    %v2182 = vsel %vm1797, %v2103, %v2181
    %v2183 = vsel %vm1785, %v2121, %v2112
    %v2184 = vsel %vm1787, %v2130, %v2183
    %v2185 = vsel %vm1789, %v2139, %v2184
    %v2186 = vsel %vm1791, %v2148, %v2185
    %v2187 = vsel %vm1793, %v2157, %v2186
    %v2188 = vsel %vm1795, %v2166, %v2187
    %v2189 = vsel %vm1797, %v2175, %v2188
    %v2224 = vlaneseq
    %v2225 = vshrl.u32 %v2224, 7
    %v2226 = vsub.s32 %v1638, %v2225
    %v2227 = vrot.slane %v1511, %v2226
    %v2228 = vlaneseq
    %v2229 = vshrl.u32 %v2228, 7
    %v2230 = vsub.s32 %v1643, %v2229
    %v2231 = vrot.slane %v1514, %v2230
    %v2232 = vsel %vm1648, %v2231, %v2227
    %v2233 = vlaneseq
    %v2234 = vshrl.u32 %v2233, 7
    %v2235 = vsub.s32 %v1638, %v2234
    %v2236 = vrot.slane %v1517, %v2235
    %v2237 = vlaneseq
    %v2238 = vshrl.u32 %v2237, 7
    %v2239 = vsub.s32 %v1643, %v2238
    %v2240 = vrot.slane %v1520, %v2239
    %v2241 = vsel %vm1648, %v2240, %v2236
    %v2242 = vlaneseq
    %v2243 = vshrl.u32 %v2242, 7
    %v2244 = vsub.s32 %v1638, %v2243
    %v2245 = vrot.slane %v1523, %v2244
    %v2246 = vlaneseq
    %v2247 = vshrl.u32 %v2246, 7
    %v2248 = vsub.s32 %v1643, %v2247
    %v2249 = vrot.slane %v1526, %v2248
    %v2250 = vsel %vm1648, %v2249, %v2245
    %v2251 = vlaneseq
    %v2252 = vshrl.u32 %v2251, 7
    %v2253 = vsub.s32 %v1638, %v2252
    %v2254 = vrot.slane %v1529, %v2253
    %v2255 = vlaneseq
    %v2256 = vshrl.u32 %v2255, 7
    %v2257 = vsub.s32 %v1643, %v2256
    %v2258 = vrot.slane %v1532, %v2257
    %v2259 = vsel %vm1648, %v2258, %v2254
    %v2260 = vlaneseq
    %v2261 = vshrl.u32 %v2260, 7
    %v2262 = vsub.s32 %v1638, %v2261
    %v2263 = vrot.slane %v1535, %v2262
    %v2264 = vlaneseq
    %v2265 = vshrl.u32 %v2264, 7
    %v2266 = vsub.s32 %v1643, %v2265
    %v2267 = vrot.slane %v1538, %v2266
    %v2268 = vsel %vm1648, %v2267, %v2263
    %v2269 = vlaneseq
    %v2270 = vshrl.u32 %v2269, 7
    %v2271 = vsub.s32 %v1638, %v2270
    %v2272 = vrot.slane %v1541, %v2271
    %v2273 = vlaneseq
    %v2274 = vshrl.u32 %v2273, 7
    %v2275 = vsub.s32 %v1643, %v2274
    %v2276 = vrot.slane %v1544, %v2275
    %v2277 = vsel %vm1648, %v2276, %v2272
    %v2278 = vlaneseq
    %v2279 = vshrl.u32 %v2278, 7
    %v2280 = vsub.s32 %v1638, %v2279
    %v2281 = vrot.slane %v1547, %v2280
    %v2282 = vlaneseq
    %v2283 = vshrl.u32 %v2282, 7
    %v2284 = vsub.s32 %v1643, %v2283
    %v2285 = vrot.slane %v1550, %v2284
    %v2286 = vsel %vm1648, %v2285, %v2281
    %v2287 = vlaneseq
    %v2288 = vshrl.u32 %v2287, 7
    %v2289 = vsub.s32 %v1638, %v2288
    %v2290 = vrot.slane %v1553, %v2289
    %v2291 = vlaneseq
    %v2292 = vshrl.u32 %v2291, 7
    %v2293 = vsub.s32 %v1643, %v2292
    %v2294 = vrot.slane %v1556, %v2293
    %v2295 = vsel %vm1648, %v2294, %v2290
    %v2296 = vlaneseq
    %v2297 = vshrl.u32 %v2296, 7
    %v2298 = vsub.s32 %v1638, %v2297
    %v2299 = vrot.slane %v1559, %v2298
    %v2300 = vlaneseq
    %v2301 = vshrl.u32 %v2300, 7
    %v2302 = vsub.s32 %v1643, %v2301
    %v2303 = vrot.slane %v1562, %v2302
    %v2304 = vsel %vm1648, %v2303, %v2299
    %v2305 = vlaneseq
    %v2306 = vshrl.u32 %v2305, 7
    %v2307 = vsub.s32 %v1638, %v2306
    %v2308 = vrot.slane %v1565, %v2307
    %v2309 = vlaneseq
    %v2310 = vshrl.u32 %v2309, 7
    %v2311 = vsub.s32 %v1643, %v2310
    %v2312 = vrot.slane %v1568, %v2311
    %v2313 = vsel %vm1648, %v2312, %v2308
    %v2314 = vlaneseq
    %v2315 = vshrl.u32 %v2314, 7
    %v2316 = vsub.s32 %v1638, %v2315
    %v2317 = vrot.slane %v1571, %v2316
    %v2318 = vlaneseq
    %v2319 = vshrl.u32 %v2318, 7
    %v2320 = vsub.s32 %v1643, %v2319
    %v2321 = vrot.slane %v1574, %v2320
    %v2322 = vsel %vm1648, %v2321, %v2317
    %v2323 = vlaneseq
    %v2324 = vshrl.u32 %v2323, 7
    %v2325 = vsub.s32 %v1638, %v2324
    %v2326 = vrot.slane %v1577, %v2325
    %v2327 = vlaneseq
    %v2328 = vshrl.u32 %v2327, 7
    %v2329 = vsub.s32 %v1643, %v2328
    %v2330 = vrot.slane %v1580, %v2329
    %v2331 = vsel %vm1648, %v2330, %v2326
    %v2332 = vlaneseq
    %v2333 = vshrl.u32 %v2332, 7
    %v2334 = vsub.s32 %v1638, %v2333
    %v2335 = vrot.slane %v1583, %v2334
    %v2336 = vlaneseq
    %v2337 = vshrl.u32 %v2336, 7
    %v2338 = vsub.s32 %v1643, %v2337
    %v2339 = vrot.slane %v1586, %v2338
    %v2340 = vsel %vm1648, %v2339, %v2335
    %v2341 = vlaneseq
    %v2342 = vshrl.u32 %v2341, 7
    %v2343 = vsub.s32 %v1638, %v2342
    %v2344 = vrot.slane %v1589, %v2343
    %v2345 = vlaneseq
    %v2346 = vshrl.u32 %v2345, 7
    %v2347 = vsub.s32 %v1643, %v2346
    %v2348 = vrot.slane %v1592, %v2347
    %v2349 = vsel %vm1648, %v2348, %v2344
    %v2350 = vlaneseq
    %v2351 = vshrl.u32 %v2350, 7
    %v2352 = vsub.s32 %v1638, %v2351
    %v2353 = vrot.slane %v1595, %v2352
    %v2354 = vlaneseq
    %v2355 = vshrl.u32 %v2354, 7
    %v2356 = vsub.s32 %v1643, %v2355
    %v2357 = vrot.slane %v1598, %v2356
    %v2358 = vsel %vm1648, %v2357, %v2353
    %v2359 = vlaneseq
    %v2360 = vshrl.u32 %v2359, 7
    %v2361 = vsub.s32 %v1638, %v2360
    %v2362 = vrot.slane %v1601, %v2361
    %v2363 = vlaneseq
    %v2364 = vshrl.u32 %v2363, 7
    %v2365 = vsub.s32 %v1643, %v2364
    %v2366 = vrot.slane %v1604, %v2365
    %v2367 = vsel %vm1648, %v2366, %v2362
    %v2368 = vsel %vm1785, %v2241, %v2232
    %v2369 = vsel %vm1787, %v2250, %v2368
    %v2370 = vsel %vm1789, %v2259, %v2369
    %v2371 = vsel %vm1791, %v2268, %v2370
    %v2372 = vsel %vm1793, %v2277, %v2371
    %v2373 = vsel %vm1795, %v2286, %v2372
    %v2374 = vsel %vm1797, %v2295, %v2373
    %v2375 = vsel %vm1785, %v2313, %v2304
    %v2376 = vsel %vm1787, %v2322, %v2375
    %v2377 = vsel %vm1789, %v2331, %v2376
    %v2378 = vsel %vm1791, %v2340, %v2377
    %v2379 = vsel %vm1793, %v2349, %v2378
    %v2380 = vsel %vm1795, %v2358, %v2379
    %v2381 = vsel %vm1797, %v2367, %v2380
    %v2384 = vsel %vm37, %v1798, -1e+30
    %v2385 = vsel %vm38, %v1805, -1e+30
    %v2386 = vsel %vm39, %v1990, -1e+30
    %v2387 = vsel %vm40, %v1997, -1e+30
    %v2388 = vsel %vm41, %v2182, -1e+30
    %v2389 = vsel %vm42, %v2189, -1e+30
    %v2390 = vsel %vm43, %v2374, -1e+30
    %v2391 = vsel %vm44, %v2381, -1e+30
    %vm2392 = vcmask 130048
    %v2393 = vsel %vm2392, %v2384, -inf
    %2394 = vmax.xlane.f32.xlu0 %v2393
    %v2395 = vpop.xlane.xlu0 %2394
    %v2396 = vsel %vm2392, %v2385, -inf
    %2397 = vmax.xlane.f32.xlu0 %v2396
    %v2398 = vpop.xlane.xlu0 %2397
    %v2399 = vsel %vm2392, %v2386, -inf
    %2400 = vmax.xlane.f32.xlu0 %v2399
    %v2401 = vpop.xlane.xlu0 %2400
    %v2402 = vsel %vm2392, %v2387, -inf
    %2403 = vmax.xlane.f32.xlu0 %v2402
    %v2404 = vpop.xlane.xlu0 %2403
    %v2405 = vsel %vm2392, %v2388, -inf
    %2406 = vmax.xlane.f32.xlu0 %v2405
    %v2407 = vpop.xlane.xlu0 %2406
    %v2408 = vsel %vm2392, %v2389, -inf
    %2409 = vmax.xlane.f32.xlu0 %v2408
    %v2410 = vpop.xlane.xlu0 %2409
    %v2411 = vsel %vm2392, %v2390, -inf
    %2412 = vmax.xlane.f32.xlu0 %v2411
    %v2413 = vpop.xlane.xlu0 %2412
    %v2414 = vsel %vm2392, %v2391, -inf
    %2415 = vmax.xlane.f32.xlu0 %v2414
    %v2416 = vpop.xlane.xlu0 %2415
    %v2417 = vsub.f32 %v2384, %v2395
    %v2418 = vsub.f32 %v2385, %v2398
    %v2419 = vsub.f32 %v2386, %v2401
    %v2420 = vsub.f32 %v2387, %v2404
    %v2421 = vsub.f32 %v2388, %v2407
    %v2422 = vsub.f32 %v2389, %v2410
    %v2423 = vsub.f32 %v2390, %v2413
    %v2424 = vsub.f32 %v2391, %v2416
    %v2425 = vmul.f32 %v2417, 1.442695
    %v2426 = vpow.pop %v2425
    %v2427 = vmul.f32 %v2418, 1.442695
    %v2428 = vpow.pop %v2427
    %v2429 = vmul.f32 %v2419, 1.442695
    %v2430 = vpow.pop %v2429
    %v2431 = vmul.f32 %v2420, 1.442695
    %v2432 = vpow.pop %v2431
    %v2433 = vmul.f32 %v2421, 1.442695
    %v2434 = vpow.pop %v2433
    %v2435 = vmul.f32 %v2422, 1.442695
    %v2436 = vpow.pop %v2435
    %v2437 = vmul.f32 %v2423, 1.442695
    %v2438 = vpow.pop %v2437
    %v2439 = vmul.f32 %v2424, 1.442695
    %v2440 = vpow.pop %v2439
    %v2441 = vsel %vm2392, %v2426, 0.0
    %2442 = vadd.xlane.f32.xlu0 %v2441
    %v2443 = vpop.xlane.xlu0 %2442
    %v2444 = vsel %vm2392, %v2428, 0.0
    %2445 = vadd.xlane.f32.xlu0 %v2444
    %v2446 = vpop.xlane.xlu0 %2445
    %v2447 = vsel %vm2392, %v2430, 0.0
    %2448 = vadd.xlane.f32.xlu0 %v2447
    %v2449 = vpop.xlane.xlu0 %2448
    %v2450 = vsel %vm2392, %v2432, 0.0
    %2451 = vadd.xlane.f32.xlu0 %v2450
    %v2452 = vpop.xlane.xlu0 %2451
    %v2453 = vsel %vm2392, %v2434, 0.0
    %2454 = vadd.xlane.f32.xlu0 %v2453
    %v2455 = vpop.xlane.xlu0 %2454
    %v2456 = vsel %vm2392, %v2436, 0.0
    %2457 = vadd.xlane.f32.xlu0 %v2456
    %v2458 = vpop.xlane.xlu0 %2457
    %v2459 = vsel %vm2392, %v2438, 0.0
    %2460 = vadd.xlane.f32.xlu0 %v2459
    %v2461 = vpop.xlane.xlu0 %2460
    %v2462 = vsel %vm2392, %v2440, 0.0
    %2463 = vadd.xlane.f32.xlu0 %v2462
    %v2464 = vpop.xlane.xlu0 %2463
    %v2465 = vrcp.pop %v2443
    %v2466 = vmul.f32 %v2426, %v2465
    %v2467 = vrcp.pop %v2446
    %v2468 = vmul.f32 %v2428, %v2467
    %v2469 = vrcp.pop %v2449
    %v2470 = vmul.f32 %v2430, %v2469
    %v2471 = vrcp.pop %v2452
    %v2472 = vmul.f32 %v2432, %v2471
    %v2473 = vrcp.pop %v2455
    %v2474 = vmul.f32 %v2434, %v2473
    %v2475 = vrcp.pop %v2458
    %v2476 = vmul.f32 %v2436, %v2475
    %v2477 = vrcp.pop %v2461
    %v2478 = vmul.f32 %v2438, %v2477
    %v2479 = vrcp.pop %v2464
    %v2480 = vmul.f32 %v2440, %v2479
    %v2482 = vsel %vm2392, %v2466, 0
    %v2485 = vsel %vm2392, %v2468, 0
    %v2488 = vsel %vm2392, %v2470, 0
    %v2491 = vsel %vm2392, %v2472, 0
    %v2494 = vsel %vm2392, %v2474, 0
    %v2497 = vsel %vm2392, %v2476, 0
    %v2500 = vsel %vm2392, %v2478, 0
    %v2503 = vsel %vm2392, %v2480, 0
    %2505 = vmatprep.subr.mxu0 0.0
    %2506 = vmatpush1.msra.mxu0 %v227
    %2507 = vmatprep.subr.mxu0 0.0
    %2508 = vmatpush1.msra.mxu0 %v232
    %2509 = vmatprep.subr.mxu0 0.0
    %2510 = vmatpush1.msra.mxu0 0.0
    %2511 = vmatprep.subr.mxu0 0.0
    %2512 = vmatpush1.msra.mxu0 0.0
    %2513 = vmatprep.subr.mxu0 0.0
    %2514 = vmatpush1.msra.mxu0 0.0
    %2515 = vmatprep.subr.mxu0 0.0
    %2516 = vmatpush1.msra.mxu0 0.0
    %2517 = vmatprep.subr.mxu0 0.0
    %2518 = vmatpush1.msra.mxu0 0.0
    %2519 = vmatprep.subr.mxu0 0.0
    %2520 = vmatpush1.msra.mxu0 0.0
    %2521 = vmatprep.subr.mxu0 0.0
    %2522 = vmatpush1.msra.mxu0 0.0
    %2523 = vmatprep.subr.mxu0 0.0
    %2524 = vmatpush1.msra.mxu0 0.0
    %2525 = vmatprep.subr.mxu0 0.0
    %2526 = vmatpush1.msra.mxu0 0.0
    %2527 = vmatprep.subr.mxu0 0.0
    %2528 = vmatpush1.msra.mxu0 0.0
    %2529 = vmatprep.subr.mxu0 0.0
    %2530 = vmatpush1.msra.mxu0 0.0
    %2531 = vmatprep.subr.mxu0 0.0
    %2532 = vmatpush1.msra.mxu0 0.0
    %2533 = vmatprep.subr.mxu0 0.0
    %2534 = vmatpush1.msra.mxu0 0.0
    %2535 = vmatprep.subr.mxu0 0.0
    %2536 = vmatpush1.msra.mxu0 0.0
    %2537 = vmatprep.subr.mxu0 0.0
    %2538 = vmatpush1.msra.mxu0 0.0
    %2539 = vmatprep.subr.mxu0 0.0
    %2540 = vmatpush1.msra.mxu0 0.0
    %2541 = vmatprep.subr.mxu0 0.0
    %2542 = vmatpush1.msra.mxu0 0.0
    %2543 = vmatprep.subr.mxu0 0.0
    %2544 = vmatpush1.msra.mxu0 0.0
    %2545 = vmatprep.subr.mxu0 0.0
    %2546 = vmatpush1.msra.mxu0 0.0
    %2547 = vmatprep.subr.mxu0 0.0
    %2548 = vmatpush1.msra.mxu0 0.0
    %2549 = vmatprep.subr.mxu0 0.0
    %2550 = vmatpush1.msra.mxu0 0.0
    %2551 = vmatprep.subr.mxu0 0.0
    %2552 = vmatpush1.msra.mxu0 0.0
    %2553 = vmatprep.subr.mxu0 0.0
    %2554 = vmatpush1.msra.mxu0 0.0
    %2555 = vmatprep.subr.mxu0 0.0
    %2556 = vmatpush1.msra.mxu0 0.0
    %2557 = vmatprep.subr.mxu0 0.0
    %2558 = vmatpush1.msra.mxu0 0.0
    %2559 = vmatprep.subr.mxu0 0.0
    %2560 = vmatpush1.msra.mxu0 0.0
    %2561 = vmatprep.subr.mxu0 0.0
    %2562 = vmatpush1.msra.mxu0 0.0
    %2563 = vmatprep.subr.mxu0 0.0
    %2564 = vmatpush1.msra.mxu0 0.0
    %2565 = vmatprep.subr.mxu0 0.0
    %2566 = vmatpush1.msra.mxu0 0.0
    %2567 = vmatprep.subr.mxu0 0.0
    %2568 = vmatpush1.msra.mxu0 0.0
    %2569 = vmatprep.mubr.f32.mxu0 0.0
    %2570 = vmatmul.mubr.f32.gmra.mrb[0].mxu0 %v2482
    %v2571 = vpop.f32.mrb[0].mxu0
    %v2572 = vadd.f32 0.0, %v2571
    %v2573 = vpop.f32.mrb[0].mxu0
    %2574 = vmatprep.mubr.f32.mxu0 0.0
    %2575 = vmatmul.mubr.f32.gmra.mrb[0].mxu0 %v2485
    %v2576 = vpop.f32.mrb[0].mxu0
    %v2577 = vadd.f32 0.0, %v2576
    %v2578 = vpop.f32.mrb[0].mxu0
    %2579 = vmatprep.mubr.f32.mxu0 0.0
    %2580 = vmatmul.mubr.f32.gmra.mrb[0].mxu0 %v2488
    %v2581 = vpop.f32.mrb[0].mxu0
    %v2582 = vadd.f32 0.0, %v2581
    %v2583 = vpop.f32.mrb[0].mxu0
    %2584 = vmatprep.mubr.f32.mxu0 0.0
    %2585 = vmatmul.mubr.f32.gmra.mrb[0].mxu0 %v2491
    %v2586 = vpop.f32.mrb[0].mxu0
    %v2587 = vadd.f32 0.0, %v2586
    %v2588 = vpop.f32.mrb[0].mxu0
    %2589 = vmatprep.mubr.f32.mxu0 0.0
    %2590 = vmatmul.mubr.f32.gmra.mrb[0].mxu0 %v2494
    %v2591 = vpop.f32.mrb[0].mxu0
    %v2592 = vadd.f32 0.0, %v2591
    %v2593 = vpop.f32.mrb[0].mxu0
    %2594 = vmatprep.mubr.f32.mxu0 0.0
    %2595 = vmatmul.mubr.f32.gmra.mrb[0].mxu0 %v2497
    %v2596 = vpop.f32.mrb[0].mxu0
    %v2597 = vadd.f32 0.0, %v2596
    %v2598 = vpop.f32.mrb[0].mxu0
    %2599 = vmatprep.mubr.f32.mxu0 0.0
    %2600 = vmatmul.mubr.f32.gmra.mrb[0].mxu0 %v2500
    %v2601 = vpop.f32.mrb[0].mxu0
    %v2602 = vadd.f32 0.0, %v2601
    %v2603 = vpop.f32.mrb[0].mxu0
    %2604 = vmatprep.mubr.f32.mxu0 0.0
    %2605 = vmatmul.mubr.f32.gmra.mrb[0].mxu0 %v2503
    %v2606 = vpop.f32.mrb[0].mxu0
    %v2607 = vadd.f32 0.0, %v2606
    %v2608 = vpop.f32.mrb[0].mxu0
    %2609 = vdwg.mxu0
    %v2610 = vlaneseq
    %v2611 = vshrl.u32 %v2610, 7
    %v2612 = vsub.s32 0, %v2611
    %v2613 = vrot.slane %v45, %v2612
    %v2614 = vmul.f32 %v2572, %v2613
    %v2615 = vmul.f32 %v2577, %v2613
    %v2616 = vlaneseq
    %v2617 = vshrl.u32 %v2616, 7
    %v2618 = vsub.s32 1, %v2617
    %v2619 = vrot.slane %v45, %v2618
    %v2620 = vmul.f32 %v2582, %v2619
    %v2621 = vmul.f32 %v2587, %v2619
    %v2622 = vadd.f32 %v2614, %v2620
    %v2623 = vadd.f32 %v2615, %v2621
    %v2624 = vlaneseq
    %v2625 = vshrl.u32 %v2624, 7
    %v2626 = vsub.s32 2, %v2625
    %v2627 = vrot.slane %v45, %v2626
    %v2628 = vmul.f32 %v2592, %v2627
    %v2629 = vmul.f32 %v2597, %v2627
    %v2630 = vadd.f32 %v2622, %v2628
    %v2631 = vadd.f32 %v2623, %v2629
    %v2632 = vlaneseq
    %v2633 = vshrl.u32 %v2632, 7
    %v2634 = vsub.s32 3, %v2633
    %v2635 = vrot.slane %v45, %v2634
    %v2636 = vmul.f32 %v2602, %v2635
    %v2637 = vmul.f32 %v2607, %v2635
    %v2638 = vadd.f32 %v2630, %v2636
    %v2639 = vadd.f32 %v2631, %v2637
    %v2640 = vlaneseq
    %v2641 = vshrl.u32 %v2640, 7
    %v2642 = vsub.s32 0, %v2641
    %v2643 = vrot.slane %v148, %v2642
    %v2644 = vadd.f32 %v2638, %v2643
    %v2645 = vadd.f32 %v2639, %v2643
    %v2646 = vmax.f32 %v2644, 0.0
    %v2647 = vmax.f32 %v2645, 0.0
    %v2648 = vld [vmem:[#allocation2 + $0x58] sm:$0xff]
    %v2649 = vld [vmem:[#allocation2 + $0x60] sm:$0xff]
    %v2650 = vld [vmem:[#allocation2 + $0x68] sm:$0xff]
    %v2651 = vld [vmem:[#allocation2 + $0x70] sm:$0xff]
    %v2652 = vld [vmem:[#allocation2 + $0x78] sm:$0x1]
    %v2653 = vld [vmem:[#allocation2 + $0x80] sm:$0xf]
    %v2654 = vld [vmem:[#allocation2 + $0x88] sm:$0x1]
    %v2655 = vlaneseq
    %v2656 = vshrl.u32 %v2655, 7
    %v2657 = vsub.s32 0, %v2656
    %v2658 = vrot.slane %v2652, %v2657
    %v2660 = vsel %vm153, %v2646, 0
    %v2663 = vsel %vm153, %v2647, 0
    %2665 = vmatprep.subr.mxu0 0.0
    %2666 = vmatpush1.msra.mxu0 %v2648
    %2667 = vmatprep.subr.mxu0 0.0
    %2668 = vmatpush1.msra.mxu0 %v2649
    %2669 = vmatprep.subr.mxu0 0.0
    %2670 = vmatpush1.msra.mxu0 %v2650
    %2671 = vmatprep.subr.mxu0 0.0
    %2672 = vmatpush1.msra.mxu0 %v2651
    %2673 = vmatprep.subr.mxu0 0.0
    %2674 = vmatpush1.msra.mxu0 0.0
    %2675 = vmatprep.subr.mxu0 0.0
    %2676 = vmatpush1.msra.mxu0 0.0
    %2677 = vmatprep.subr.mxu0 0.0
    %2678 = vmatpush1.msra.mxu0 0.0
    %2679 = vmatprep.subr.mxu0 0.0
    %2680 = vmatpush1.msra.mxu0 0.0
    %2681 = vmatprep.subr.mxu0 0.0
    %2682 = vmatpush1.msra.mxu0 0.0
    %2683 = vmatprep.subr.mxu0 0.0
    %2684 = vmatpush1.msra.mxu0 0.0
    %2685 = vmatprep.subr.mxu0 0.0
    %2686 = vmatpush1.msra.mxu0 0.0
    %2687 = vmatprep.subr.mxu0 0.0
    %2688 = vmatpush1.msra.mxu0 0.0
    %2689 = vmatprep.subr.mxu0 0.0
    %2690 = vmatpush1.msra.mxu0 0.0
    %2691 = vmatprep.subr.mxu0 0.0
    %2692 = vmatpush1.msra.mxu0 0.0
    %2693 = vmatprep.subr.mxu0 0.0
    %2694 = vmatpush1.msra.mxu0 0.0
    %2695 = vmatprep.subr.mxu0 0.0
    %2696 = vmatpush1.msra.mxu0 0.0
    %2697 = vmatprep.subr.mxu0 0.0
    %2698 = vmatpush1.msra.mxu0 0.0
    %2699 = vmatprep.subr.mxu0 0.0
    %2700 = vmatpush1.msra.mxu0 0.0
    %2701 = vmatprep.subr.mxu0 0.0
    %2702 = vmatpush1.msra.mxu0 0.0
    %2703 = vmatprep.subr.mxu0 0.0
    %2704 = vmatpush1.msra.mxu0 0.0
    %2705 = vmatprep.subr.mxu0 0.0
    %2706 = vmatpush1.msra.mxu0 0.0
    %2707 = vmatprep.subr.mxu0 0.0
    %2708 = vmatpush1.msra.mxu0 0.0
    %2709 = vmatprep.subr.mxu0 0.0
    %2710 = vmatpush1.msra.mxu0 0.0
    %2711 = vmatprep.subr.mxu0 0.0
    %2712 = vmatpush1.msra.mxu0 0.0
    %2713 = vmatprep.subr.mxu0 0.0
    %2714 = vmatpush1.msra.mxu0 0.0
    %2715 = vmatprep.subr.mxu0 0.0
    %2716 = vmatpush1.msra.mxu0 0.0
    %2717 = vmatprep.subr.mxu0 0.0
    %2718 = vmatpush1.msra.mxu0 0.0
    %2719 = vmatprep.subr.mxu0 0.0
    %2720 = vmatpush1.msra.mxu0 0.0
    %2721 = vmatprep.subr.mxu0 0.0
    %2722 = vmatpush1.msra.mxu0 0.0
    %2723 = vmatprep.subr.mxu0 0.0
    %2724 = vmatpush1.msra.mxu0 0.0
    %2725 = vmatprep.subr.mxu0 0.0
    %2726 = vmatpush1.msra.mxu0 0.0
    %2727 = vmatprep.subr.mxu0 0.0
    %2728 = vmatpush1.msra.mxu0 0.0
    %2729 = vmatprep.mubr.f32.mxu0 0.0
    %2730 = vmatmul.mubr.f32.gmra.mrb[0].mxu0 %v2660
    %v2731 = vpop.f32.mrb[0].mxu0
    %v2732 = vadd.f32 %v2658, %v2731
    %v2733 = vpop.f32.mrb[0].mxu0
    %2734 = vmatprep.mubr.f32.mxu0 0.0
    %2735 = vmatmul.mubr.f32.gmra.mrb[0].mxu0 %v2663
    %v2736 = vpop.f32.mrb[0].mxu0
    %v2737 = vadd.f32 %v2658, %v2736
    %v2738 = vpop.f32.mrb[0].mxu0
    %2739 = vdwg.mxu0
    %v2742 = vcombine.high %v2732, %v2732
    %v2744 = vunpack.c.l.s4 1966171168
    %v2745 = vunpack.c.0.s8 %v2744
    %v2746 = vlaneseq
    %v2747 = vshrl.u32 %v2746, 7
    %v2748 = vsub.s32 %v2745, %v2747
    %v2749 = vrot.slane %v2732, %v2748
    %v2751 = vunpack.c.l.s4 1966171168
    %v2752 = vunpack.c.0.s8 %v2751
    %v2753 = vlaneseq
    %v2754 = vshrl.u32 %v2753, 7
    %v2755 = vsub.s32 %v2752, %v2754
    %v2756 = vrot.slane %v2742, %v2755
    %v2757 = vcombine.high %v2749, %v2749
    %v2758 = vcombine.high %v2756, %v2756
    %v2760 = vunpack.c.l.s4 1966171168
    %v2761 = vunpack.c.0.s8 %v2760
    %v2762 = vlaneseq
    %v2763 = vshrl.u32 %v2762, 7
    %v2764 = vsub.s32 %v2761, %v2763
    %v2765 = vrot.slane %v2749, %v2764
    %v2767 = vunpack.c.l.s4 1966171168
    %v2768 = vunpack.c.0.s8 %v2767
    %v2769 = vlaneseq
    %v2770 = vshrl.u32 %v2769, 7
    %v2771 = vsub.s32 %v2768, %v2770
    %v2772 = vrot.slane %v2756, %v2771
    %v2774 = vunpack.c.l.s4 1966171168
    %v2775 = vunpack.c.0.s8 %v2774
    %v2776 = vlaneseq
    %v2777 = vshrl.u32 %v2776, 7
    %v2778 = vsub.s32 %v2775, %v2777
    %v2779 = vrot.slane %v2757, %v2778
    %v2781 = vunpack.c.l.s4 1966171168
    %v2782 = vunpack.c.0.s8 %v2781
    %v2783 = vlaneseq
    %v2784 = vshrl.u32 %v2783, 7
    %v2785 = vsub.s32 %v2782, %v2784
    %v2786 = vrot.slane %v2758, %v2785
    %v2787 = vcombine.high %v2765, %v2765
    %v2788 = vcombine.high %v2772, %v2772
    %v2789 = vcombine.high %v2779, %v2779
    %v2790 = vcombine.high %v2786, %v2786
    %v2791 = vcombine.high %v2737, %v2737
    %v2793 = vunpack.c.l.s4 1966171168
    %v2794 = vunpack.c.0.s8 %v2793
    %v2795 = vlaneseq
    %v2796 = vshrl.u32 %v2795, 7
    %v2797 = vsub.s32 %v2794, %v2796
    %v2798 = vrot.slane %v2737, %v2797
    %v2800 = vunpack.c.l.s4 1966171168
    %v2801 = vunpack.c.0.s8 %v2800
    %v2802 = vlaneseq
    %v2803 = vshrl.u32 %v2802, 7
    %v2804 = vsub.s32 %v2801, %v2803
    %v2805 = vrot.slane %v2791, %v2804
    %v2806 = vcombine.high %v2798, %v2798
    %v2807 = vcombine.high %v2805, %v2805
    %v2809 = vunpack.c.l.s4 1966171168
    %v2810 = vunpack.c.0.s8 %v2809
    %v2811 = vlaneseq
    %v2812 = vshrl.u32 %v2811, 7
    %v2813 = vsub.s32 %v2810, %v2812
    %v2814 = vrot.slane %v2798, %v2813
    %v2816 = vunpack.c.l.s4 1966171168
    %v2817 = vunpack.c.0.s8 %v2816
    %v2818 = vlaneseq
    %v2819 = vshrl.u32 %v2818, 7
    %v2820 = vsub.s32 %v2817, %v2819
    %v2821 = vrot.slane %v2805, %v2820
    %v2823 = vunpack.c.l.s4 1966171168
    %v2824 = vunpack.c.0.s8 %v2823
    %v2825 = vlaneseq
    %v2826 = vshrl.u32 %v2825, 7
    %v2827 = vsub.s32 %v2824, %v2826
    %v2828 = vrot.slane %v2806, %v2827
    %v2830 = vunpack.c.l.s4 1966171168
    %v2831 = vunpack.c.0.s8 %v2830
    %v2832 = vlaneseq
    %v2833 = vshrl.u32 %v2832, 7
    %v2834 = vsub.s32 %v2831, %v2833
    %v2835 = vrot.slane %v2807, %v2834
    %v2836 = vcombine.high %v2814, %v2814
    %v2837 = vcombine.high %v2821, %v2821
    %v2838 = vcombine.high %v2828, %v2828
    %v2839 = vcombine.high %v2835, %v2835
    %v2840 = vlaneseq
    %v2841 = vshrl.u32 %v2840, 7
    %v2842 = vsub.s32 0, %v2841
    %v2843 = vrot.slane %v2765, %v2842
    %v2844 = vlaneseq
    %v2845 = vshrl.u32 %v2844, 7
    %v2846 = vsub.s32 0, %v2845
    %v2847 = vrot.slane %v2779, %v2846
    %v2848 = vlaneseq
    %v2849 = vshrl.u32 %v2848, 7
    %v2850 = vsub.s32 0, %v2849
    %v2851 = vrot.slane %v2787, %v2850
    %v2852 = vlaneseq
    %v2853 = vshrl.u32 %v2852, 7
    %v2854 = vsub.s32 0, %v2853
    %v2855 = vrot.slane %v2789, %v2854
    %v2856 = vlaneseq
    %v2857 = vshrl.u32 %v2856, 7
    %v2858 = vsub.s32 0, %v2857
    %v2859 = vrot.slane %v2772, %v2858
    %v2860 = vlaneseq
    %v2861 = vshrl.u32 %v2860, 7
    %v2862 = vsub.s32 0, %v2861
    %v2863 = vrot.slane %v2786, %v2862
    %v2864 = vlaneseq
    %v2865 = vshrl.u32 %v2864, 7
    %v2866 = vsub.s32 0, %v2865
    %v2867 = vrot.slane %v2788, %v2866
    %v2868 = vlaneseq
    %v2869 = vshrl.u32 %v2868, 7
    %v2870 = vsub.s32 0, %v2869
    %v2871 = vrot.slane %v2790, %v2870
    %v2872 = vlaneseq
    %v2873 = vshrl.u32 %v2872, 7
    %v2874 = vsub.s32 0, %v2873
    %v2875 = vrot.slane %v2814, %v2874
    %v2876 = vlaneseq
    %v2877 = vshrl.u32 %v2876, 7
    %v2878 = vsub.s32 0, %v2877
    %v2879 = vrot.slane %v2828, %v2878
    %v2880 = vlaneseq
    %v2881 = vshrl.u32 %v2880, 7
    %v2882 = vsub.s32 0, %v2881
    %v2883 = vrot.slane %v2836, %v2882
    %v2884 = vlaneseq
    %v2885 = vshrl.u32 %v2884, 7
    %v2886 = vsub.s32 0, %v2885
    %v2887 = vrot.slane %v2838, %v2886
    %v2888 = vlaneseq
    %v2889 = vshrl.u32 %v2888, 7
    %v2890 = vsub.s32 0, %v2889
    %v2891 = vrot.slane %v2821, %v2890
    %v2892 = vlaneseq
    %v2893 = vshrl.u32 %v2892, 7
    %v2894 = vsub.s32 0, %v2893
    %v2895 = vrot.slane %v2835, %v2894
    %v2896 = vlaneseq
    %v2897 = vshrl.u32 %v2896, 7
    %v2898 = vsub.s32 0, %v2897
    %v2899 = vrot.slane %v2837, %v2898
    %v2900 = vlaneseq
    %v2901 = vshrl.u32 %v2900, 7
    %v2902 = vsub.s32 0, %v2901
    %v2903 = vrot.slane %v2839, %v2902
    %2920 = vrot.lane.b32.xlu0 %v2732, 32
    %v2921 = vpop.permute.xlu0 %2920
    %2922 = vrot.lane.b32.xlu0 %v2737, 32
    %v2923 = vpop.permute.xlu0 %2922
    %v2926 = vadd.f32 %v2843, %v2921
    %v2927 = vadd.f32 %v2843, %v2923
    %v2928 = vadd.f32 %v2847, %v2921
    %v2929 = vadd.f32 %v2847, %v2923
    %v2930 = vadd.f32 %v2851, %v2921
    %v2931 = vadd.f32 %v2851, %v2923
    %v2932 = vadd.f32 %v2855, %v2921
    %v2933 = vadd.f32 %v2855, %v2923
    %v2934 = vadd.f32 %v2859, %v2921
    %v2935 = vadd.f32 %v2859, %v2923
    %v2936 = vadd.f32 %v2863, %v2921
    %v2937 = vadd.f32 %v2863, %v2923
    %v2938 = vadd.f32 %v2867, %v2921
    %v2939 = vadd.f32 %v2867, %v2923
    %v2940 = vadd.f32 %v2871, %v2921
    %v2941 = vadd.f32 %v2871, %v2923
    %v2942 = vadd.f32 %v2875, %v2921
    %v2943 = vadd.f32 %v2875, %v2923
    %v2944 = vadd.f32 %v2879, %v2921
    %v2945 = vadd.f32 %v2879, %v2923
    %v2946 = vadd.f32 %v2883, %v2921
    %v2947 = vadd.f32 %v2883, %v2923
    %v2948 = vadd.f32 %v2887, %v2921
    %v2949 = vadd.f32 %v2887, %v2923
    %v2950 = vadd.f32 %v2891, %v2921
    %v2951 = vadd.f32 %v2891, %v2923
    %v2952 = vadd.f32 %v2895, %v2921
    %v2953 = vadd.f32 %v2895, %v2923
    %v2954 = vadd.f32 %v2899, %v2921
    %v2955 = vadd.f32 %v2899, %v2923
    %v2956 = vadd.f32 %v2903, %v2921
    %v2957 = vadd.f32 %v2903, %v2923
    %vm2958 = vcmp.ge.f32.partialorder %v2926, 0.0
    %vm2959 = vcmp.ge.f32.partialorder %v2927, 0.0
    %vm2960 = vcmp.ge.f32.partialorder %v2928, 0.0
    %vm2961 = vcmp.ge.f32.partialorder %v2929, 0.0
    %vm2962 = vcmp.ge.f32.partialorder %v2930, 0.0
    %vm2963 = vcmp.ge.f32.partialorder %v2931, 0.0
    %vm2964 = vcmp.ge.f32.partialorder %v2932, 0.0
    %vm2965 = vcmp.ge.f32.partialorder %v2933, 0.0
    %vm2966 = vcmp.ge.f32.partialorder %v2934, 0.0
    %vm2967 = vcmp.ge.f32.partialorder %v2935, 0.0
    %vm2968 = vcmp.ge.f32.partialorder %v2936, 0.0
    %vm2969 = vcmp.ge.f32.partialorder %v2937, 0.0
    %vm2970 = vcmp.ge.f32.partialorder %v2938, 0.0
    %vm2971 = vcmp.ge.f32.partialorder %v2939, 0.0
    %vm2972 = vcmp.ge.f32.partialorder %v2940, 0.0
    %vm2973 = vcmp.ge.f32.partialorder %v2941, 0.0
    %vm2974 = vcmp.ge.f32.partialorder %v2942, 0.0
    %vm2975 = vcmp.ge.f32.partialorder %v2943, 0.0
    %vm2976 = vcmp.ge.f32.partialorder %v2944, 0.0
    %vm2977 = vcmp.ge.f32.partialorder %v2945, 0.0
    %vm2978 = vcmp.ge.f32.partialorder %v2946, 0.0
    %vm2979 = vcmp.ge.f32.partialorder %v2947, 0.0
    %vm2980 = vcmp.ge.f32.partialorder %v2948, 0.0
    %vm2981 = vcmp.ge.f32.partialorder %v2949, 0.0
    %vm2982 = vcmp.ge.f32.partialorder %v2950, 0.0
    %vm2983 = vcmp.ge.f32.partialorder %v2951, 0.0
    %vm2984 = vcmp.ge.f32.partialorder %v2952, 0.0
    %vm2985 = vcmp.ge.f32.partialorder %v2953, 0.0
    %vm2986 = vcmp.ge.f32.partialorder %v2954, 0.0
    %vm2987 = vcmp.ge.f32.partialorder %v2955, 0.0
    %vm2988 = vcmp.ge.f32.partialorder %v2956, 0.0
    %vm2989 = vcmp.ge.f32.partialorder %v2957, 0.0
    %v2990 = vmul.f32 %v2926, 0.2
    %v2991 = vmul.f32 %v2927, 0.2
    %v2992 = vmul.f32 %v2928, 0.2
    %v2993 = vmul.f32 %v2929, 0.2
    %v2994 = vmul.f32 %v2930, 0.2
    %v2995 = vmul.f32 %v2931, 0.2
    %v2996 = vmul.f32 %v2932, 0.2
    %v2997 = vmul.f32 %v2933, 0.2
    %v2998 = vmul.f32 %v2934, 0.2
    %v2999 = vmul.f32 %v2935, 0.2
    %v3000 = vmul.f32 %v2936, 0.2
    %v3001 = vmul.f32 %v2937, 0.2
    %v3002 = vmul.f32 %v2938, 0.2
    %v3003 = vmul.f32 %v2939, 0.2
    %v3004 = vmul.f32 %v2940, 0.2
    %v3005 = vmul.f32 %v2941, 0.2
    %v3006 = vmul.f32 %v2942, 0.2
    %v3007 = vmul.f32 %v2943, 0.2
    %v3008 = vmul.f32 %v2944, 0.2
    %v3009 = vmul.f32 %v2945, 0.2
    %v3010 = vmul.f32 %v2946, 0.2
    %v3011 = vmul.f32 %v2947, 0.2
    %v3012 = vmul.f32 %v2948, 0.2
    %v3013 = vmul.f32 %v2949, 0.2
    %v3014 = vmul.f32 %v2950, 0.2
    %v3015 = vmul.f32 %v2951, 0.2
    %v3016 = vmul.f32 %v2952, 0.2
    %v3017 = vmul.f32 %v2953, 0.2
    %v3018 = vmul.f32 %v2954, 0.2
    %v3019 = vmul.f32 %v2955, 0.2
    %v3020 = vmul.f32 %v2956, 0.2
    %v3021 = vmul.f32 %v2957, 0.2
    %v3022 = vsel %vm2958, %v2926, %v2990
    %v3023 = vsel %vm2959, %v2927, %v2991
    %v3024 = vsel %vm2960, %v2928, %v2992
    %v3025 = vsel %vm2961, %v2929, %v2993
    %v3026 = vsel %vm2962, %v2930, %v2994
    %v3027 = vsel %vm2963, %v2931, %v2995
    %v3028 = vsel %vm2964, %v2932, %v2996
    %v3029 = vsel %vm2965, %v2933, %v2997
    %v3030 = vsel %vm2966, %v2934, %v2998
    %v3031 = vsel %vm2967, %v2935, %v2999
    %v3032 = vsel %vm2968, %v2936, %v3000
    %v3033 = vsel %vm2969, %v2937, %v3001
    %v3034 = vsel %vm2970, %v2938, %v3002
    %v3035 = vsel %vm2971, %v2939, %v3003
    %v3036 = vsel %vm2972, %v2940, %v3004
    %v3037 = vsel %vm2973, %v2941, %v3005
    %v3038 = vsel %vm2974, %v2942, %v3006
    %v3039 = vsel %vm2975, %v2943, %v3007
    %v3040 = vsel %vm2976, %v2944, %v3008
    %v3041 = vsel %vm2977, %v2945, %v3009
    %v3042 = vsel %vm2978, %v2946, %v3010
    %v3043 = vsel %vm2979, %v2947, %v3011
    %v3044 = vsel %vm2980, %v2948, %v3012
    %v3045 = vsel %vm2981, %v2949, %v3013
    %v3046 = vsel %vm2982, %v2950, %v3014
    %v3047 = vsel %vm2983, %v2951, %v3015
    %v3048 = vsel %vm2984, %v2952, %v3016
    %v3049 = vsel %vm2985, %v2953, %v3017
    %v3050 = vsel %vm2986, %v2954, %v3018
    %v3051 = vsel %vm2987, %v2955, %v3019
    %v3052 = vsel %vm2988, %v2956, %v3020
    %v3053 = vsel %vm2989, %v2957, %v3021
    %v3054 = vlaneseq
    %v3055 = vshrl.u32 %v3054, 7
    %v3056 = vsub.s32 0, %v3055
    %v3057 = vrot.slane %v2653, %v3056
    %3059 = vrot.lane.b32.xlu0 %v3057, 32
    %v3060 = vpop.permute.xlu0 %3059
    %v3062 = vmul.f32 %v3022, %v3060
    %v3063 = vmul.f32 %v3023, %v3060
    %v3064 = vmul.f32 %v3024, %v3060
    %v3065 = vmul.f32 %v3025, %v3060
    %v3066 = vmul.f32 %v3026, %v3060
    %v3067 = vmul.f32 %v3027, %v3060
    %v3068 = vmul.f32 %v3028, %v3060
    %v3069 = vmul.f32 %v3029, %v3060
    %v3070 = vmul.f32 %v3030, %v3060
    %v3071 = vmul.f32 %v3031, %v3060
    %v3072 = vmul.f32 %v3032, %v3060
    %v3073 = vmul.f32 %v3033, %v3060
    %v3074 = vmul.f32 %v3034, %v3060
    %v3075 = vmul.f32 %v3035, %v3060
    %v3076 = vmul.f32 %v3036, %v3060
    %v3077 = vmul.f32 %v3037, %v3060
    %v3078 = vmul.f32 %v3038, %v3060
    %v3079 = vmul.f32 %v3039, %v3060
    %v3080 = vmul.f32 %v3040, %v3060
    %v3081 = vmul.f32 %v3041, %v3060
    %v3082 = vmul.f32 %v3042, %v3060
    %v3083 = vmul.f32 %v3043, %v3060
    %v3084 = vmul.f32 %v3044, %v3060
    %v3085 = vmul.f32 %v3045, %v3060
    %v3086 = vmul.f32 %v3046, %v3060
    %v3087 = vmul.f32 %v3047, %v3060
    %v3088 = vmul.f32 %v3048, %v3060
    %v3089 = vmul.f32 %v3049, %v3060
    %v3090 = vmul.f32 %v3050, %v3060
    %v3091 = vmul.f32 %v3051, %v3060
    %v3092 = vmul.f32 %v3052, %v3060
    %v3093 = vmul.f32 %v3053, %v3060
    %3126 = vrot.lane.b32.xlu0 %v3062, 96
    %v3127 = vpop.permute.xlu0 %3126
    %3128 = vrot.lane.b32.xlu0 %v3063, 96
    %v3129 = vpop.permute.xlu0 %3128
    %3130 = vrot.lane.b32.xlu0 %v3064, 96
    %v3131 = vpop.permute.xlu0 %3130
    %3132 = vrot.lane.b32.xlu0 %v3065, 96
    %v3133 = vpop.permute.xlu0 %3132
    %3134 = vrot.lane.b32.xlu0 %v3066, 96
    %v3135 = vpop.permute.xlu0 %3134
    %3136 = vrot.lane.b32.xlu0 %v3067, 96
    %v3137 = vpop.permute.xlu0 %3136
    %3138 = vrot.lane.b32.xlu0 %v3068, 96
    %v3139 = vpop.permute.xlu0 %3138
    %3140 = vrot.lane.b32.xlu0 %v3069, 96
    %v3141 = vpop.permute.xlu0 %3140
    %3142 = vrot.lane.b32.xlu0 %v3070, 96
    %v3143 = vpop.permute.xlu0 %3142
    %3144 = vrot.lane.b32.xlu0 %v3071, 96
    %v3145 = vpop.permute.xlu0 %3144
    %3146 = vrot.lane.b32.xlu0 %v3072, 96
    %v3147 = vpop.permute.xlu0 %3146
    %3148 = vrot.lane.b32.xlu0 %v3073, 96
    %v3149 = vpop.permute.xlu0 %3148
    %3150 = vrot.lane.b32.xlu0 %v3074, 96
    %v3151 = vpop.permute.xlu0 %3150
    %3152 = vrot.lane.b32.xlu0 %v3075, 96
    %v3153 = vpop.permute.xlu0 %3152
    %3154 = vrot.lane.b32.xlu0 %v3076, 96
    %v3155 = vpop.permute.xlu0 %3154
    %3156 = vrot.lane.b32.xlu0 %v3077, 96
    %v3157 = vpop.permute.xlu0 %3156
    %3158 = vrot.lane.b32.xlu0 %v3078, 96
    %v3159 = vpop.permute.xlu0 %3158
    %3160 = vrot.lane.b32.xlu0 %v3079, 96
    %v3161 = vpop.permute.xlu0 %3160
    %3162 = vrot.lane.b32.xlu0 %v3080, 96
    %v3163 = vpop.permute.xlu0 %3162
    %3164 = vrot.lane.b32.xlu0 %v3081, 96
    %v3165 = vpop.permute.xlu0 %3164
    %3166 = vrot.lane.b32.xlu0 %v3082, 96
    %v3167 = vpop.permute.xlu0 %3166
    %3168 = vrot.lane.b32.xlu0 %v3083, 96
    %v3169 = vpop.permute.xlu0 %3168
    %3170 = vrot.lane.b32.xlu0 %v3084, 96
    %v3171 = vpop.permute.xlu0 %3170
    %3172 = vrot.lane.b32.xlu0 %v3085, 96
    %v3173 = vpop.permute.xlu0 %3172
    %3174 = vrot.lane.b32.xlu0 %v3086, 96
    %v3175 = vpop.permute.xlu0 %3174
    %3176 = vrot.lane.b32.xlu0 %v3087, 96
    %v3177 = vpop.permute.xlu0 %3176
    %3178 = vrot.lane.b32.xlu0 %v3088, 96
    %v3179 = vpop.permute.xlu0 %3178
    %3180 = vrot.lane.b32.xlu0 %v3089, 96
    %v3181 = vpop.permute.xlu0 %3180
    %3182 = vrot.lane.b32.xlu0 %v3090, 96
    %v3183 = vpop.permute.xlu0 %3182
    %3184 = vrot.lane.b32.xlu0 %v3091, 96
    %v3185 = vpop.permute.xlu0 %3184
    %3186 = vrot.lane.b32.xlu0 %v3092, 96
    %v3187 = vpop.permute.xlu0 %3186
    %3188 = vrot.lane.b32.xlu0 %v3093, 96
    %v3189 = vpop.permute.xlu0 %3188
    %v3222 = vsel %vm153, %v3127, 0.0
    %3223 = vadd.xlane.f32.xlu0 %v3222
    %v3224 = vpop.xlane.xlu0 %3223
    %v3225 = vsel %vm153, %v3129, 0.0
    %3226 = vadd.xlane.f32.xlu0 %v3225
    %v3227 = vpop.xlane.xlu0 %3226
    %v3228 = vsel %vm153, %v3131, 0.0
    %3229 = vadd.xlane.f32.xlu0 %v3228
    %v3230 = vpop.xlane.xlu0 %3229
    %v3231 = vsel %vm153, %v3133, 0.0
    %3232 = vadd.xlane.f32.xlu0 %v3231
    %v3233 = vpop.xlane.xlu0 %3232
    %v3234 = vsel %vm153, %v3135, 0.0
    %3235 = vadd.xlane.f32.xlu0 %v3234
    %v3236 = vpop.xlane.xlu0 %3235
    %v3237 = vsel %vm153, %v3137, 0.0
    %3238 = vadd.xlane.f32.xlu0 %v3237
    %v3239 = vpop.xlane.xlu0 %3238
    %v3240 = vsel %vm153, %v3139, 0.0
    %3241 = vadd.xlane.f32.xlu0 %v3240
    %v3242 = vpop.xlane.xlu0 %3241
    %v3243 = vsel %vm153, %v3141, 0.0
    %3244 = vadd.xlane.f32.xlu0 %v3243
    %v3245 = vpop.xlane.xlu0 %3244
    %v3246 = vsel %vm153, %v3143, 0.0
    %3247 = vadd.xlane.f32.xlu0 %v3246
    %v3248 = vpop.xlane.xlu0 %3247
    %v3249 = vsel %vm153, %v3145, 0.0
    %3250 = vadd.xlane.f32.xlu0 %v3249
    %v3251 = vpop.xlane.xlu0 %3250
    %v3252 = vsel %vm153, %v3147, 0.0
    %3253 = vadd.xlane.f32.xlu0 %v3252
    %v3254 = vpop.xlane.xlu0 %3253
    %v3255 = vsel %vm153, %v3149, 0.0
    %3256 = vadd.xlane.f32.xlu0 %v3255
    %v3257 = vpop.xlane.xlu0 %3256
    %v3258 = vsel %vm153, %v3151, 0.0
    %3259 = vadd.xlane.f32.xlu0 %v3258
    %v3260 = vpop.xlane.xlu0 %3259
    %v3261 = vsel %vm153, %v3153, 0.0
    %3262 = vadd.xlane.f32.xlu0 %v3261
    %v3263 = vpop.xlane.xlu0 %3262
    %v3264 = vsel %vm153, %v3155, 0.0
    %3265 = vadd.xlane.f32.xlu0 %v3264
    %v3266 = vpop.xlane.xlu0 %3265
    %v3267 = vsel %vm153, %v3157, 0.0
    %3268 = vadd.xlane.f32.xlu0 %v3267
    %v3269 = vpop.xlane.xlu0 %3268
    %v3270 = vsel %vm153, %v3159, 0.0
    %3271 = vadd.xlane.f32.xlu0 %v3270
    %v3272 = vpop.xlane.xlu0 %3271
    %v3273 = vsel %vm153, %v3161, 0.0
    %3274 = vadd.xlane.f32.xlu0 %v3273
    %v3275 = vpop.xlane.xlu0 %3274
    %v3276 = vsel %vm153, %v3163, 0.0
    %3277 = vadd.xlane.f32.xlu0 %v3276
    %v3278 = vpop.xlane.xlu0 %3277
    %v3279 = vsel %vm153, %v3165, 0.0
    %3280 = vadd.xlane.f32.xlu0 %v3279
    %v3281 = vpop.xlane.xlu0 %3280
    %v3282 = vsel %vm153, %v3167, 0.0
    %3283 = vadd.xlane.f32.xlu0 %v3282
    %v3284 = vpop.xlane.xlu0 %3283
    %v3285 = vsel %vm153, %v3169, 0.0
    %3286 = vadd.xlane.f32.xlu0 %v3285
    %v3287 = vpop.xlane.xlu0 %3286
    %v3288 = vsel %vm153, %v3171, 0.0
    %3289 = vadd.xlane.f32.xlu0 %v3288
    %v3290 = vpop.xlane.xlu0 %3289
    %v3291 = vsel %vm153, %v3173, 0.0
    %3292 = vadd.xlane.f32.xlu0 %v3291
    %v3293 = vpop.xlane.xlu0 %3292
    %v3294 = vsel %vm153, %v3175, 0.0
    %3295 = vadd.xlane.f32.xlu0 %v3294
    %v3296 = vpop.xlane.xlu0 %3295
    %v3297 = vsel %vm153, %v3177, 0.0
    %3298 = vadd.xlane.f32.xlu0 %v3297
    %v3299 = vpop.xlane.xlu0 %3298
    %v3300 = vsel %vm153, %v3179, 0.0
    %3301 = vadd.xlane.f32.xlu0 %v3300
    %v3302 = vpop.xlane.xlu0 %3301
    %v3303 = vsel %vm153, %v3181, 0.0
    %3304 = vadd.xlane.f32.xlu0 %v3303
    %v3305 = vpop.xlane.xlu0 %3304
    %v3306 = vsel %vm153, %v3183, 0.0
    %3307 = vadd.xlane.f32.xlu0 %v3306
    %v3308 = vpop.xlane.xlu0 %3307
    %v3309 = vsel %vm153, %v3185, 0.0
    %3310 = vadd.xlane.f32.xlu0 %v3309
    %v3311 = vpop.xlane.xlu0 %3310
    %v3312 = vsel %vm153, %v3187, 0.0
    %3313 = vadd.xlane.f32.xlu0 %v3312
    %v3314 = vpop.xlane.xlu0 %3313
    %v3315 = vsel %vm153, %v3189, 0.0
    %3316 = vadd.xlane.f32.xlu0 %v3315
    %v3317 = vpop.xlane.xlu0 %3316
    %v3318 = vlaneseq
    %v3319 = vshrl.u32 %v3318, 7
    %v3320 = vsub.s32 1, %v3319
    %v3321 = vrot.slane %v2653, %v3320
    %3323 = vrot.lane.b32.xlu0 %v3321, 32
    %v3324 = vpop.permute.xlu0 %3323
    %v3326 = vmul.f32 %v3022, %v3324
    %v3327 = vmul.f32 %v3023, %v3324
    %v3328 = vmul.f32 %v3024, %v3324
    %v3329 = vmul.f32 %v3025, %v3324
    %v3330 = vmul.f32 %v3026, %v3324
    %v3331 = vmul.f32 %v3027, %v3324
    %v3332 = vmul.f32 %v3028, %v3324
    %v3333 = vmul.f32 %v3029, %v3324
    %v3334 = vmul.f32 %v3030, %v3324
    %v3335 = vmul.f32 %v3031, %v3324
    %v3336 = vmul.f32 %v3032, %v3324
    %v3337 = vmul.f32 %v3033, %v3324
    %v3338 = vmul.f32 %v3034, %v3324
    %v3339 = vmul.f32 %v3035, %v3324
    %v3340 = vmul.f32 %v3036, %v3324
    %v3341 = vmul.f32 %v3037, %v3324
    %v3342 = vmul.f32 %v3038, %v3324
    %v3343 = vmul.f32 %v3039, %v3324
    %v3344 = vmul.f32 %v3040, %v3324
    %v3345 = vmul.f32 %v3041, %v3324
    %v3346 = vmul.f32 %v3042, %v3324
    %v3347 = vmul.f32 %v3043, %v3324
    %v3348 = vmul.f32 %v3044, %v3324
    %v3349 = vmul.f32 %v3045, %v3324
    %v3350 = vmul.f32 %v3046, %v3324
    %v3351 = vmul.f32 %v3047, %v3324
    %v3352 = vmul.f32 %v3048, %v3324
    %v3353 = vmul.f32 %v3049, %v3324
    %v3354 = vmul.f32 %v3050, %v3324
    %v3355 = vmul.f32 %v3051, %v3324
    %v3356 = vmul.f32 %v3052, %v3324
    %v3357 = vmul.f32 %v3053, %v3324
    %3390 = vrot.lane.b32.xlu0 %v3326, 96
    %v3391 = vpop.permute.xlu0 %3390
    %3392 = vrot.lane.b32.xlu0 %v3327, 96
    %v3393 = vpop.permute.xlu0 %3392
    %3394 = vrot.lane.b32.xlu0 %v3328, 96
    %v3395 = vpop.permute.xlu0 %3394
    %3396 = vrot.lane.b32.xlu0 %v3329, 96
    %v3397 = vpop.permute.xlu0 %3396
    %3398 = vrot.lane.b32.xlu0 %v3330, 96
    %v3399 = vpop.permute.xlu0 %3398
    %3400 = vrot.lane.b32.xlu0 %v3331, 96
    %v3401 = vpop.permute.xlu0 %3400
    %3402 = vrot.lane.b32.xlu0 %v3332, 96
    %v3403 = vpop.permute.xlu0 %3402
    %3404 = vrot.lane.b32.xlu0 %v3333, 96
    %v3405 = vpop.permute.xlu0 %3404
    %3406 = vrot.lane.b32.xlu0 %v3334, 96
    %v3407 = vpop.permute.xlu0 %3406
    %3408 = vrot.lane.b32.xlu0 %v3335, 96
    %v3409 = vpop.permute.xlu0 %3408
    %3410 = vrot.lane.b32.xlu0 %v3336, 96
    %v3411 = vpop.permute.xlu0 %3410
    %3412 = vrot.lane.b32.xlu0 %v3337, 96
    %v3413 = vpop.permute.xlu0 %3412
    %3414 = vrot.lane.b32.xlu0 %v3338, 96
    %v3415 = vpop.permute.xlu0 %3414
    %3416 = vrot.lane.b32.xlu0 %v3339, 96
    %v3417 = vpop.permute.xlu0 %3416
    %3418 = vrot.lane.b32.xlu0 %v3340, 96
    %v3419 = vpop.permute.xlu0 %3418
    %3420 = vrot.lane.b32.xlu0 %v3341, 96
    %v3421 = vpop.permute.xlu0 %3420
    %3422 = vrot.lane.b32.xlu0 %v3342, 96
    %v3423 = vpop.permute.xlu0 %3422
    %3424 = vrot.lane.b32.xlu0 %v3343, 96
    %v3425 = vpop.permute.xlu0 %3424
    %3426 = vrot.lane.b32.xlu0 %v3344, 96
    %v3427 = vpop.permute.xlu0 %3426
    %3428 = vrot.lane.b32.xlu0 %v3345, 96
    %v3429 = vpop.permute.xlu0 %3428
    %3430 = vrot.lane.b32.xlu0 %v3346, 96
    %v3431 = vpop.permute.xlu0 %3430
    %3432 = vrot.lane.b32.xlu0 %v3347, 96
    %v3433 = vpop.permute.xlu0 %3432
    %3434 = vrot.lane.b32.xlu0 %v3348, 96
    %v3435 = vpop.permute.xlu0 %3434
    %3436 = vrot.lane.b32.xlu0 %v3349, 96
    %v3437 = vpop.permute.xlu0 %3436
    %3438 = vrot.lane.b32.xlu0 %v3350, 96
    %v3439 = vpop.permute.xlu0 %3438
    %3440 = vrot.lane.b32.xlu0 %v3351, 96
    %v3441 = vpop.permute.xlu0 %3440
    %3442 = vrot.lane.b32.xlu0 %v3352, 96
    %v3443 = vpop.permute.xlu0 %3442
    %3444 = vrot.lane.b32.xlu0 %v3353, 96
    %v3445 = vpop.permute.xlu0 %3444
    %3446 = vrot.lane.b32.xlu0 %v3354, 96
    %v3447 = vpop.permute.xlu0 %3446
    %3448 = vrot.lane.b32.xlu0 %v3355, 96
    %v3449 = vpop.permute.xlu0 %3448
    %3450 = vrot.lane.b32.xlu0 %v3356, 96
    %v3451 = vpop.permute.xlu0 %3450
    %3452 = vrot.lane.b32.xlu0 %v3357, 96
    %v3453 = vpop.permute.xlu0 %3452
    %v3486 = vsel %vm153, %v3391, 0.0
    %3487 = vadd.xlane.f32.xlu0 %v3486
    %v3488 = vpop.xlane.xlu0 %3487
    %v3489 = vsel %vm153, %v3393, 0.0
    %3490 = vadd.xlane.f32.xlu0 %v3489
    %v3491 = vpop.xlane.xlu0 %3490
    %v3492 = vsel %vm153, %v3395, 0.0
    %3493 = vadd.xlane.f32.xlu0 %v3492
    %v3494 = vpop.xlane.xlu0 %3493
    %v3495 = vsel %vm153, %v3397, 0.0
    %3496 = vadd.xlane.f32.xlu0 %v3495
    %v3497 = vpop.xlane.xlu0 %3496
    %v3498 = vsel %vm153, %v3399, 0.0
    %3499 = vadd.xlane.f32.xlu0 %v3498
    %v3500 = vpop.xlane.xlu0 %3499
    %v3501 = vsel %vm153, %v3401, 0.0
    %3502 = vadd.xlane.f32.xlu0 %v3501
    %v3503 = vpop.xlane.xlu0 %3502
    %v3504 = vsel %vm153, %v3403, 0.0
    %3505 = vadd.xlane.f32.xlu0 %v3504
    %v3506 = vpop.xlane.xlu0 %3505
    %v3507 = vsel %vm153, %v3405, 0.0
    %3508 = vadd.xlane.f32.xlu0 %v3507
    %v3509 = vpop.xlane.xlu0 %3508
    %v3510 = vsel %vm153, %v3407, 0.0
    %3511 = vadd.xlane.f32.xlu0 %v3510
    %v3512 = vpop.xlane.xlu0 %3511
    %v3513 = vsel %vm153, %v3409, 0.0
    %3514 = vadd.xlane.f32.xlu0 %v3513
    %v3515 = vpop.xlane.xlu0 %3514
    %v3516 = vsel %vm153, %v3411, 0.0
    %3517 = vadd.xlane.f32.xlu0 %v3516
    %v3518 = vpop.xlane.xlu0 %3517
    %v3519 = vsel %vm153, %v3413, 0.0
    %3520 = vadd.xlane.f32.xlu0 %v3519
    %v3521 = vpop.xlane.xlu0 %3520
    %v3522 = vsel %vm153, %v3415, 0.0
    %3523 = vadd.xlane.f32.xlu0 %v3522
    %v3524 = vpop.xlane.xlu0 %3523
    %v3525 = vsel %vm153, %v3417, 0.0
    %3526 = vadd.xlane.f32.xlu0 %v3525
    %v3527 = vpop.xlane.xlu0 %3526
    %v3528 = vsel %vm153, %v3419, 0.0
    %3529 = vadd.xlane.f32.xlu0 %v3528
    %v3530 = vpop.xlane.xlu0 %3529
    %v3531 = vsel %vm153, %v3421, 0.0
    %3532 = vadd.xlane.f32.xlu0 %v3531
    %v3533 = vpop.xlane.xlu0 %3532
    %v3534 = vsel %vm153, %v3423, 0.0
    %3535 = vadd.xlane.f32.xlu0 %v3534
    %v3536 = vpop.xlane.xlu0 %3535
    %v3537 = vsel %vm153, %v3425, 0.0
    %3538 = vadd.xlane.f32.xlu0 %v3537
    %v3539 = vpop.xlane.xlu0 %3538
    %v3540 = vsel %vm153, %v3427, 0.0
    %3541 = vadd.xlane.f32.xlu0 %v3540
    %v3542 = vpop.xlane.xlu0 %3541
    %v3543 = vsel %vm153, %v3429, 0.0
    %3544 = vadd.xlane.f32.xlu0 %v3543
    %v3545 = vpop.xlane.xlu0 %3544
    %v3546 = vsel %vm153, %v3431, 0.0
    %3547 = vadd.xlane.f32.xlu0 %v3546
    %v3548 = vpop.xlane.xlu0 %3547
    %v3549 = vsel %vm153, %v3433, 0.0
    %3550 = vadd.xlane.f32.xlu0 %v3549
    %v3551 = vpop.xlane.xlu0 %3550
    %v3552 = vsel %vm153, %v3435, 0.0
    %3553 = vadd.xlane.f32.xlu0 %v3552
    %v3554 = vpop.xlane.xlu0 %3553
    %v3555 = vsel %vm153, %v3437, 0.0
    %3556 = vadd.xlane.f32.xlu0 %v3555
    %v3557 = vpop.xlane.xlu0 %3556
    %v3558 = vsel %vm153, %v3439, 0.0
    %3559 = vadd.xlane.f32.xlu0 %v3558
    %v3560 = vpop.xlane.xlu0 %3559
    %v3561 = vsel %vm153, %v3441, 0.0
    %3562 = vadd.xlane.f32.xlu0 %v3561
    %v3563 = vpop.xlane.xlu0 %3562
    %v3564 = vsel %vm153, %v3443, 0.0
    %3565 = vadd.xlane.f32.xlu0 %v3564
    %v3566 = vpop.xlane.xlu0 %3565
    %v3567 = vsel %vm153, %v3445, 0.0
    %3568 = vadd.xlane.f32.xlu0 %v3567
    %v3569 = vpop.xlane.xlu0 %3568
    %v3570 = vsel %vm153, %v3447, 0.0
    %3571 = vadd.xlane.f32.xlu0 %v3570
    %v3572 = vpop.xlane.xlu0 %3571
    %v3573 = vsel %vm153, %v3449, 0.0
    %3574 = vadd.xlane.f32.xlu0 %v3573
    %v3575 = vpop.xlane.xlu0 %3574
    %v3576 = vsel %vm153, %v3451, 0.0
    %3577 = vadd.xlane.f32.xlu0 %v3576
    %v3578 = vpop.xlane.xlu0 %3577
    %v3579 = vsel %vm153, %v3453, 0.0
    %3580 = vadd.xlane.f32.xlu0 %v3579
    %v3581 = vpop.xlane.xlu0 %3580
    %v3582 = vlaneseq
    %v3583 = vshrl.u32 %v3582, 7
    %v3584 = vsub.s32 2, %v3583
    %v3585 = vrot.slane %v2653, %v3584
    %3587 = vrot.lane.b32.xlu0 %v3585, 32
    %v3588 = vpop.permute.xlu0 %3587
    %v3590 = vmul.f32 %v3022, %v3588
    %v3591 = vmul.f32 %v3023, %v3588
    %v3592 = vmul.f32 %v3024, %v3588
    %v3593 = vmul.f32 %v3025, %v3588
    %v3594 = vmul.f32 %v3026, %v3588
    %v3595 = vmul.f32 %v3027, %v3588
    %v3596 = vmul.f32 %v3028, %v3588
    %v3597 = vmul.f32 %v3029, %v3588
    %v3598 = vmul.f32 %v3030, %v3588
    %v3599 = vmul.f32 %v3031, %v3588
    %v3600 = vmul.f32 %v3032, %v3588
    %v3601 = vmul.f32 %v3033, %v3588
    %v3602 = vmul.f32 %v3034, %v3588
    %v3603 = vmul.f32 %v3035, %v3588
    %v3604 = vmul.f32 %v3036, %v3588
    %v3605 = vmul.f32 %v3037, %v3588
    %v3606 = vmul.f32 %v3038, %v3588
    %v3607 = vmul.f32 %v3039, %v3588
    %v3608 = vmul.f32 %v3040, %v3588
    %v3609 = vmul.f32 %v3041, %v3588
    %v3610 = vmul.f32 %v3042, %v3588
    %v3611 = vmul.f32 %v3043, %v3588
    %v3612 = vmul.f32 %v3044, %v3588
    %v3613 = vmul.f32 %v3045, %v3588
    %v3614 = vmul.f32 %v3046, %v3588
    %v3615 = vmul.f32 %v3047, %v3588
    %v3616 = vmul.f32 %v3048, %v3588
    %v3617 = vmul.f32 %v3049, %v3588
    %v3618 = vmul.f32 %v3050, %v3588
    %v3619 = vmul.f32 %v3051, %v3588
    %v3620 = vmul.f32 %v3052, %v3588
    %v3621 = vmul.f32 %v3053, %v3588
    %3654 = vrot.lane.b32.xlu0 %v3590, 96
    %v3655 = vpop.permute.xlu0 %3654
    %3656 = vrot.lane.b32.xlu0 %v3591, 96
    %v3657 = vpop.permute.xlu0 %3656
    %3658 = vrot.lane.b32.xlu0 %v3592, 96
    %v3659 = vpop.permute.xlu0 %3658
    %3660 = vrot.lane.b32.xlu0 %v3593, 96
    %v3661 = vpop.permute.xlu0 %3660
    %3662 = vrot.lane.b32.xlu0 %v3594, 96
    %v3663 = vpop.permute.xlu0 %3662
    %3664 = vrot.lane.b32.xlu0 %v3595, 96
    %v3665 = vpop.permute.xlu0 %3664
    %3666 = vrot.lane.b32.xlu0 %v3596, 96
    %v3667 = vpop.permute.xlu0 %3666
    %3668 = vrot.lane.b32.xlu0 %v3597, 96
    %v3669 = vpop.permute.xlu0 %3668
    %3670 = vrot.lane.b32.xlu0 %v3598, 96
    %v3671 = vpop.permute.xlu0 %3670
    %3672 = vrot.lane.b32.xlu0 %v3599, 96
    %v3673 = vpop.permute.xlu0 %3672
    %3674 = vrot.lane.b32.xlu0 %v3600, 96
    %v3675 = vpop.permute.xlu0 %3674
    %3676 = vrot.lane.b32.xlu0 %v3601, 96
    %v3677 = vpop.permute.xlu0 %3676
    %3678 = vrot.lane.b32.xlu0 %v3602, 96
    %v3679 = vpop.permute.xlu0 %3678
    %3680 = vrot.lane.b32.xlu0 %v3603, 96
    %v3681 = vpop.permute.xlu0 %3680
    %3682 = vrot.lane.b32.xlu0 %v3604, 96
    %v3683 = vpop.permute.xlu0 %3682
    %3684 = vrot.lane.b32.xlu0 %v3605, 96
    %v3685 = vpop.permute.xlu0 %3684
    %3686 = vrot.lane.b32.xlu0 %v3606, 96
    %v3687 = vpop.permute.xlu0 %3686
    %3688 = vrot.lane.b32.xlu0 %v3607, 96
    %v3689 = vpop.permute.xlu0 %3688
    %3690 = vrot.lane.b32.xlu0 %v3608, 96
    %v3691 = vpop.permute.xlu0 %3690
    %3692 = vrot.lane.b32.xlu0 %v3609, 96
    %v3693 = vpop.permute.xlu0 %3692
    %3694 = vrot.lane.b32.xlu0 %v3610, 96
    %v3695 = vpop.permute.xlu0 %3694
    %3696 = vrot.lane.b32.xlu0 %v3611, 96
    %v3697 = vpop.permute.xlu0 %3696
    %3698 = vrot.lane.b32.xlu0 %v3612, 96
    %v3699 = vpop.permute.xlu0 %3698
    %3700 = vrot.lane.b32.xlu0 %v3613, 96
    %v3701 = vpop.permute.xlu0 %3700
    %3702 = vrot.lane.b32.xlu0 %v3614, 96
    %v3703 = vpop.permute.xlu0 %3702
    %3704 = vrot.lane.b32.xlu0 %v3615, 96
    %v3705 = vpop.permute.xlu0 %3704
    %3706 = vrot.lane.b32.xlu0 %v3616, 96
    %v3707 = vpop.permute.xlu0 %3706
    %3708 = vrot.lane.b32.xlu0 %v3617, 96
    %v3709 = vpop.permute.xlu0 %3708
    %3710 = vrot.lane.b32.xlu0 %v3618, 96
    %v3711 = vpop.permute.xlu0 %3710
    %3712 = vrot.lane.b32.xlu0 %v3619, 96
    %v3713 = vpop.permute.xlu0 %3712
    %3714 = vrot.lane.b32.xlu0 %v3620, 96
    %v3715 = vpop.permute.xlu0 %3714
    %3716 = vrot.lane.b32.xlu0 %v3621, 96
    %v3717 = vpop.permute.xlu0 %3716
    %v3750 = vsel %vm153, %v3655, 0.0
    %3751 = vadd.xlane.f32.xlu0 %v3750
    %v3752 = vpop.xlane.xlu0 %3751
    %v3753 = vsel %vm153, %v3657, 0.0
    %3754 = vadd.xlane.f32.xlu0 %v3753
    %v3755 = vpop.xlane.xlu0 %3754
    %v3756 = vsel %vm153, %v3659, 0.0
    %3757 = vadd.xlane.f32.xlu0 %v3756
    %v3758 = vpop.xlane.xlu0 %3757
    %v3759 = vsel %vm153, %v3661, 0.0
    %3760 = vadd.xlane.f32.xlu0 %v3759
    %v3761 = vpop.xlane.xlu0 %3760
    %v3762 = vsel %vm153, %v3663, 0.0
    %3763 = vadd.xlane.f32.xlu0 %v3762
    %v3764 = vpop.xlane.xlu0 %3763
    %v3765 = vsel %vm153, %v3665, 0.0
    %3766 = vadd.xlane.f32.xlu0 %v3765
    %v3767 = vpop.xlane.xlu0 %3766
    %v3768 = vsel %vm153, %v3667, 0.0
    %3769 = vadd.xlane.f32.xlu0 %v3768
    %v3770 = vpop.xlane.xlu0 %3769
    %v3771 = vsel %vm153, %v3669, 0.0
    %3772 = vadd.xlane.f32.xlu0 %v3771
    %v3773 = vpop.xlane.xlu0 %3772
    %v3774 = vsel %vm153, %v3671, 0.0
    %3775 = vadd.xlane.f32.xlu0 %v3774
    %v3776 = vpop.xlane.xlu0 %3775
    %v3777 = vsel %vm153, %v3673, 0.0
    %3778 = vadd.xlane.f32.xlu0 %v3777
    %v3779 = vpop.xlane.xlu0 %3778
    %v3780 = vsel %vm153, %v3675, 0.0
    %3781 = vadd.xlane.f32.xlu0 %v3780
    %v3782 = vpop.xlane.xlu0 %3781
    %v3783 = vsel %vm153, %v3677, 0.0
    %3784 = vadd.xlane.f32.xlu0 %v3783
    %v3785 = vpop.xlane.xlu0 %3784
    %v3786 = vsel %vm153, %v3679, 0.0
    %3787 = vadd.xlane.f32.xlu0 %v3786
    %v3788 = vpop.xlane.xlu0 %3787
    %v3789 = vsel %vm153, %v3681, 0.0
    %3790 = vadd.xlane.f32.xlu0 %v3789
    %v3791 = vpop.xlane.xlu0 %3790
    %v3792 = vsel %vm153, %v3683, 0.0
    %3793 = vadd.xlane.f32.xlu0 %v3792
    %v3794 = vpop.xlane.xlu0 %3793
    %v3795 = vsel %vm153, %v3685, 0.0
    %3796 = vadd.xlane.f32.xlu0 %v3795
    %v3797 = vpop.xlane.xlu0 %3796
    %v3798 = vsel %vm153, %v3687, 0.0
    %3799 = vadd.xlane.f32.xlu0 %v3798
    %v3800 = vpop.xlane.xlu0 %3799
    %v3801 = vsel %vm153, %v3689, 0.0
    %3802 = vadd.xlane.f32.xlu0 %v3801
    %v3803 = vpop.xlane.xlu0 %3802
    %v3804 = vsel %vm153, %v3691, 0.0
    %3805 = vadd.xlane.f32.xlu0 %v3804
    %v3806 = vpop.xlane.xlu0 %3805
    %v3807 = vsel %vm153, %v3693, 0.0
    %3808 = vadd.xlane.f32.xlu0 %v3807
    %v3809 = vpop.xlane.xlu0 %3808
    %v3810 = vsel %vm153, %v3695, 0.0
    %3811 = vadd.xlane.f32.xlu0 %v3810
    %v3812 = vpop.xlane.xlu0 %3811
    %v3813 = vsel %vm153, %v3697, 0.0
    %3814 = vadd.xlane.f32.xlu0 %v3813
    %v3815 = vpop.xlane.xlu0 %3814
    %v3816 = vsel %vm153, %v3699, 0.0
    %3817 = vadd.xlane.f32.xlu0 %v3816
    %v3818 = vpop.xlane.xlu0 %3817
    %v3819 = vsel %vm153, %v3701, 0.0
    %3820 = vadd.xlane.f32.xlu0 %v3819
    %v3821 = vpop.xlane.xlu0 %3820
    %v3822 = vsel %vm153, %v3703, 0.0
    %3823 = vadd.xlane.f32.xlu0 %v3822
    %v3824 = vpop.xlane.xlu0 %3823
    %v3825 = vsel %vm153, %v3705, 0.0
    %3826 = vadd.xlane.f32.xlu0 %v3825
    %v3827 = vpop.xlane.xlu0 %3826
    %v3828 = vsel %vm153, %v3707, 0.0
    %3829 = vadd.xlane.f32.xlu0 %v3828
    %v3830 = vpop.xlane.xlu0 %3829
    %v3831 = vsel %vm153, %v3709, 0.0
    %3832 = vadd.xlane.f32.xlu0 %v3831
    %v3833 = vpop.xlane.xlu0 %3832
    %v3834 = vsel %vm153, %v3711, 0.0
    %3835 = vadd.xlane.f32.xlu0 %v3834
    %v3836 = vpop.xlane.xlu0 %3835
    %v3837 = vsel %vm153, %v3713, 0.0
    %3838 = vadd.xlane.f32.xlu0 %v3837
    %v3839 = vpop.xlane.xlu0 %3838
    %v3840 = vsel %vm153, %v3715, 0.0
    %3841 = vadd.xlane.f32.xlu0 %v3840
    %v3842 = vpop.xlane.xlu0 %3841
    %v3843 = vsel %vm153, %v3717, 0.0
    %3844 = vadd.xlane.f32.xlu0 %v3843
    %v3845 = vpop.xlane.xlu0 %3844
    %v3846 = vlaneseq
    %v3847 = vshrl.u32 %v3846, 7
    %v3848 = vsub.s32 3, %v3847
    %v3849 = vrot.slane %v2653, %v3848
    %3851 = vrot.lane.b32.xlu0 %v3849, 32
    %v3852 = vpop.permute.xlu0 %3851
    %v3854 = vmul.f32 %v3022, %v3852
    %v3855 = vmul.f32 %v3023, %v3852
    %v3856 = vmul.f32 %v3024, %v3852
    %v3857 = vmul.f32 %v3025, %v3852
    %v3858 = vmul.f32 %v3026, %v3852
    %v3859 = vmul.f32 %v3027, %v3852
    %v3860 = vmul.f32 %v3028, %v3852
    %v3861 = vmul.f32 %v3029, %v3852
    %v3862 = vmul.f32 %v3030, %v3852
    %v3863 = vmul.f32 %v3031, %v3852
    %v3864 = vmul.f32 %v3032, %v3852
    %v3865 = vmul.f32 %v3033, %v3852
    %v3866 = vmul.f32 %v3034, %v3852
    %v3867 = vmul.f32 %v3035, %v3852
    %v3868 = vmul.f32 %v3036, %v3852
    %v3869 = vmul.f32 %v3037, %v3852
    %v3870 = vmul.f32 %v3038, %v3852
    %v3871 = vmul.f32 %v3039, %v3852
    %v3872 = vmul.f32 %v3040, %v3852
    %v3873 = vmul.f32 %v3041, %v3852
    %v3874 = vmul.f32 %v3042, %v3852
    %v3875 = vmul.f32 %v3043, %v3852
    %v3876 = vmul.f32 %v3044, %v3852
    %v3877 = vmul.f32 %v3045, %v3852
    %v3878 = vmul.f32 %v3046, %v3852
    %v3879 = vmul.f32 %v3047, %v3852
    %v3880 = vmul.f32 %v3048, %v3852
    %v3881 = vmul.f32 %v3049, %v3852
    %v3882 = vmul.f32 %v3050, %v3852
    %v3883 = vmul.f32 %v3051, %v3852
    %v3884 = vmul.f32 %v3052, %v3852
    %v3885 = vmul.f32 %v3053, %v3852
    %3918 = vrot.lane.b32.xlu0 %v3854, 96
    %v3919 = vpop.permute.xlu0 %3918
    %3920 = vrot.lane.b32.xlu0 %v3855, 96
    %v3921 = vpop.permute.xlu0 %3920
    %3922 = vrot.lane.b32.xlu0 %v3856, 96
    %v3923 = vpop.permute.xlu0 %3922
    %3924 = vrot.lane.b32.xlu0 %v3857, 96
    %v3925 = vpop.permute.xlu0 %3924
    %3926 = vrot.lane.b32.xlu0 %v3858, 96
    %v3927 = vpop.permute.xlu0 %3926
    %3928 = vrot.lane.b32.xlu0 %v3859, 96
    %v3929 = vpop.permute.xlu0 %3928
    %3930 = vrot.lane.b32.xlu0 %v3860, 96
    %v3931 = vpop.permute.xlu0 %3930
    %3932 = vrot.lane.b32.xlu0 %v3861, 96
    %v3933 = vpop.permute.xlu0 %3932
    %3934 = vrot.lane.b32.xlu0 %v3862, 96
    %v3935 = vpop.permute.xlu0 %3934
    %3936 = vrot.lane.b32.xlu0 %v3863, 96
    %v3937 = vpop.permute.xlu0 %3936
    %3938 = vrot.lane.b32.xlu0 %v3864, 96
    %v3939 = vpop.permute.xlu0 %3938
    %3940 = vrot.lane.b32.xlu0 %v3865, 96
    %v3941 = vpop.permute.xlu0 %3940
    %3942 = vrot.lane.b32.xlu0 %v3866, 96
    %v3943 = vpop.permute.xlu0 %3942
    %3944 = vrot.lane.b32.xlu0 %v3867, 96
    %v3945 = vpop.permute.xlu0 %3944
    %3946 = vrot.lane.b32.xlu0 %v3868, 96
    %v3947 = vpop.permute.xlu0 %3946
    %3948 = vrot.lane.b32.xlu0 %v3869, 96
    %v3949 = vpop.permute.xlu0 %3948
    %3950 = vrot.lane.b32.xlu0 %v3870, 96
    %v3951 = vpop.permute.xlu0 %3950
    %3952 = vrot.lane.b32.xlu0 %v3871, 96
    %v3953 = vpop.permute.xlu0 %3952
    %3954 = vrot.lane.b32.xlu0 %v3872, 96
    %v3955 = vpop.permute.xlu0 %3954
    %3956 = vrot.lane.b32.xlu0 %v3873, 96
    %v3957 = vpop.permute.xlu0 %3956
    %3958 = vrot.lane.b32.xlu0 %v3874, 96
    %v3959 = vpop.permute.xlu0 %3958
    %3960 = vrot.lane.b32.xlu0 %v3875, 96
    %v3961 = vpop.permute.xlu0 %3960
    %3962 = vrot.lane.b32.xlu0 %v3876, 96
    %v3963 = vpop.permute.xlu0 %3962
    %3964 = vrot.lane.b32.xlu0 %v3877, 96
    %v3965 = vpop.permute.xlu0 %3964
    %3966 = vrot.lane.b32.xlu0 %v3878, 96
    %v3967 = vpop.permute.xlu0 %3966
    %3968 = vrot.lane.b32.xlu0 %v3879, 96
    %v3969 = vpop.permute.xlu0 %3968
    %3970 = vrot.lane.b32.xlu0 %v3880, 96
    %v3971 = vpop.permute.xlu0 %3970
    %3972 = vrot.lane.b32.xlu0 %v3881, 96
    %v3973 = vpop.permute.xlu0 %3972
    %3974 = vrot.lane.b32.xlu0 %v3882, 96
    %v3975 = vpop.permute.xlu0 %3974
    %3976 = vrot.lane.b32.xlu0 %v3883, 96
    %v3977 = vpop.permute.xlu0 %3976
    %3978 = vrot.lane.b32.xlu0 %v3884, 96
    %v3979 = vpop.permute.xlu0 %3978
    %3980 = vrot.lane.b32.xlu0 %v3885, 96
    %v3981 = vpop.permute.xlu0 %3980
    %v4014 = vsel %vm153, %v3919, 0.0
    %4015 = vadd.xlane.f32.xlu0 %v4014
    %v4016 = vpop.xlane.xlu0 %4015
    %v4017 = vsel %vm153, %v3921, 0.0
    %4018 = vadd.xlane.f32.xlu0 %v4017
    %v4019 = vpop.xlane.xlu0 %4018
    %v4020 = vsel %vm153, %v3923, 0.0
    %4021 = vadd.xlane.f32.xlu0 %v4020
    %v4022 = vpop.xlane.xlu0 %4021
    %v4023 = vsel %vm153, %v3925, 0.0
    %4024 = vadd.xlane.f32.xlu0 %v4023
    %v4025 = vpop.xlane.xlu0 %4024
    %v4026 = vsel %vm153, %v3927, 0.0
    %4027 = vadd.xlane.f32.xlu0 %v4026
    %v4028 = vpop.xlane.xlu0 %4027
    %v4029 = vsel %vm153, %v3929, 0.0
    %4030 = vadd.xlane.f32.xlu0 %v4029
    %v4031 = vpop.xlane.xlu0 %4030
    %v4032 = vsel %vm153, %v3931, 0.0
    %4033 = vadd.xlane.f32.xlu0 %v4032
    %v4034 = vpop.xlane.xlu0 %4033
    %v4035 = vsel %vm153, %v3933, 0.0
    %4036 = vadd.xlane.f32.xlu0 %v4035
    %v4037 = vpop.xlane.xlu0 %4036
    %v4038 = vsel %vm153, %v3935, 0.0
    %4039 = vadd.xlane.f32.xlu0 %v4038
    %v4040 = vpop.xlane.xlu0 %4039
    %v4041 = vsel %vm153, %v3937, 0.0
    %4042 = vadd.xlane.f32.xlu0 %v4041
    %v4043 = vpop.xlane.xlu0 %4042
    %v4044 = vsel %vm153, %v3939, 0.0
    %4045 = vadd.xlane.f32.xlu0 %v4044
    %v4046 = vpop.xlane.xlu0 %4045
    %v4047 = vsel %vm153, %v3941, 0.0
    %4048 = vadd.xlane.f32.xlu0 %v4047
    %v4049 = vpop.xlane.xlu0 %4048
    %v4050 = vsel %vm153, %v3943, 0.0
    %4051 = vadd.xlane.f32.xlu0 %v4050
    %v4052 = vpop.xlane.xlu0 %4051
    %v4053 = vsel %vm153, %v3945, 0.0
    %4054 = vadd.xlane.f32.xlu0 %v4053
    %v4055 = vpop.xlane.xlu0 %4054
    %v4056 = vsel %vm153, %v3947, 0.0
    %4057 = vadd.xlane.f32.xlu0 %v4056
    %v4058 = vpop.xlane.xlu0 %4057
    %v4059 = vsel %vm153, %v3949, 0.0
    %4060 = vadd.xlane.f32.xlu0 %v4059
    %v4061 = vpop.xlane.xlu0 %4060
    %v4062 = vsel %vm153, %v3951, 0.0
    %4063 = vadd.xlane.f32.xlu0 %v4062
    %v4064 = vpop.xlane.xlu0 %4063
    %v4065 = vsel %vm153, %v3953, 0.0
    %4066 = vadd.xlane.f32.xlu0 %v4065
    %v4067 = vpop.xlane.xlu0 %4066
    %v4068 = vsel %vm153, %v3955, 0.0
    %4069 = vadd.xlane.f32.xlu0 %v4068
    %v4070 = vpop.xlane.xlu0 %4069
    %v4071 = vsel %vm153, %v3957, 0.0
    %4072 = vadd.xlane.f32.xlu0 %v4071
    %v4073 = vpop.xlane.xlu0 %4072
    %v4074 = vsel %vm153, %v3959, 0.0
    %4075 = vadd.xlane.f32.xlu0 %v4074
    %v4076 = vpop.xlane.xlu0 %4075
    %v4077 = vsel %vm153, %v3961, 0.0
    %4078 = vadd.xlane.f32.xlu0 %v4077
    %v4079 = vpop.xlane.xlu0 %4078
    %v4080 = vsel %vm153, %v3963, 0.0
    %4081 = vadd.xlane.f32.xlu0 %v4080
    %v4082 = vpop.xlane.xlu0 %4081
    %v4083 = vsel %vm153, %v3965, 0.0
    %4084 = vadd.xlane.f32.xlu0 %v4083
    %v4085 = vpop.xlane.xlu0 %4084
    %v4086 = vsel %vm153, %v3967, 0.0
    %4087 = vadd.xlane.f32.xlu0 %v4086
    %v4088 = vpop.xlane.xlu0 %4087
    %v4089 = vsel %vm153, %v3969, 0.0
    %4090 = vadd.xlane.f32.xlu0 %v4089
    %v4091 = vpop.xlane.xlu0 %4090
    %v4092 = vsel %vm153, %v3971, 0.0
    %4093 = vadd.xlane.f32.xlu0 %v4092
    %v4094 = vpop.xlane.xlu0 %4093
    %v4095 = vsel %vm153, %v3973, 0.0
    %4096 = vadd.xlane.f32.xlu0 %v4095
    %v4097 = vpop.xlane.xlu0 %4096
    %v4098 = vsel %vm153, %v3975, 0.0
    %4099 = vadd.xlane.f32.xlu0 %v4098
    %v4100 = vpop.xlane.xlu0 %4099
    %v4101 = vsel %vm153, %v3977, 0.0
    %4102 = vadd.xlane.f32.xlu0 %v4101
    %v4103 = vpop.xlane.xlu0 %4102
    %v4104 = vsel %vm153, %v3979, 0.0
    %4105 = vadd.xlane.f32.xlu0 %v4104
    %v4106 = vpop.xlane.xlu0 %4105
    %v4107 = vsel %vm153, %v3981, 0.0
    %4108 = vadd.xlane.f32.xlu0 %v4107
    %v4109 = vpop.xlane.xlu0 %4108
    %v4142 = vlaneseq
    %v4143 = vshrl.u32 %v4142, 7
    %v4144 = vsub.s32 %v1638, %v4143
    %v4145 = vrot.slane %v3224, %v4144
    %v4146 = vlaneseq
    %v4147 = vshrl.u32 %v4146, 7
    %v4148 = vsub.s32 %v1643, %v4147
    %v4149 = vrot.slane %v3227, %v4148
    %v4150 = vsel %vm1648, %v4149, %v4145
    %v4151 = vlaneseq
    %v4152 = vshrl.u32 %v4151, 7
    %v4153 = vsub.s32 %v1638, %v4152
    %v4154 = vrot.slane %v3230, %v4153
    %v4155 = vlaneseq
    %v4156 = vshrl.u32 %v4155, 7
    %v4157 = vsub.s32 %v1643, %v4156
    %v4158 = vrot.slane %v3233, %v4157
    %v4159 = vsel %vm1648, %v4158, %v4154
    %v4160 = vlaneseq
    %v4161 = vshrl.u32 %v4160, 7
    %v4162 = vsub.s32 %v1638, %v4161
    %v4163 = vrot.slane %v3236, %v4162
    %v4164 = vlaneseq
    %v4165 = vshrl.u32 %v4164, 7
    %v4166 = vsub.s32 %v1643, %v4165
    %v4167 = vrot.slane %v3239, %v4166
    %v4168 = vsel %vm1648, %v4167, %v4163
    %v4169 = vlaneseq
    %v4170 = vshrl.u32 %v4169, 7
    %v4171 = vsub.s32 %v1638, %v4170
    %v4172 = vrot.slane %v3242, %v4171
    %v4173 = vlaneseq
    %v4174 = vshrl.u32 %v4173, 7
    %v4175 = vsub.s32 %v1643, %v4174
    %v4176 = vrot.slane %v3245, %v4175
    %v4177 = vsel %vm1648, %v4176, %v4172
    %v4178 = vlaneseq
    %v4179 = vshrl.u32 %v4178, 7
    %v4180 = vsub.s32 %v1638, %v4179
    %v4181 = vrot.slane %v3248, %v4180
    %v4182 = vlaneseq
    %v4183 = vshrl.u32 %v4182, 7
    %v4184 = vsub.s32 %v1643, %v4183
    %v4185 = vrot.slane %v3251, %v4184
    %v4186 = vsel %vm1648, %v4185, %v4181
    %v4187 = vlaneseq
    %v4188 = vshrl.u32 %v4187, 7
    %v4189 = vsub.s32 %v1638, %v4188
    %v4190 = vrot.slane %v3254, %v4189
    %v4191 = vlaneseq
    %v4192 = vshrl.u32 %v4191, 7
    %v4193 = vsub.s32 %v1643, %v4192
    %v4194 = vrot.slane %v3257, %v4193
    %v4195 = vsel %vm1648, %v4194, %v4190
    %v4196 = vlaneseq
    %v4197 = vshrl.u32 %v4196, 7
    %v4198 = vsub.s32 %v1638, %v4197
    %v4199 = vrot.slane %v3260, %v4198
    %v4200 = vlaneseq
    %v4201 = vshrl.u32 %v4200, 7
    %v4202 = vsub.s32 %v1643, %v4201
    %v4203 = vrot.slane %v3263, %v4202
    %v4204 = vsel %vm1648, %v4203, %v4199
    %v4205 = vlaneseq
    %v4206 = vshrl.u32 %v4205, 7
    %v4207 = vsub.s32 %v1638, %v4206
    %v4208 = vrot.slane %v3266, %v4207
    %v4209 = vlaneseq
    %v4210 = vshrl.u32 %v4209, 7
    %v4211 = vsub.s32 %v1643, %v4210
    %v4212 = vrot.slane %v3269, %v4211
    %v4213 = vsel %vm1648, %v4212, %v4208
    %v4214 = vlaneseq
    %v4215 = vshrl.u32 %v4214, 7
    %v4216 = vsub.s32 %v1638, %v4215
    %v4217 = vrot.slane %v3272, %v4216
    %v4218 = vlaneseq
    %v4219 = vshrl.u32 %v4218, 7
    %v4220 = vsub.s32 %v1643, %v4219
    %v4221 = vrot.slane %v3275, %v4220
    %v4222 = vsel %vm1648, %v4221, %v4217
    %v4223 = vlaneseq
    %v4224 = vshrl.u32 %v4223, 7
    %v4225 = vsub.s32 %v1638, %v4224
    %v4226 = vrot.slane %v3278, %v4225
    %v4227 = vlaneseq
    %v4228 = vshrl.u32 %v4227, 7
    %v4229 = vsub.s32 %v1643, %v4228
    %v4230 = vrot.slane %v3281, %v4229
    %v4231 = vsel %vm1648, %v4230, %v4226
    %v4232 = vlaneseq
    %v4233 = vshrl.u32 %v4232, 7
    %v4234 = vsub.s32 %v1638, %v4233
    %v4235 = vrot.slane %v3284, %v4234
    %v4236 = vlaneseq
    %v4237 = vshrl.u32 %v4236, 7
    %v4238 = vsub.s32 %v1643, %v4237
    %v4239 = vrot.slane %v3287, %v4238
    %v4240 = vsel %vm1648, %v4239, %v4235
    %v4241 = vlaneseq
    %v4242 = vshrl.u32 %v4241, 7
    %v4243 = vsub.s32 %v1638, %v4242
    %v4244 = vrot.slane %v3290, %v4243
    %v4245 = vlaneseq
    %v4246 = vshrl.u32 %v4245, 7
    %v4247 = vsub.s32 %v1643, %v4246
    %v4248 = vrot.slane %v3293, %v4247
    %v4249 = vsel %vm1648, %v4248, %v4244
    %v4250 = vlaneseq
    %v4251 = vshrl.u32 %v4250, 7
    %v4252 = vsub.s32 %v1638, %v4251
    %v4253 = vrot.slane %v3296, %v4252
    %v4254 = vlaneseq
    %v4255 = vshrl.u32 %v4254, 7
    %v4256 = vsub.s32 %v1643, %v4255
    %v4257 = vrot.slane %v3299, %v4256
    %v4258 = vsel %vm1648, %v4257, %v4253
    %v4259 = vlaneseq
    %v4260 = vshrl.u32 %v4259, 7
    %v4261 = vsub.s32 %v1638, %v4260
    %v4262 = vrot.slane %v3302, %v4261
    %v4263 = vlaneseq
    %v4264 = vshrl.u32 %v4263, 7
    %v4265 = vsub.s32 %v1643, %v4264
    %v4266 = vrot.slane %v3305, %v4265
    %v4267 = vsel %vm1648, %v4266, %v4262
    %v4268 = vlaneseq
    %v4269 = vshrl.u32 %v4268, 7
    %v4270 = vsub.s32 %v1638, %v4269
    %v4271 = vrot.slane %v3308, %v4270
    %v4272 = vlaneseq
    %v4273 = vshrl.u32 %v4272, 7
    %v4274 = vsub.s32 %v1643, %v4273
    %v4275 = vrot.slane %v3311, %v4274
    %v4276 = vsel %vm1648, %v4275, %v4271
    %v4277 = vlaneseq
    %v4278 = vshrl.u32 %v4277, 7
    %v4279 = vsub.s32 %v1638, %v4278
    %v4280 = vrot.slane %v3314, %v4279
    %v4281 = vlaneseq
    %v4282 = vshrl.u32 %v4281, 7
    %v4283 = vsub.s32 %v1643, %v4282
    %v4284 = vrot.slane %v3317, %v4283
    %v4285 = vsel %vm1648, %v4284, %v4280
    %v4286 = vsel %vm1785, %v4159, %v4150
    %v4287 = vsel %vm1787, %v4168, %v4286
    %v4288 = vsel %vm1789, %v4177, %v4287
    %v4289 = vsel %vm1791, %v4186, %v4288
    %v4290 = vsel %vm1793, %v4195, %v4289
    %v4291 = vsel %vm1795, %v4204, %v4290
    %v4292 = vsel %vm1797, %v4213, %v4291
    %v4293 = vsel %vm1785, %v4231, %v4222
    %v4294 = vsel %vm1787, %v4240, %v4293
    %v4295 = vsel %vm1789, %v4249, %v4294
    %v4296 = vsel %vm1791, %v4258, %v4295
    %v4297 = vsel %vm1793, %v4267, %v4296
    %v4298 = vsel %vm1795, %v4276, %v4297
    %v4299 = vsel %vm1797, %v4285, %v4298
    %v4334 = vlaneseq
    %v4335 = vshrl.u32 %v4334, 7
    %v4336 = vsub.s32 %v1638, %v4335
    %v4337 = vrot.slane %v3488, %v4336
    %v4338 = vlaneseq
    %v4339 = vshrl.u32 %v4338, 7
    %v4340 = vsub.s32 %v1643, %v4339
    %v4341 = vrot.slane %v3491, %v4340
    %v4342 = vsel %vm1648, %v4341, %v4337
    %v4343 = vlaneseq
    %v4344 = vshrl.u32 %v4343, 7
    %v4345 = vsub.s32 %v1638, %v4344
    %v4346 = vrot.slane %v3494, %v4345
    %v4347 = vlaneseq
    %v4348 = vshrl.u32 %v4347, 7
    %v4349 = vsub.s32 %v1643, %v4348
    %v4350 = vrot.slane %v3497, %v4349
    %v4351 = vsel %vm1648, %v4350, %v4346
    %v4352 = vlaneseq
    %v4353 = vshrl.u32 %v4352, 7
    %v4354 = vsub.s32 %v1638, %v4353
    %v4355 = vrot.slane %v3500, %v4354
    %v4356 = vlaneseq
    %v4357 = vshrl.u32 %v4356, 7
    %v4358 = vsub.s32 %v1643, %v4357
    %v4359 = vrot.slane %v3503, %v4358
    %v4360 = vsel %vm1648, %v4359, %v4355
    %v4361 = vlaneseq
    %v4362 = vshrl.u32 %v4361, 7
    %v4363 = vsub.s32 %v1638, %v4362
    %v4364 = vrot.slane %v3506, %v4363
    %v4365 = vlaneseq
    %v4366 = vshrl.u32 %v4365, 7
    %v4367 = vsub.s32 %v1643, %v4366
    %v4368 = vrot.slane %v3509, %v4367
    %v4369 = vsel %vm1648, %v4368, %v4364
    %v4370 = vlaneseq
    %v4371 = vshrl.u32 %v4370, 7
    %v4372 = vsub.s32 %v1638, %v4371
    %v4373 = vrot.slane %v3512, %v4372
    %v4374 = vlaneseq
    %v4375 = vshrl.u32 %v4374, 7
    %v4376 = vsub.s32 %v1643, %v4375
    %v4377 = vrot.slane %v3515, %v4376
    %v4378 = vsel %vm1648, %v4377, %v4373
    %v4379 = vlaneseq
    %v4380 = vshrl.u32 %v4379, 7
    %v4381 = vsub.s32 %v1638, %v4380
    %v4382 = vrot.slane %v3518, %v4381
    %v4383 = vlaneseq
    %v4384 = vshrl.u32 %v4383, 7
    %v4385 = vsub.s32 %v1643, %v4384
    %v4386 = vrot.slane %v3521, %v4385
    %v4387 = vsel %vm1648, %v4386, %v4382
    %v4388 = vlaneseq
    %v4389 = vshrl.u32 %v4388, 7
    %v4390 = vsub.s32 %v1638, %v4389
    %v4391 = vrot.slane %v3524, %v4390
    %v4392 = vlaneseq
    %v4393 = vshrl.u32 %v4392, 7
    %v4394 = vsub.s32 %v1643, %v4393
    %v4395 = vrot.slane %v3527, %v4394
    %v4396 = vsel %vm1648, %v4395, %v4391
    %v4397 = vlaneseq
    %v4398 = vshrl.u32 %v4397, 7
    %v4399 = vsub.s32 %v1638, %v4398
    %v4400 = vrot.slane %v3530, %v4399
    %v4401 = vlaneseq
    %v4402 = vshrl.u32 %v4401, 7
    %v4403 = vsub.s32 %v1643, %v4402
    %v4404 = vrot.slane %v3533, %v4403
    %v4405 = vsel %vm1648, %v4404, %v4400
    %v4406 = vlaneseq
    %v4407 = vshrl.u32 %v4406, 7
    %v4408 = vsub.s32 %v1638, %v4407
    %v4409 = vrot.slane %v3536, %v4408
    %v4410 = vlaneseq
    %v4411 = vshrl.u32 %v4410, 7
    %v4412 = vsub.s32 %v1643, %v4411
    %v4413 = vrot.slane %v3539, %v4412
    %v4414 = vsel %vm1648, %v4413, %v4409
    %v4415 = vlaneseq
    %v4416 = vshrl.u32 %v4415, 7
    %v4417 = vsub.s32 %v1638, %v4416
    %v4418 = vrot.slane %v3542, %v4417
    %v4419 = vlaneseq
    %v4420 = vshrl.u32 %v4419, 7
    %v4421 = vsub.s32 %v1643, %v4420
    %v4422 = vrot.slane %v3545, %v4421
    %v4423 = vsel %vm1648, %v4422, %v4418
    %v4424 = vlaneseq
    %v4425 = vshrl.u32 %v4424, 7
    %v4426 = vsub.s32 %v1638, %v4425
    %v4427 = vrot.slane %v3548, %v4426
    %v4428 = vlaneseq
    %v4429 = vshrl.u32 %v4428, 7
    %v4430 = vsub.s32 %v1643, %v4429
    %v4431 = vrot.slane %v3551, %v4430
    %v4432 = vsel %vm1648, %v4431, %v4427
    %v4433 = vlaneseq
    %v4434 = vshrl.u32 %v4433, 7
    %v4435 = vsub.s32 %v1638, %v4434
    %v4436 = vrot.slane %v3554, %v4435
    %v4437 = vlaneseq
    %v4438 = vshrl.u32 %v4437, 7
    %v4439 = vsub.s32 %v1643, %v4438
    %v4440 = vrot.slane %v3557, %v4439
    %v4441 = vsel %vm1648, %v4440, %v4436
    %v4442 = vlaneseq
    %v4443 = vshrl.u32 %v4442, 7
    %v4444 = vsub.s32 %v1638, %v4443
    %v4445 = vrot.slane %v3560, %v4444
    %v4446 = vlaneseq
    %v4447 = vshrl.u32 %v4446, 7
    %v4448 = vsub.s32 %v1643, %v4447
    %v4449 = vrot.slane %v3563, %v4448
    %v4450 = vsel %vm1648, %v4449, %v4445
    %v4451 = vlaneseq
    %v4452 = vshrl.u32 %v4451, 7
    %v4453 = vsub.s32 %v1638, %v4452
    %v4454 = vrot.slane %v3566, %v4453
    %v4455 = vlaneseq
    %v4456 = vshrl.u32 %v4455, 7
    %v4457 = vsub.s32 %v1643, %v4456
    %v4458 = vrot.slane %v3569, %v4457
    %v4459 = vsel %vm1648, %v4458, %v4454
    %v4460 = vlaneseq
    %v4461 = vshrl.u32 %v4460, 7
    %v4462 = vsub.s32 %v1638, %v4461
    %v4463 = vrot.slane %v3572, %v4462
    %v4464 = vlaneseq
    %v4465 = vshrl.u32 %v4464, 7
    %v4466 = vsub.s32 %v1643, %v4465
    %v4467 = vrot.slane %v3575, %v4466
    %v4468 = vsel %vm1648, %v4467, %v4463
    %v4469 = vlaneseq
    %v4470 = vshrl.u32 %v4469, 7
    %v4471 = vsub.s32 %v1638, %v4470
    %v4472 = vrot.slane %v3578, %v4471
    %v4473 = vlaneseq
    %v4474 = vshrl.u32 %v4473, 7
    %v4475 = vsub.s32 %v1643, %v4474
    %v4476 = vrot.slane %v3581, %v4475
    %v4477 = vsel %vm1648, %v4476, %v4472
    %v4478 = vsel %vm1785, %v4351, %v4342
    %v4479 = vsel %vm1787, %v4360, %v4478
    %v4480 = vsel %vm1789, %v4369, %v4479
    %v4481 = vsel %vm1791, %v4378, %v4480
    %v4482 = vsel %vm1793, %v4387, %v4481
    %v4483 = vsel %vm1795, %v4396, %v4482
    %v4484 = vsel %vm1797, %v4405, %v4483
    %v4485 = vsel %vm1785, %v4423, %v4414
    %v4486 = vsel %vm1787, %v4432, %v4485
    %v4487 = vsel %vm1789, %v4441, %v4486
    %v4488 = vsel %vm1791, %v4450, %v4487
    %v4489 = vsel %vm1793, %v4459, %v4488
    %v4490 = vsel %vm1795, %v4468, %v4489
    %v4491 = vsel %vm1797, %v4477, %v4490
    %v4526 = vlaneseq
    %v4527 = vshrl.u32 %v4526, 7
    %v4528 = vsub.s32 %v1638, %v4527
    %v4529 = vrot.slane %v3752, %v4528
    %v4530 = vlaneseq
    %v4531 = vshrl.u32 %v4530, 7
    %v4532 = vsub.s32 %v1643, %v4531
    %v4533 = vrot.slane %v3755, %v4532
    %v4534 = vsel %vm1648, %v4533, %v4529
    %v4535 = vlaneseq
    %v4536 = vshrl.u32 %v4535, 7
    %v4537 = vsub.s32 %v1638, %v4536
    %v4538 = vrot.slane %v3758, %v4537
    %v4539 = vlaneseq
    %v4540 = vshrl.u32 %v4539, 7
    %v4541 = vsub.s32 %v1643, %v4540
    %v4542 = vrot.slane %v3761, %v4541
    %v4543 = vsel %vm1648, %v4542, %v4538
    %v4544 = vlaneseq
    %v4545 = vshrl.u32 %v4544, 7
    %v4546 = vsub.s32 %v1638, %v4545
    %v4547 = vrot.slane %v3764, %v4546
    %v4548 = vlaneseq
    %v4549 = vshrl.u32 %v4548, 7
    %v4550 = vsub.s32 %v1643, %v4549
    %v4551 = vrot.slane %v3767, %v4550
    %v4552 = vsel %vm1648, %v4551, %v4547
    %v4553 = vlaneseq
    %v4554 = vshrl.u32 %v4553, 7
    %v4555 = vsub.s32 %v1638, %v4554
    %v4556 = vrot.slane %v3770, %v4555
    %v4557 = vlaneseq
    %v4558 = vshrl.u32 %v4557, 7
    %v4559 = vsub.s32 %v1643, %v4558
    %v4560 = vrot.slane %v3773, %v4559
    %v4561 = vsel %vm1648, %v4560, %v4556
    %v4562 = vlaneseq
    %v4563 = vshrl.u32 %v4562, 7
    %v4564 = vsub.s32 %v1638, %v4563
    %v4565 = vrot.slane %v3776, %v4564
    %v4566 = vlaneseq
    %v4567 = vshrl.u32 %v4566, 7
    %v4568 = vsub.s32 %v1643, %v4567
    %v4569 = vrot.slane %v3779, %v4568
    %v4570 = vsel %vm1648, %v4569, %v4565
    %v4571 = vlaneseq
    %v4572 = vshrl.u32 %v4571, 7
    %v4573 = vsub.s32 %v1638, %v4572
    %v4574 = vrot.slane %v3782, %v4573
    %v4575 = vlaneseq
    %v4576 = vshrl.u32 %v4575, 7
    %v4577 = vsub.s32 %v1643, %v4576
    %v4578 = vrot.slane %v3785, %v4577
    %v4579 = vsel %vm1648, %v4578, %v4574
    %v4580 = vlaneseq
    %v4581 = vshrl.u32 %v4580, 7
    %v4582 = vsub.s32 %v1638, %v4581
    %v4583 = vrot.slane %v3788, %v4582
    %v4584 = vlaneseq
    %v4585 = vshrl.u32 %v4584, 7
    %v4586 = vsub.s32 %v1643, %v4585
    %v4587 = vrot.slane %v3791, %v4586
    %v4588 = vsel %vm1648, %v4587, %v4583
    %v4589 = vlaneseq
    %v4590 = vshrl.u32 %v4589, 7
    %v4591 = vsub.s32 %v1638, %v4590
    %v4592 = vrot.slane %v3794, %v4591
    %v4593 = vlaneseq
    %v4594 = vshrl.u32 %v4593, 7
    %v4595 = vsub.s32 %v1643, %v4594
    %v4596 = vrot.slane %v3797, %v4595
    %v4597 = vsel %vm1648, %v4596, %v4592
    %v4598 = vlaneseq
    %v4599 = vshrl.u32 %v4598, 7
    %v4600 = vsub.s32 %v1638, %v4599
    %v4601 = vrot.slane %v3800, %v4600
    %v4602 = vlaneseq
    %v4603 = vshrl.u32 %v4602, 7
    %v4604 = vsub.s32 %v1643, %v4603
    %v4605 = vrot.slane %v3803, %v4604
    %v4606 = vsel %vm1648, %v4605, %v4601
    %v4607 = vlaneseq
    %v4608 = vshrl.u32 %v4607, 7
    %v4609 = vsub.s32 %v1638, %v4608
    %v4610 = vrot.slane %v3806, %v4609
    %v4611 = vlaneseq
    %v4612 = vshrl.u32 %v4611, 7
    %v4613 = vsub.s32 %v1643, %v4612
    %v4614 = vrot.slane %v3809, %v4613
    %v4615 = vsel %vm1648, %v4614, %v4610
    %v4616 = vlaneseq
    %v4617 = vshrl.u32 %v4616, 7
    %v4618 = vsub.s32 %v1638, %v4617
    %v4619 = vrot.slane %v3812, %v4618
    %v4620 = vlaneseq
    %v4621 = vshrl.u32 %v4620, 7
    %v4622 = vsub.s32 %v1643, %v4621
    %v4623 = vrot.slane %v3815, %v4622
    %v4624 = vsel %vm1648, %v4623, %v4619
    %v4625 = vlaneseq
    %v4626 = vshrl.u32 %v4625, 7
    %v4627 = vsub.s32 %v1638, %v4626
    %v4628 = vrot.slane %v3818, %v4627
    %v4629 = vlaneseq
    %v4630 = vshrl.u32 %v4629, 7
    %v4631 = vsub.s32 %v1643, %v4630
    %v4632 = vrot.slane %v3821, %v4631
    %v4633 = vsel %vm1648, %v4632, %v4628
    %v4634 = vlaneseq
    %v4635 = vshrl.u32 %v4634, 7
    %v4636 = vsub.s32 %v1638, %v4635
    %v4637 = vrot.slane %v3824, %v4636
    %v4638 = vlaneseq
    %v4639 = vshrl.u32 %v4638, 7
    %v4640 = vsub.s32 %v1643, %v4639
    %v4641 = vrot.slane %v3827, %v4640
    %v4642 = vsel %vm1648, %v4641, %v4637
    %v4643 = vlaneseq
    %v4644 = vshrl.u32 %v4643, 7
    %v4645 = vsub.s32 %v1638, %v4644
    %v4646 = vrot.slane %v3830, %v4645
    %v4647 = vlaneseq
    %v4648 = vshrl.u32 %v4647, 7
    %v4649 = vsub.s32 %v1643, %v4648
    %v4650 = vrot.slane %v3833, %v4649
    %v4651 = vsel %vm1648, %v4650, %v4646
    %v4652 = vlaneseq
    %v4653 = vshrl.u32 %v4652, 7
    %v4654 = vsub.s32 %v1638, %v4653
    %v4655 = vrot.slane %v3836, %v4654
    %v4656 = vlaneseq
    %v4657 = vshrl.u32 %v4656, 7
    %v4658 = vsub.s32 %v1643, %v4657
    %v4659 = vrot.slane %v3839, %v4658
    %v4660 = vsel %vm1648, %v4659, %v4655
    %v4661 = vlaneseq
    %v4662 = vshrl.u32 %v4661, 7
    %v4663 = vsub.s32 %v1638, %v4662
    %v4664 = vrot.slane %v3842, %v4663
    %v4665 = vlaneseq
    %v4666 = vshrl.u32 %v4665, 7
    %v4667 = vsub.s32 %v1643, %v4666
    %v4668 = vrot.slane %v3845, %v4667
    %v4669 = vsel %vm1648, %v4668, %v4664
    %v4670 = vsel %vm1785, %v4543, %v4534
    %v4671 = vsel %vm1787, %v4552, %v4670
    %v4672 = vsel %vm1789, %v4561, %v4671
    %v4673 = vsel %vm1791, %v4570, %v4672
    %v4674 = vsel %vm1793, %v4579, %v4673
    %v4675 = vsel %vm1795, %v4588, %v4674
    %v4676 = vsel %vm1797, %v4597, %v4675
    %v4677 = vsel %vm1785, %v4615, %v4606
    %v4678 = vsel %vm1787, %v4624, %v4677
    %v4679 = vsel %vm1789, %v4633, %v4678
    %v4680 = vsel %vm1791, %v4642, %v4679
    %v4681 = vsel %vm1793, %v4651, %v4680
    %v4682 = vsel %vm1795, %v4660, %v4681
    %v4683 = vsel %vm1797, %v4669, %v4682
    %v4718 = vlaneseq
    %v4719 = vshrl.u32 %v4718, 7
    %v4720 = vsub.s32 %v1638, %v4719
    %v4721 = vrot.slane %v4016, %v4720
    %v4722 = vlaneseq
    %v4723 = vshrl.u32 %v4722, 7
    %v4724 = vsub.s32 %v1643, %v4723
    %v4725 = vrot.slane %v4019, %v4724
    %v4726 = vsel %vm1648, %v4725, %v4721
    %v4727 = vlaneseq
    %v4728 = vshrl.u32 %v4727, 7
    %v4729 = vsub.s32 %v1638, %v4728
    %v4730 = vrot.slane %v4022, %v4729
    %v4731 = vlaneseq
    %v4732 = vshrl.u32 %v4731, 7
    %v4733 = vsub.s32 %v1643, %v4732
    %v4734 = vrot.slane %v4025, %v4733
    %v4735 = vsel %vm1648, %v4734, %v4730
    %v4736 = vlaneseq
    %v4737 = vshrl.u32 %v4736, 7
    %v4738 = vsub.s32 %v1638, %v4737
    %v4739 = vrot.slane %v4028, %v4738
    %v4740 = vlaneseq
    %v4741 = vshrl.u32 %v4740, 7
    %v4742 = vsub.s32 %v1643, %v4741
    %v4743 = vrot.slane %v4031, %v4742
    %v4744 = vsel %vm1648, %v4743, %v4739
    %v4745 = vlaneseq
    %v4746 = vshrl.u32 %v4745, 7
    %v4747 = vsub.s32 %v1638, %v4746
    %v4748 = vrot.slane %v4034, %v4747
    %v4749 = vlaneseq
    %v4750 = vshrl.u32 %v4749, 7
    %v4751 = vsub.s32 %v1643, %v4750
    %v4752 = vrot.slane %v4037, %v4751
    %v4753 = vsel %vm1648, %v4752, %v4748
    %v4754 = vlaneseq
    %v4755 = vshrl.u32 %v4754, 7
    %v4756 = vsub.s32 %v1638, %v4755
    %v4757 = vrot.slane %v4040, %v4756
    %v4758 = vlaneseq
    %v4759 = vshrl.u32 %v4758, 7
    %v4760 = vsub.s32 %v1643, %v4759
    %v4761 = vrot.slane %v4043, %v4760
    %v4762 = vsel %vm1648, %v4761, %v4757
    %v4763 = vlaneseq
    %v4764 = vshrl.u32 %v4763, 7
    %v4765 = vsub.s32 %v1638, %v4764
    %v4766 = vrot.slane %v4046, %v4765
    %v4767 = vlaneseq
    %v4768 = vshrl.u32 %v4767, 7
    %v4769 = vsub.s32 %v1643, %v4768
    %v4770 = vrot.slane %v4049, %v4769
    %v4771 = vsel %vm1648, %v4770, %v4766
    %v4772 = vlaneseq
    %v4773 = vshrl.u32 %v4772, 7
    %v4774 = vsub.s32 %v1638, %v4773
    %v4775 = vrot.slane %v4052, %v4774
    %v4776 = vlaneseq
    %v4777 = vshrl.u32 %v4776, 7
    %v4778 = vsub.s32 %v1643, %v4777
    %v4779 = vrot.slane %v4055, %v4778
    %v4780 = vsel %vm1648, %v4779, %v4775
    %v4781 = vlaneseq
    %v4782 = vshrl.u32 %v4781, 7
    %v4783 = vsub.s32 %v1638, %v4782
    %v4784 = vrot.slane %v4058, %v4783
    %v4785 = vlaneseq
    %v4786 = vshrl.u32 %v4785, 7
    %v4787 = vsub.s32 %v1643, %v4786
    %v4788 = vrot.slane %v4061, %v4787
    %v4789 = vsel %vm1648, %v4788, %v4784
    %v4790 = vlaneseq
    %v4791 = vshrl.u32 %v4790, 7
    %v4792 = vsub.s32 %v1638, %v4791
    %v4793 = vrot.slane %v4064, %v4792
    %v4794 = vlaneseq
    %v4795 = vshrl.u32 %v4794, 7
    %v4796 = vsub.s32 %v1643, %v4795
    %v4797 = vrot.slane %v4067, %v4796
    %v4798 = vsel %vm1648, %v4797, %v4793
    %v4799 = vlaneseq
    %v4800 = vshrl.u32 %v4799, 7
    %v4801 = vsub.s32 %v1638, %v4800
    %v4802 = vrot.slane %v4070, %v4801
    %v4803 = vlaneseq
    %v4804 = vshrl.u32 %v4803, 7
    %v4805 = vsub.s32 %v1643, %v4804
    %v4806 = vrot.slane %v4073, %v4805
    %v4807 = vsel %vm1648, %v4806, %v4802
    %v4808 = vlaneseq
    %v4809 = vshrl.u32 %v4808, 7
    %v4810 = vsub.s32 %v1638, %v4809
    %v4811 = vrot.slane %v4076, %v4810
    %v4812 = vlaneseq
    %v4813 = vshrl.u32 %v4812, 7
    %v4814 = vsub.s32 %v1643, %v4813
    %v4815 = vrot.slane %v4079, %v4814
    %v4816 = vsel %vm1648, %v4815, %v4811
    %v4817 = vlaneseq
    %v4818 = vshrl.u32 %v4817, 7
    %v4819 = vsub.s32 %v1638, %v4818
    %v4820 = vrot.slane %v4082, %v4819
    %v4821 = vlaneseq
    %v4822 = vshrl.u32 %v4821, 7
    %v4823 = vsub.s32 %v1643, %v4822
    %v4824 = vrot.slane %v4085, %v4823
    %v4825 = vsel %vm1648, %v4824, %v4820
    %v4826 = vlaneseq
    %v4827 = vshrl.u32 %v4826, 7
    %v4828 = vsub.s32 %v1638, %v4827
    %v4829 = vrot.slane %v4088, %v4828
    %v4830 = vlaneseq
    %v4831 = vshrl.u32 %v4830, 7
    %v4832 = vsub.s32 %v1643, %v4831
    %v4833 = vrot.slane %v4091, %v4832
    %v4834 = vsel %vm1648, %v4833, %v4829
    %v4835 = vlaneseq
    %v4836 = vshrl.u32 %v4835, 7
    %v4837 = vsub.s32 %v1638, %v4836
    %v4838 = vrot.slane %v4094, %v4837
    %v4839 = vlaneseq
    %v4840 = vshrl.u32 %v4839, 7
    %v4841 = vsub.s32 %v1643, %v4840
    %v4842 = vrot.slane %v4097, %v4841
    %v4843 = vsel %vm1648, %v4842, %v4838
    %v4844 = vlaneseq
    %v4845 = vshrl.u32 %v4844, 7
    %v4846 = vsub.s32 %v1638, %v4845
    %v4847 = vrot.slane %v4100, %v4846
    %v4848 = vlaneseq
    %v4849 = vshrl.u32 %v4848, 7
    %v4850 = vsub.s32 %v1643, %v4849
    %v4851 = vrot.slane %v4103, %v4850
    %v4852 = vsel %vm1648, %v4851, %v4847
    %v4853 = vlaneseq
    %v4854 = vshrl.u32 %v4853, 7
    %v4855 = vsub.s32 %v1638, %v4854
    %v4856 = vrot.slane %v4106, %v4855
    %v4857 = vlaneseq
    %v4858 = vshrl.u32 %v4857, 7
    %v4859 = vsub.s32 %v1643, %v4858
    %v4860 = vrot.slane %v4109, %v4859
    %v4861 = vsel %vm1648, %v4860, %v4856
    %v4862 = vsel %vm1785, %v4735, %v4726
    %v4863 = vsel %vm1787, %v4744, %v4862
    %v4864 = vsel %vm1789, %v4753, %v4863
    %v4865 = vsel %vm1791, %v4762, %v4864
    %v4866 = vsel %vm1793, %v4771, %v4865
    %v4867 = vsel %vm1795, %v4780, %v4866
    %v4868 = vsel %vm1797, %v4789, %v4867
    %v4869 = vsel %vm1785, %v4807, %v4798
    %v4870 = vsel %vm1787, %v4816, %v4869
    %v4871 = vsel %vm1789, %v4825, %v4870
    %v4872 = vsel %vm1791, %v4834, %v4871
    %v4873 = vsel %vm1793, %v4843, %v4872
    %v4874 = vsel %vm1795, %v4852, %v4873
    %v4875 = vsel %vm1797, %v4861, %v4874
    %v4878 = vsel %vm37, %v4292, -1e+30
    %v4879 = vsel %vm38, %v4299, -1e+30
    %v4880 = vsel %vm39, %v4484, -1e+30
    %v4881 = vsel %vm40, %v4491, -1e+30
    %v4882 = vsel %vm41, %v4676, -1e+30
    %v4883 = vsel %vm42, %v4683, -1e+30
    %v4884 = vsel %vm43, %v4868, -1e+30
    %v4885 = vsel %vm44, %v4875, -1e+30
    %v4886 = vsel %vm2392, %v4878, -inf
    %4887 = vmax.xlane.f32.xlu0 %v4886
    %v4888 = vpop.xlane.xlu0 %4887
    %v4889 = vsel %vm2392, %v4879, -inf
    %4890 = vmax.xlane.f32.xlu0 %v4889
    %v4891 = vpop.xlane.xlu0 %4890
    %v4892 = vsel %vm2392, %v4880, -inf
    %4893 = vmax.xlane.f32.xlu0 %v4892
    %v4894 = vpop.xlane.xlu0 %4893
    %v4895 = vsel %vm2392, %v4881, -inf
    %4896 = vmax.xlane.f32.xlu0 %v4895
    %v4897 = vpop.xlane.xlu0 %4896
    %v4898 = vsel %vm2392, %v4882, -inf
    %4899 = vmax.xlane.f32.xlu0 %v4898
    %v4900 = vpop.xlane.xlu0 %4899
    %v4901 = vsel %vm2392, %v4883, -inf
    %4902 = vmax.xlane.f32.xlu0 %v4901
    %v4903 = vpop.xlane.xlu0 %4902
    %v4904 = vsel %vm2392, %v4884, -inf
    %4905 = vmax.xlane.f32.xlu0 %v4904
    %v4906 = vpop.xlane.xlu0 %4905
    %v4907 = vsel %vm2392, %v4885, -inf
    %4908 = vmax.xlane.f32.xlu0 %v4907
    %v4909 = vpop.xlane.xlu0 %4908
    %v4910 = vsub.f32 %v4878, %v4888
    %v4911 = vsub.f32 %v4879, %v4891
    %v4912 = vsub.f32 %v4880, %v4894
    %v4913 = vsub.f32 %v4881, %v4897
    %v4914 = vsub.f32 %v4882, %v4900
    %v4915 = vsub.f32 %v4883, %v4903
    %v4916 = vsub.f32 %v4884, %v4906
    %v4917 = vsub.f32 %v4885, %v4909
    %v4918 = vmul.f32 %v4910, 1.442695
    %v4919 = vpow.pop %v4918
    %v4920 = vmul.f32 %v4911, 1.442695
    %v4921 = vpow.pop %v4920
    %v4922 = vmul.f32 %v4912, 1.442695
    %v4923 = vpow.pop %v4922
    %v4924 = vmul.f32 %v4913, 1.442695
    %v4925 = vpow.pop %v4924
    %v4926 = vmul.f32 %v4914, 1.442695
    %v4927 = vpow.pop %v4926
    %v4928 = vmul.f32 %v4915, 1.442695
    %v4929 = vpow.pop %v4928
    %v4930 = vmul.f32 %v4916, 1.442695
    %v4931 = vpow.pop %v4930
    %v4932 = vmul.f32 %v4917, 1.442695
    %v4933 = vpow.pop %v4932
    %v4934 = vsel %vm2392, %v4919, 0.0
    %4935 = vadd.xlane.f32.xlu0 %v4934
    %v4936 = vpop.xlane.xlu0 %4935
    %v4937 = vsel %vm2392, %v4921, 0.0
    %4938 = vadd.xlane.f32.xlu0 %v4937
    %v4939 = vpop.xlane.xlu0 %4938
    %v4940 = vsel %vm2392, %v4923, 0.0
    %4941 = vadd.xlane.f32.xlu0 %v4940
    %v4942 = vpop.xlane.xlu0 %4941
    %v4943 = vsel %vm2392, %v4925, 0.0
    %4944 = vadd.xlane.f32.xlu0 %v4943
    %v4945 = vpop.xlane.xlu0 %4944
    %v4946 = vsel %vm2392, %v4927, 0.0
    %4947 = vadd.xlane.f32.xlu0 %v4946
    %v4948 = vpop.xlane.xlu0 %4947
    %v4949 = vsel %vm2392, %v4929, 0.0
    %4950 = vadd.xlane.f32.xlu0 %v4949
    %v4951 = vpop.xlane.xlu0 %4950
    %v4952 = vsel %vm2392, %v4931, 0.0
    %4953 = vadd.xlane.f32.xlu0 %v4952
    %v4954 = vpop.xlane.xlu0 %4953
    %v4955 = vsel %vm2392, %v4933, 0.0
    %4956 = vadd.xlane.f32.xlu0 %v4955
    %v4957 = vpop.xlane.xlu0 %4956
    %v4958 = vrcp.pop %v4936
    %v4959 = vmul.f32 %v4919, %v4958
    %v4960 = vrcp.pop %v4939
    %v4961 = vmul.f32 %v4921, %v4960
    %v4962 = vrcp.pop %v4942
    %v4963 = vmul.f32 %v4923, %v4962
    %v4964 = vrcp.pop %v4945
    %v4965 = vmul.f32 %v4925, %v4964
    %v4966 = vrcp.pop %v4948
    %v4967 = vmul.f32 %v4927, %v4966
    %v4968 = vrcp.pop %v4951
    %v4969 = vmul.f32 %v4929, %v4968
    %v4970 = vrcp.pop %v4954
    %v4971 = vmul.f32 %v4931, %v4970
    %v4972 = vrcp.pop %v4957
    %v4973 = vmul.f32 %v4933, %v4972
    %v4975 = vsel %vm2392, %v4959, 0
    %v4978 = vsel %vm2392, %v4961, 0
    %v4981 = vsel %vm2392, %v4963, 0
    %v4984 = vsel %vm2392, %v4965, 0
    %v4987 = vsel %vm2392, %v4967, 0
    %v4990 = vsel %vm2392, %v4969, 0
    %v4993 = vsel %vm2392, %v4971, 0
    %v4996 = vsel %vm2392, %v4973, 0
    %4998 = vmatprep.subr.mxu0 0.0
    %4999 = vmatpush1.msra.mxu0 %v2732
    %5000 = vmatprep.subr.mxu0 0.0
    %5001 = vmatpush1.msra.mxu0 %v2737
    %5002 = vmatprep.subr.mxu0 0.0
    %5003 = vmatpush1.msra.mxu0 0.0
    %5004 = vmatprep.subr.mxu0 0.0
    %5005 = vmatpush1.msra.mxu0 0.0
    %5006 = vmatprep.subr.mxu0 0.0
    %5007 = vmatpush1.msra.mxu0 0.0
    %5008 = vmatprep.subr.mxu0 0.0
    %5009 = vmatpush1.msra.mxu0 0.0
    %5010 = vmatprep.subr.mxu0 0.0
    %5011 = vmatpush1.msra.mxu0 0.0
    %5012 = vmatprep.subr.mxu0 0.0
    %5013 = vmatpush1.msra.mxu0 0.0
    %5014 = vmatprep.subr.mxu0 0.0
    %5015 = vmatpush1.msra.mxu0 0.0
    %5016 = vmatprep.subr.mxu0 0.0
    %5017 = vmatpush1.msra.mxu0 0.0
    %5018 = vmatprep.subr.mxu0 0.0
    %5019 = vmatpush1.msra.mxu0 0.0
    %5020 = vmatprep.subr.mxu0 0.0
    %5021 = vmatpush1.msra.mxu0 0.0
    %5022 = vmatprep.subr.mxu0 0.0
    %5023 = vmatpush1.msra.mxu0 0.0
    %5024 = vmatprep.subr.mxu0 0.0
    %5025 = vmatpush1.msra.mxu0 0.0
    %5026 = vmatprep.subr.mxu0 0.0
    %5027 = vmatpush1.msra.mxu0 0.0
    %5028 = vmatprep.subr.mxu0 0.0
    %5029 = vmatpush1.msra.mxu0 0.0
    %5030 = vmatprep.subr.mxu0 0.0
    %5031 = vmatpush1.msra.mxu0 0.0
    %5032 = vmatprep.subr.mxu0 0.0
    %5033 = vmatpush1.msra.mxu0 0.0
    %5034 = vmatprep.subr.mxu0 0.0
    %5035 = vmatpush1.msra.mxu0 0.0
    %5036 = vmatprep.subr.mxu0 0.0
    %5037 = vmatpush1.msra.mxu0 0.0
    %5038 = vmatprep.subr.mxu0 0.0
    %5039 = vmatpush1.msra.mxu0 0.0
    %5040 = vmatprep.subr.mxu0 0.0
    %5041 = vmatpush1.msra.mxu0 0.0
    %5042 = vmatprep.subr.mxu0 0.0
    %5043 = vmatpush1.msra.mxu0 0.0
    %5044 = vmatprep.subr.mxu0 0.0
    %5045 = vmatpush1.msra.mxu0 0.0
    %5046 = vmatprep.subr.mxu0 0.0
    %5047 = vmatpush1.msra.mxu0 0.0
    %5048 = vmatprep.subr.mxu0 0.0
    %5049 = vmatpush1.msra.mxu0 0.0
    %5050 = vmatprep.subr.mxu0 0.0
    %5051 = vmatpush1.msra.mxu0 0.0
    %5052 = vmatprep.subr.mxu0 0.0
    %5053 = vmatpush1.msra.mxu0 0.0
    %5054 = vmatprep.subr.mxu0 0.0
    %5055 = vmatpush1.msra.mxu0 0.0
    %5056 = vmatprep.subr.mxu0 0.0
    %5057 = vmatpush1.msra.mxu0 0.0
    %5058 = vmatprep.subr.mxu0 0.0
    %5059 = vmatpush1.msra.mxu0 0.0
    %5060 = vmatprep.subr.mxu0 0.0
    %5061 = vmatpush1.msra.mxu0 0.0
    %5062 = vmatprep.mubr.f32.mxu0 0.0
    %5063 = vmatmul.mubr.f32.gmra.mrb[0].mxu0 %v4975
    %v5064 = vpop.f32.mrb[0].mxu0
    %v5065 = vadd.f32 0.0, %v5064
    %v5066 = vpop.f32.mrb[0].mxu0
    %5067 = vmatprep.mubr.f32.mxu0 0.0
    %5068 = vmatmul.mubr.f32.gmra.mrb[0].mxu0 %v4978
    %v5069 = vpop.f32.mrb[0].mxu0
    %v5070 = vadd.f32 0.0, %v5069
    %v5071 = vpop.f32.mrb[0].mxu0
    %5072 = vmatprep.mubr.f32.mxu0 0.0
    %5073 = vmatmul.mubr.f32.gmra.mrb[0].mxu0 %v4981
    %v5074 = vpop.f32.mrb[0].mxu0
    %v5075 = vadd.f32 0.0, %v5074
    %v5076 = vpop.f32.mrb[0].mxu0
    %5077 = vmatprep.mubr.f32.mxu0 0.0
    %5078 = vmatmul.mubr.f32.gmra.mrb[0].mxu0 %v4984
    %v5079 = vpop.f32.mrb[0].mxu0
    %v5080 = vadd.f32 0.0, %v5079
    %v5081 = vpop.f32.mrb[0].mxu0
    %5082 = vmatprep.mubr.f32.mxu0 0.0
    %5083 = vmatmul.mubr.f32.gmra.mrb[0].mxu0 %v4987
    %v5084 = vpop.f32.mrb[0].mxu0
    %v5085 = vadd.f32 0.0, %v5084
    %v5086 = vpop.f32.mrb[0].mxu0
    %5087 = vmatprep.mubr.f32.mxu0 0.0
    %5088 = vmatmul.mubr.f32.gmra.mrb[0].mxu0 %v4990
    %v5089 = vpop.f32.mrb[0].mxu0
    %v5090 = vadd.f32 0.0, %v5089
    %v5091 = vpop.f32.mrb[0].mxu0
    %5092 = vmatprep.mubr.f32.mxu0 0.0
    %5093 = vmatmul.mubr.f32.gmra.mrb[0].mxu0 %v4993
    %v5094 = vpop.f32.mrb[0].mxu0
    %v5095 = vadd.f32 0.0, %v5094
    %v5096 = vpop.f32.mrb[0].mxu0
    %5097 = vmatprep.mubr.f32.mxu0 0.0
    %5098 = vmatmul.mubr.f32.gmra.mrb[0].mxu0 %v4996
    %v5099 = vpop.f32.mrb[0].mxu0
    %v5100 = vadd.f32 0.0, %v5099
    %v5101 = vpop.f32.mrb[0].mxu0
    %5102 = vdwg.mxu0
    %v5103 = vmul.f32 %v5065, %v2613
    %v5104 = vmul.f32 %v5070, %v2613
    %v5105 = vmul.f32 %v5075, %v2619
    %v5106 = vmul.f32 %v5080, %v2619
    %v5107 = vadd.f32 %v5103, %v5105
    %v5108 = vadd.f32 %v5104, %v5106
    %v5109 = vmul.f32 %v5085, %v2627
    %v5110 = vmul.f32 %v5090, %v2627
    %v5111 = vadd.f32 %v5107, %v5109
    %v5112 = vadd.f32 %v5108, %v5110
    %v5113 = vmul.f32 %v5095, %v2635
    %v5114 = vmul.f32 %v5100, %v2635
    %v5115 = vadd.f32 %v5111, %v5113
    %v5116 = vadd.f32 %v5112, %v5114
    %v5117 = vlaneseq
    %v5118 = vshrl.u32 %v5117, 7
    %v5119 = vsub.s32 0, %v5118
    %v5120 = vrot.slane %v2654, %v5119
    %v5121 = vadd.f32 %v5115, %v5120
    %v5122 = vadd.f32 %v5116, %v5120
    %v5123 = vmax.f32 %v5121, 0.0
    %v5124 = vmax.f32 %v5122, 0.0
    %v5125 = vld [vmem:[#allocation2 + $0x90] sm:$0xff]
    %v5126 = vld [vmem:[#allocation2 + $0x98] sm:$0xff]
    %v5127 = vld [vmem:[#allocation2 + $0xa0] sm:$0xff]
    %v5128 = vld [vmem:[#allocation2 + $0xa8] sm:$0xff]
    %v5129 = vld [vmem:[#allocation2 + $0xb0] sm:$0x1]
    %v5130 = vld [vmem:[#allocation2 + $0xb8] sm:$0xff]
    %v5131 = vld [vmem:[#allocation2 + $0xc0] sm:$0xff]
    %v5132 = vld [vmem:[#allocation2 + $0xc8] sm:$0xff]
    %v5133 = vld [vmem:[#allocation2 + $0xd0] sm:$0xff]
    %v5134 = vld [vmem:[#allocation2 + $0xd8] sm:$0x1]
    %v5135 = vld [vmem:[#allocation2 + $0xe0] sm:$0x1]
    %v5136 = vld [vmem:[#allocation2 + $0xe8] sm:$0x1]
    %v5137 = vlaneseq
    %v5138 = vshrl.u32 %v5137, 7
    %v5139 = vsub.s32 0, %v5138
    %v5140 = vrot.slane %v5129, %v5139
    %v5142 = vsel %vm153, %v5123, 0
    %v5145 = vsel %vm153, %v5124, 0
    %5147 = vmatprep.subr.mxu0 0.0
    %5148 = vmatpush1.msra.mxu0 %v5125
    %5149 = vmatprep.subr.mxu0 0.0
    %5150 = vmatpush1.msra.mxu0 %v5126
    %5151 = vmatprep.subr.mxu0 0.0
    %5152 = vmatpush1.msra.mxu0 %v5127
    %5153 = vmatprep.subr.mxu0 0.0
    %5154 = vmatpush1.msra.mxu0 %v5128
    %5155 = vmatprep.subr.mxu0 0.0
    %5156 = vmatpush1.msra.mxu0 0.0
    %5157 = vmatprep.subr.mxu0 0.0
    %5158 = vmatpush1.msra.mxu0 0.0
    %5159 = vmatprep.subr.mxu0 0.0
    %5160 = vmatpush1.msra.mxu0 0.0
    %5161 = vmatprep.subr.mxu0 0.0
    %5162 = vmatpush1.msra.mxu0 0.0
    %5163 = vmatprep.subr.mxu0 0.0
    %5164 = vmatpush1.msra.mxu0 0.0
    %5165 = vmatprep.subr.mxu0 0.0
    %5166 = vmatpush1.msra.mxu0 0.0
    %5167 = vmatprep.subr.mxu0 0.0
    %5168 = vmatpush1.msra.mxu0 0.0
    %5169 = vmatprep.subr.mxu0 0.0
    %5170 = vmatpush1.msra.mxu0 0.0
    %5171 = vmatprep.subr.mxu0 0.0
    %5172 = vmatpush1.msra.mxu0 0.0
    %5173 = vmatprep.subr.mxu0 0.0
    %5174 = vmatpush1.msra.mxu0 0.0
    %5175 = vmatprep.subr.mxu0 0.0
    %5176 = vmatpush1.msra.mxu0 0.0
    %5177 = vmatprep.subr.mxu0 0.0
    %5178 = vmatpush1.msra.mxu0 0.0
    %5179 = vmatprep.subr.mxu0 0.0
    %5180 = vmatpush1.msra.mxu0 0.0
    %5181 = vmatprep.subr.mxu0 0.0
    %5182 = vmatpush1.msra.mxu0 0.0
    %5183 = vmatprep.subr.mxu0 0.0
    %5184 = vmatpush1.msra.mxu0 0.0
    %5185 = vmatprep.subr.mxu0 0.0
    %5186 = vmatpush1.msra.mxu0 0.0
    %5187 = vmatprep.subr.mxu0 0.0
    %5188 = vmatpush1.msra.mxu0 0.0
    %5189 = vmatprep.subr.mxu0 0.0
    %5190 = vmatpush1.msra.mxu0 0.0
    %5191 = vmatprep.subr.mxu0 0.0
    %5192 = vmatpush1.msra.mxu0 0.0
    %5193 = vmatprep.subr.mxu0 0.0
    %5194 = vmatpush1.msra.mxu0 0.0
    %5195 = vmatprep.subr.mxu0 0.0
    %5196 = vmatpush1.msra.mxu0 0.0
    %5197 = vmatprep.subr.mxu0 0.0
    %5198 = vmatpush1.msra.mxu0 0.0
    %5199 = vmatprep.subr.mxu0 0.0
    %5200 = vmatpush1.msra.mxu0 0.0
    %5201 = vmatprep.subr.mxu0 0.0
    %5202 = vmatpush1.msra.mxu0 0.0
    %5203 = vmatprep.subr.mxu0 0.0
    %5204 = vmatpush1.msra.mxu0 0.0
    %5205 = vmatprep.subr.mxu0 0.0
    %5206 = vmatpush1.msra.mxu0 0.0
    %5207 = vmatprep.subr.mxu0 0.0
    %5208 = vmatpush1.msra.mxu0 0.0
    %5209 = vmatprep.subr.mxu0 0.0
    %5210 = vmatpush1.msra.mxu0 0.0
    %5211 = vmatprep.mubr.f32.mxu0 0.0
    %5212 = vmatmul.mubr.f32.gmra.mrb[0].mxu0 %v5142
    %v5213 = vpop.f32.mrb[0].mxu0
    %v5214 = vadd.f32 %v5140, %v5213
    %v5215 = vpop.f32.mrb[0].mxu0
    %5216 = vmatprep.mubr.f32.mxu0 0.0
    %5217 = vmatmul.mubr.f32.gmra.mrb[0].mxu0 %v5145
    %v5218 = vpop.f32.mrb[0].mxu0
    %v5219 = vadd.f32 %v5140, %v5218
    %v5220 = vpop.f32.mrb[0].mxu0
    %5221 = vdwg.mxu0
    %v5222 = vmul.f32 %v5214, 0.35355338
    %v5223 = vmul.f32 %v5219, 0.35355338
    %v5224 = vmul.f32 %v5222, %v2613
    %v5225 = vmul.f32 %v5223, %v2613
    %v5226 = vmul.f32 %v5222, %v2619
    %v5227 = vmul.f32 %v5223, %v2619
    %v5228 = vmul.f32 %v5222, %v2627
    %v5229 = vmul.f32 %v5223, %v2627
    %v5230 = vmul.f32 %v5222, %v2635
    %v5231 = vmul.f32 %v5223, %v2635
    %5234 = vrot.lane.b32.xlu0 %v5214, 96
    %v5235 = vpop.permute.xlu0 %5234
    %5236 = vrot.lane.b32.xlu0 %v5219, 96
    %v5237 = vpop.permute.xlu0 %5236
    %v5239 = vsel %vm153, %v5224, 0
    %v5242 = vsel %vm153, %v5225, 0
    %v5245 = vsel %vm153, %v5226, 0
    %v5248 = vsel %vm153, %v5227, 0
    %v5251 = vsel %vm153, %v5228, 0
    %v5254 = vsel %vm153, %v5229, 0
    %v5257 = vsel %vm153, %v5230, 0
    %v5260 = vsel %vm153, %v5231, 0
    %v5262 = vsel %vm153, %v5235, 0
    %v5264 = vsel %vm153, %v5237, 0
    %5266 = vmatprep.subr.mxu0 0.0
    %5267 = vmatpush1.xpose.msra.mxu0 %v5262
    %5268 = vmatprep.subr.mxu0 0.0
    %5269 = vmatpush1.xpose.msra.mxu0 %v5264
    %5270 = vmatprep.subr.mxu0 0.0
    %5271 = vmatpush1.xpose.msra.mxu0 0.0
    %5272 = vmatprep.subr.mxu0 0.0
    %5273 = vmatpush1.xpose.msra.mxu0 0.0
    %5274 = vmatprep.subr.mxu0 0.0
    %5275 = vmatpush1.xpose.msra.mxu0 0.0
    %5276 = vmatprep.subr.mxu0 0.0
    %5277 = vmatpush1.xpose.msra.mxu0 0.0
    %5278 = vmatprep.subr.mxu0 0.0
    %5279 = vmatpush1.xpose.msra.mxu0 0.0
    %5280 = vmatprep.subr.mxu0 0.0
    %5281 = vmatpush1.xpose.msra.mxu0 0.0
    %5282 = vmatprep.subr.mxu0 0.0
    %5283 = vmatpush1.xpose.msra.mxu0 0.0
    %5284 = vmatprep.subr.mxu0 0.0
    %5285 = vmatpush1.xpose.msra.mxu0 0.0
    %5286 = vmatprep.subr.mxu0 0.0
    %5287 = vmatpush1.xpose.msra.mxu0 0.0
    %5288 = vmatprep.subr.mxu0 0.0
    %5289 = vmatpush1.xpose.msra.mxu0 0.0
    %5290 = vmatprep.subr.mxu0 0.0
    %5291 = vmatpush1.xpose.msra.mxu0 0.0
    %5292 = vmatprep.subr.mxu0 0.0
    %5293 = vmatpush1.xpose.msra.mxu0 0.0
    %5294 = vmatprep.subr.mxu0 0.0
    %5295 = vmatpush1.xpose.msra.mxu0 0.0
    %5296 = vmatprep.subr.mxu0 0.0
    %5297 = vmatpush1.xpose.msra.mxu0 0.0
    %5298 = vmatprep.subr.mxu0 0.0
    %5299 = vmatpush1.xpose.msra.mxu0 0.0
    %5300 = vmatprep.subr.mxu0 0.0
    %5301 = vmatpush1.xpose.msra.mxu0 0.0
    %5302 = vmatprep.subr.mxu0 0.0
    %5303 = vmatpush1.xpose.msra.mxu0 0.0
    %5304 = vmatprep.subr.mxu0 0.0
    %5305 = vmatpush1.xpose.msra.mxu0 0.0
    %5306 = vmatprep.subr.mxu0 0.0
    %5307 = vmatpush1.xpose.msra.mxu0 0.0
    %5308 = vmatprep.subr.mxu0 0.0
    %5309 = vmatpush1.xpose.msra.mxu0 0.0
    %5310 = vmatprep.subr.mxu0 0.0
    %5311 = vmatpush1.xpose.msra.mxu0 0.0
    %5312 = vmatprep.subr.mxu0 0.0
    %5313 = vmatpush1.xpose.msra.mxu0 0.0
    %5314 = vmatprep.subr.mxu0 0.0
    %5315 = vmatpush1.xpose.msra.mxu0 0.0
    %5316 = vmatprep.subr.mxu0 0.0
    %5317 = vmatpush1.xpose.msra.mxu0 0.0
    %5318 = vmatprep.subr.mxu0 0.0
    %5319 = vmatpush1.xpose.msra.mxu0 0.0
    %5320 = vmatprep.subr.mxu0 0.0
    %5321 = vmatpush1.xpose.msra.mxu0 0.0
    %5322 = vmatprep.subr.mxu0 0.0
    %5323 = vmatpush1.xpose.msra.mxu0 0.0
    %5324 = vmatprep.subr.mxu0 0.0
    %5325 = vmatpush1.xpose.msra.mxu0 0.0
    %5326 = vmatprep.subr.mxu0 0.0
    %5327 = vmatpush1.xpose.msra.mxu0 0.0
    %5328 = vmatprep.subr.mxu0 0.0
    %5329 = vmatpush1.xpose.msra.mxu0 0.0
    %5330 = vmatprep.mubr.f32.mxu0 0.0
    %5331 = vmatmul.mubr.f32.gmra.mrb[0].mxu0 %v5239
    %v5332 = vpop.f32.mrb[0].mxu0
    %v5333 = vadd.f32 0.0, %v5332
    %v5334 = vpop.f32.mrb[0].mxu0
    %5335 = vmatprep.mubr.f32.mxu0 0.0
    %5336 = vmatmul.mubr.f32.gmra.mrb[0].mxu0 %v5242
    %v5337 = vpop.f32.mrb[0].mxu0
    %v5338 = vadd.f32 0.0, %v5337
    %v5339 = vpop.f32.mrb[0].mxu0
    %5340 = vmatprep.mubr.f32.mxu0 0.0
    %5341 = vmatmul.mubr.f32.gmra.mrb[0].mxu0 %v5245
    %v5342 = vpop.f32.mrb[0].mxu0
    %v5343 = vadd.f32 0.0, %v5342
    %v5344 = vpop.f32.mrb[0].mxu0
    %5345 = vmatprep.mubr.f32.mxu0 0.0
    %5346 = vmatmul.mubr.f32.gmra.mrb[0].mxu0 %v5248
    %v5347 = vpop.f32.mrb[0].mxu0
    %v5348 = vadd.f32 0.0, %v5347
    %v5349 = vpop.f32.mrb[0].mxu0
    %5350 = vmatprep.mubr.f32.mxu0 0.0
    %5351 = vmatmul.mubr.f32.gmra.mrb[0].mxu0 %v5251
    %v5352 = vpop.f32.mrb[0].mxu0
    %v5353 = vadd.f32 0.0, %v5352
    %v5354 = vpop.f32.mrb[0].mxu0
    %5355 = vmatprep.mubr.f32.mxu0 0.0
    %5356 = vmatmul.mubr.f32.gmra.mrb[0].mxu0 %v5254
    %v5357 = vpop.f32.mrb[0].mxu0
    %v5358 = vadd.f32 0.0, %v5357
    %v5359 = vpop.f32.mrb[0].mxu0
    %5360 = vmatprep.mubr.f32.mxu0 0.0
    %5361 = vmatmul.mubr.f32.gmra.mrb[0].mxu0 %v5257
    %v5362 = vpop.f32.mrb[0].mxu0
    %v5363 = vadd.f32 0.0, %v5362
    %v5364 = vpop.f32.mrb[0].mxu0
    %5365 = vmatprep.mubr.f32.mxu0 0.0
    %5366 = vmatmul.mubr.f32.gmra.mrb[0].mxu0 %v5260
    %v5367 = vpop.f32.mrb[0].mxu0
    %v5368 = vadd.f32 0.0, %v5367
    %v5369 = vpop.f32.mrb[0].mxu0
    %5370 = vdwg.mxu0
    %v5371 = vsel %vm2392, %v5333, -inf
    %5372 = vmax.xlane.f32.xlu0 %v5371
    %v5373 = vpop.xlane.xlu0 %5372
    %v5374 = vsel %vm2392, %v5338, -inf
    %5375 = vmax.xlane.f32.xlu0 %v5374
    %v5376 = vpop.xlane.xlu0 %5375
    %v5377 = vsel %vm2392, %v5343, -inf
    %5378 = vmax.xlane.f32.xlu0 %v5377
    %v5379 = vpop.xlane.xlu0 %5378
    %v5380 = vsel %vm2392, %v5348, -inf
    %5381 = vmax.xlane.f32.xlu0 %v5380
    %v5382 = vpop.xlane.xlu0 %5381
    %v5383 = vsel %vm2392, %v5353, -inf
    %5384 = vmax.xlane.f32.xlu0 %v5383
    %v5385 = vpop.xlane.xlu0 %5384
    %v5386 = vsel %vm2392, %v5358, -inf
    %5387 = vmax.xlane.f32.xlu0 %v5386
    %v5388 = vpop.xlane.xlu0 %5387
    %v5389 = vsel %vm2392, %v5363, -inf
    %5390 = vmax.xlane.f32.xlu0 %v5389
    %v5391 = vpop.xlane.xlu0 %5390
    %v5392 = vsel %vm2392, %v5368, -inf
    %5393 = vmax.xlane.f32.xlu0 %v5392
    %v5394 = vpop.xlane.xlu0 %5393
    %v5395 = vsub.f32 %v5333, %v5373
    %v5396 = vsub.f32 %v5338, %v5376
    %v5397 = vsub.f32 %v5343, %v5379
    %v5398 = vsub.f32 %v5348, %v5382
    %v5399 = vsub.f32 %v5353, %v5385
    %v5400 = vsub.f32 %v5358, %v5388
    %v5401 = vsub.f32 %v5363, %v5391
    %v5402 = vsub.f32 %v5368, %v5394
    %v5403 = vmul.f32 %v5395, 1.442695
    %v5404 = vpow.pop %v5403
    %v5405 = vmul.f32 %v5396, 1.442695
    %v5406 = vpow.pop %v5405
    %v5407 = vmul.f32 %v5397, 1.442695
    %v5408 = vpow.pop %v5407
    %v5409 = vmul.f32 %v5398, 1.442695
    %v5410 = vpow.pop %v5409
    %v5411 = vmul.f32 %v5399, 1.442695
    %v5412 = vpow.pop %v5411
    %v5413 = vmul.f32 %v5400, 1.442695
    %v5414 = vpow.pop %v5413
    %v5415 = vmul.f32 %v5401, 1.442695
    %v5416 = vpow.pop %v5415
    %v5417 = vmul.f32 %v5402, 1.442695
    %v5418 = vpow.pop %v5417
    %v5419 = vsel %vm2392, %v5404, 0.0
    %5420 = vadd.xlane.f32.xlu0 %v5419
    %v5421 = vpop.xlane.xlu0 %5420
    %v5422 = vsel %vm2392, %v5406, 0.0
    %5423 = vadd.xlane.f32.xlu0 %v5422
    %v5424 = vpop.xlane.xlu0 %5423
    %v5425 = vsel %vm2392, %v5408, 0.0
    %5426 = vadd.xlane.f32.xlu0 %v5425
    %v5427 = vpop.xlane.xlu0 %5426
    %v5428 = vsel %vm2392, %v5410, 0.0
    %5429 = vadd.xlane.f32.xlu0 %v5428
    %v5430 = vpop.xlane.xlu0 %5429
    %v5431 = vsel %vm2392, %v5412, 0.0
    %5432 = vadd.xlane.f32.xlu0 %v5431
    %v5433 = vpop.xlane.xlu0 %5432
    %v5434 = vsel %vm2392, %v5414, 0.0
    %5435 = vadd.xlane.f32.xlu0 %v5434
    %v5436 = vpop.xlane.xlu0 %5435
    %v5437 = vsel %vm2392, %v5416, 0.0
    %5438 = vadd.xlane.f32.xlu0 %v5437
    %v5439 = vpop.xlane.xlu0 %5438
    %v5440 = vsel %vm2392, %v5418, 0.0
    %5441 = vadd.xlane.f32.xlu0 %v5440
    %v5442 = vpop.xlane.xlu0 %5441
    %v5443 = vrcp.pop %v5421
    %v5444 = vmul.f32 %v5404, %v5443
    %v5445 = vrcp.pop %v5424
    %v5446 = vmul.f32 %v5406, %v5445
    %v5447 = vrcp.pop %v5427
    %v5448 = vmul.f32 %v5408, %v5447
    %v5449 = vrcp.pop %v5430
    %v5450 = vmul.f32 %v5410, %v5449
    %v5451 = vrcp.pop %v5433
    %v5452 = vmul.f32 %v5412, %v5451
    %v5453 = vrcp.pop %v5436
    %v5454 = vmul.f32 %v5414, %v5453
    %v5455 = vrcp.pop %v5439
    %v5456 = vmul.f32 %v5416, %v5455
    %v5457 = vrcp.pop %v5442
    %v5458 = vmul.f32 %v5418, %v5457
    %5459 = vrot.lane.b32.xlu0 %v5214, 64
    %v5460 = vpop.permute.xlu0 %5459
    %5461 = vrot.lane.b32.xlu0 %v5219, 64
    %v5462 = vpop.permute.xlu0 %5461
    %v5466 = vsel %vm2392, %v5444, 0
    %v5469 = vsel %vm2392, %v5446, 0
    %v5472 = vsel %vm2392, %v5448, 0
    %v5475 = vsel %vm2392, %v5450, 0
    %v5478 = vsel %vm2392, %v5452, 0
    %v5481 = vsel %vm2392, %v5454, 0
    %v5484 = vsel %vm2392, %v5456, 0
    %v5487 = vsel %vm2392, %v5458, 0
    %5489 = vmatprep.subr.mxu0 0.0
    %5490 = vmatpush1.msra.mxu0 %v5460
    %5491 = vmatprep.subr.mxu0 0.0
    %5492 = vmatpush1.msra.mxu0 %v5462
    %5493 = vmatprep.subr.mxu0 0.0
    %5494 = vmatpush1.msra.mxu0 0.0
    %5495 = vmatprep.subr.mxu0 0.0
    %5496 = vmatpush1.msra.mxu0 0.0
    %5497 = vmatprep.subr.mxu0 0.0
    %5498 = vmatpush1.msra.mxu0 0.0
    %5499 = vmatprep.subr.mxu0 0.0
    %5500 = vmatpush1.msra.mxu0 0.0
    %5501 = vmatprep.subr.mxu0 0.0
    %5502 = vmatpush1.msra.mxu0 0.0
    %5503 = vmatprep.subr.mxu0 0.0
    %5504 = vmatpush1.msra.mxu0 0.0
    %5505 = vmatprep.subr.mxu0 0.0
    %5506 = vmatpush1.msra.mxu0 0.0
    %5507 = vmatprep.subr.mxu0 0.0
    %5508 = vmatpush1.msra.mxu0 0.0
    %5509 = vmatprep.subr.mxu0 0.0
    %5510 = vmatpush1.msra.mxu0 0.0
    %5511 = vmatprep.subr.mxu0 0.0
    %5512 = vmatpush1.msra.mxu0 0.0
    %5513 = vmatprep.subr.mxu0 0.0
    %5514 = vmatpush1.msra.mxu0 0.0
    %5515 = vmatprep.subr.mxu0 0.0
    %5516 = vmatpush1.msra.mxu0 0.0
    %5517 = vmatprep.subr.mxu0 0.0
    %5518 = vmatpush1.msra.mxu0 0.0
    %5519 = vmatprep.subr.mxu0 0.0
    %5520 = vmatpush1.msra.mxu0 0.0
    %5521 = vmatprep.subr.mxu0 0.0
    %5522 = vmatpush1.msra.mxu0 0.0
    %5523 = vmatprep.subr.mxu0 0.0
    %5524 = vmatpush1.msra.mxu0 0.0
    %5525 = vmatprep.subr.mxu0 0.0
    %5526 = vmatpush1.msra.mxu0 0.0
    %5527 = vmatprep.subr.mxu0 0.0
    %5528 = vmatpush1.msra.mxu0 0.0
    %5529 = vmatprep.subr.mxu0 0.0
    %5530 = vmatpush1.msra.mxu0 0.0
    %5531 = vmatprep.subr.mxu0 0.0
    %5532 = vmatpush1.msra.mxu0 0.0
    %5533 = vmatprep.subr.mxu0 0.0
    %5534 = vmatpush1.msra.mxu0 0.0
    %5535 = vmatprep.subr.mxu0 0.0
    %5536 = vmatpush1.msra.mxu0 0.0
    %5537 = vmatprep.subr.mxu0 0.0
    %5538 = vmatpush1.msra.mxu0 0.0
    %5539 = vmatprep.subr.mxu0 0.0
    %5540 = vmatpush1.msra.mxu0 0.0
    %5541 = vmatprep.subr.mxu0 0.0
    %5542 = vmatpush1.msra.mxu0 0.0
    %5543 = vmatprep.subr.mxu0 0.0
    %5544 = vmatpush1.msra.mxu0 0.0
    %5545 = vmatprep.subr.mxu0 0.0
    %5546 = vmatpush1.msra.mxu0 0.0
    %5547 = vmatprep.subr.mxu0 0.0
    %5548 = vmatpush1.msra.mxu0 0.0
    %5549 = vmatprep.subr.mxu0 0.0
    %5550 = vmatpush1.msra.mxu0 0.0
    %5551 = vmatprep.subr.mxu0 0.0
    %5552 = vmatpush1.msra.mxu0 0.0
    %5553 = vmatprep.mubr.f32.mxu0 0.0
    %5554 = vmatmul.mubr.f32.gmra.mrb[0].mxu0 %v5466
    %v5555 = vpop.f32.mrb[0].mxu0
    %v5556 = vadd.f32 0.0, %v5555
    %v5557 = vpop.f32.mrb[0].mxu0
    %5558 = vmatprep.mubr.f32.mxu0 0.0
    %5559 = vmatmul.mubr.f32.gmra.mrb[0].mxu0 %v5469
    %v5560 = vpop.f32.mrb[0].mxu0
    %v5561 = vadd.f32 0.0, %v5560
    %v5562 = vpop.f32.mrb[0].mxu0
    %5563 = vmatprep.mubr.f32.mxu0 0.0
    %5564 = vmatmul.mubr.f32.gmra.mrb[0].mxu0 %v5472
    %v5565 = vpop.f32.mrb[0].mxu0
    %v5566 = vadd.f32 0.0, %v5565
    %v5567 = vpop.f32.mrb[0].mxu0
    %5568 = vmatprep.mubr.f32.mxu0 0.0
    %5569 = vmatmul.mubr.f32.gmra.mrb[0].mxu0 %v5475
    %v5570 = vpop.f32.mrb[0].mxu0
    %v5571 = vadd.f32 0.0, %v5570
    %v5572 = vpop.f32.mrb[0].mxu0
    %5573 = vmatprep.mubr.f32.mxu0 0.0
    %5574 = vmatmul.mubr.f32.gmra.mrb[0].mxu0 %v5478
    %v5575 = vpop.f32.mrb[0].mxu0
    %v5576 = vadd.f32 0.0, %v5575
    %v5577 = vpop.f32.mrb[0].mxu0
    %5578 = vmatprep.mubr.f32.mxu0 0.0
    %5579 = vmatmul.mubr.f32.gmra.mrb[0].mxu0 %v5481
    %v5580 = vpop.f32.mrb[0].mxu0
    %v5581 = vadd.f32 0.0, %v5580
    %v5582 = vpop.f32.mrb[0].mxu0
    %5583 = vmatprep.mubr.f32.mxu0 0.0
    %5584 = vmatmul.mubr.f32.gmra.mrb[0].mxu0 %v5484
    %v5585 = vpop.f32.mrb[0].mxu0
    %v5586 = vadd.f32 0.0, %v5585
    %v5587 = vpop.f32.mrb[0].mxu0
    %5588 = vmatprep.mubr.f32.mxu0 0.0
    %5589 = vmatmul.mubr.f32.gmra.mrb[0].mxu0 %v5487
    %v5590 = vpop.f32.mrb[0].mxu0
    %v5591 = vadd.f32 0.0, %v5590
    %v5592 = vpop.f32.mrb[0].mxu0
    %5593 = vdwg.mxu0
    %v5594 = vmul.f32 %v5556, %v2613
    %v5595 = vmul.f32 %v5561, %v2613
    %v5596 = vmul.f32 %v5566, %v2619
    %v5597 = vmul.f32 %v5571, %v2619
    %v5598 = vadd.f32 %v5594, %v5596
    %v5599 = vadd.f32 %v5595, %v5597
    %v5600 = vmul.f32 %v5576, %v2627
    %v5601 = vmul.f32 %v5581, %v2627
    %v5602 = vadd.f32 %v5598, %v5600
    %v5603 = vadd.f32 %v5599, %v5601
    %v5604 = vmul.f32 %v5586, %v2635
    %v5605 = vmul.f32 %v5591, %v2635
    %v5606 = vadd.f32 %v5602, %v5604
    %v5607 = vadd.f32 %v5603, %v5605
    %v5608 = vlaneseq
    %v5609 = vshrl.u32 %v5608, 7
    %v5610 = vsub.s32 0, %v5609
    %v5611 = vrot.slane %v5134, %v5610
    %v5613 = vsel %vm153, %v5606, 0
    %v5616 = vsel %vm153, %v5607, 0
    %5618 = vmatprep.subr.mxu0 0.0
    %5619 = vmatpush1.msra.mxu0 %v5130
    %5620 = vmatprep.subr.mxu0 0.0
    %5621 = vmatpush1.msra.mxu0 %v5131
    %5622 = vmatprep.subr.mxu0 0.0
    %5623 = vmatpush1.msra.mxu0 %v5132
    %5624 = vmatprep.subr.mxu0 0.0
    %5625 = vmatpush1.msra.mxu0 %v5133
    %5626 = vmatprep.subr.mxu0 0.0
    %5627 = vmatpush1.msra.mxu0 0.0
    %5628 = vmatprep.subr.mxu0 0.0
    %5629 = vmatpush1.msra.mxu0 0.0
    %5630 = vmatprep.subr.mxu0 0.0
    %5631 = vmatpush1.msra.mxu0 0.0
    %5632 = vmatprep.subr.mxu0 0.0
    %5633 = vmatpush1.msra.mxu0 0.0
    %5634 = vmatprep.subr.mxu0 0.0
    %5635 = vmatpush1.msra.mxu0 0.0
    %5636 = vmatprep.subr.mxu0 0.0
    %5637 = vmatpush1.msra.mxu0 0.0
    %5638 = vmatprep.subr.mxu0 0.0
    %5639 = vmatpush1.msra.mxu0 0.0
    %5640 = vmatprep.subr.mxu0 0.0
    %5641 = vmatpush1.msra.mxu0 0.0
    %5642 = vmatprep.subr.mxu0 0.0
    %5643 = vmatpush1.msra.mxu0 0.0
    %5644 = vmatprep.subr.mxu0 0.0
    %5645 = vmatpush1.msra.mxu0 0.0
    %5646 = vmatprep.subr.mxu0 0.0
    %5647 = vmatpush1.msra.mxu0 0.0
    %5648 = vmatprep.subr.mxu0 0.0
    %5649 = vmatpush1.msra.mxu0 0.0
    %5650 = vmatprep.subr.mxu0 0.0
    %5651 = vmatpush1.msra.mxu0 0.0
    %5652 = vmatprep.subr.mxu0 0.0
    %5653 = vmatpush1.msra.mxu0 0.0
    %5654 = vmatprep.subr.mxu0 0.0
    %5655 = vmatpush1.msra.mxu0 0.0
    %5656 = vmatprep.subr.mxu0 0.0
    %5657 = vmatpush1.msra.mxu0 0.0
    %5658 = vmatprep.subr.mxu0 0.0
    %5659 = vmatpush1.msra.mxu0 0.0
    %5660 = vmatprep.subr.mxu0 0.0
    %5661 = vmatpush1.msra.mxu0 0.0
    %5662 = vmatprep.subr.mxu0 0.0
    %5663 = vmatpush1.msra.mxu0 0.0
    %5664 = vmatprep.subr.mxu0 0.0
    %5665 = vmatpush1.msra.mxu0 0.0
    %5666 = vmatprep.subr.mxu0 0.0
    %5667 = vmatpush1.msra.mxu0 0.0
    %5668 = vmatprep.subr.mxu0 0.0
    %5669 = vmatpush1.msra.mxu0 0.0
    %5670 = vmatprep.subr.mxu0 0.0
    %5671 = vmatpush1.msra.mxu0 0.0
    %5672 = vmatprep.subr.mxu0 0.0
    %5673 = vmatpush1.msra.mxu0 0.0
    %5674 = vmatprep.subr.mxu0 0.0
    %5675 = vmatpush1.msra.mxu0 0.0
    %5676 = vmatprep.subr.mxu0 0.0
    %5677 = vmatpush1.msra.mxu0 0.0
    %5678 = vmatprep.subr.mxu0 0.0
    %5679 = vmatpush1.msra.mxu0 0.0
    %5680 = vmatprep.subr.mxu0 0.0
    %5681 = vmatpush1.msra.mxu0 0.0
    %5682 = vmatprep.mubr.f32.mxu0 0.0
    %5683 = vmatmul.mubr.f32.gmra.mrb[0].mxu0 %v5613
    %v5684 = vpop.f32.mrb[0].mxu0
    %v5685 = vadd.f32 %v5611, %v5684
    %v5686 = vpop.f32.mrb[0].mxu0
    %5687 = vmatprep.mubr.f32.mxu0 0.0
    %5688 = vmatmul.mubr.f32.gmra.mrb[0].mxu0 %v5616
    %v5689 = vpop.f32.mrb[0].mxu0
    %v5690 = vadd.f32 %v5611, %v5689
    %v5691 = vpop.f32.mrb[0].mxu0
    %5692 = vdwg.mxu0
    %v5693 = vadd.f32 %v5123, %v5685
    %v5694 = vadd.f32 %v5124, %v5690
    %v5695 = vsel %vm153, %v5693, 0.0
    %5696 = vadd.xlane.f32.xlu0 %v5695
    %v5697 = vpop.xlane.xlu0 %5696
    %v5698 = vsel %vm153, %v5694, 0.0
    %5699 = vadd.xlane.f32.xlu0 %v5698
    %v5700 = vpop.xlane.xlu0 %5699
    %v5701 = vrcp.pop 32.0
    %v5702 = vmul.f32 %v5697, %v5701
    %v5703 = vmul.f32 %v5700, %v5701
    %v5704 = vsub.f32 %v5693, %v5702
    %v5705 = vsub.f32 %v5694, %v5703
    %v5706 = vmul.f32 %v5704, %v5704
    %v5707 = vmul.f32 %v5705, %v5705
    %v5708 = vsel %vm153, %v5706, 0.0
    %5709 = vadd.xlane.f32.xlu0 %v5708
    %v5710 = vpop.xlane.xlu0 %5709
    %v5711 = vsel %vm153, %v5707, 0.0
    %5712 = vadd.xlane.f32.xlu0 %v5711
    %v5713 = vpop.xlane.xlu0 %5712
    %v5714 = vmul.f32 %v5710, %v5701
    %v5715 = vmul.f32 %v5713, %v5701
    %v5716 = vadd.f32 %v5714, 1e-05
    %v5717 = vadd.f32 %v5715, 1e-05
    %v5718 = vrsqrt.pop %v5716
    %v5719 = vrsqrt.pop %v5717
    %v5720 = vmul.f32 %v5704, %v5718
    %v5721 = vmul.f32 %v5705, %v5719
    %v5722 = vlaneseq
    %v5723 = vshrl.u32 %v5722, 7
    %v5724 = vsub.s32 0, %v5723
    %v5725 = vrot.slane %v5135, %v5724
    %v5726 = vmul.f32 %v5720, %v5725
    %v5727 = vmul.f32 %v5721, %v5725
    %v5728 = vlaneseq
    %v5729 = vshrl.u32 %v5728, 7
    %v5730 = vsub.s32 0, %v5729
    %v5731 = vrot.slane %v5136, %v5730
    %v5732 = vadd.f32 %v5726, %v5731
    %v5733 = vadd.f32 %v5727, %v5731
    %v5734 = vld [vmem:[#allocation2 + $0xf0] sm:$0xff]
    %v5735 = vld [vmem:[#allocation2 + $0xf8] sm:$0xff]
    %v5736 = vld [vmem:[#allocation2 + $0x100] sm:$0xff]
    %v5737 = vld [vmem:[#allocation2 + $0x108] sm:$0xff]
    %v5738 = vld [vmem:[#allocation2 + $0x110] sm:$0x1]
    %v5739 = vlaneseq
    %v5740 = vshrl.u32 %v5739, 7
    %v5741 = vsub.s32 0, %v5740
    %v5742 = vrot.slane %v5738, %v5741
    %v5744 = vsel %vm153, %v5732, 0
    %v5747 = vsel %vm153, %v5733, 0
    %5749 = vmatprep.subr.mxu0 0.0
    %5750 = vmatpush1.msra.mxu0 %v5734
    %5751 = vmatprep.subr.mxu0 0.0
    %5752 = vmatpush1.msra.mxu0 %v5735
    %5753 = vmatprep.subr.mxu0 0.0
    %5754 = vmatpush1.msra.mxu0 %v5736
    %5755 = vmatprep.subr.mxu0 0.0
    %5756 = vmatpush1.msra.mxu0 %v5737
    %5757 = vmatprep.subr.mxu0 0.0
    %5758 = vmatpush1.msra.mxu0 0.0
    %5759 = vmatprep.subr.mxu0 0.0
    %5760 = vmatpush1.msra.mxu0 0.0
    %5761 = vmatprep.subr.mxu0 0.0
    %5762 = vmatpush1.msra.mxu0 0.0
    %5763 = vmatprep.subr.mxu0 0.0
    %5764 = vmatpush1.msra.mxu0 0.0
    %5765 = vmatprep.subr.mxu0 0.0
    %5766 = vmatpush1.msra.mxu0 0.0
    %5767 = vmatprep.subr.mxu0 0.0
    %5768 = vmatpush1.msra.mxu0 0.0
    %5769 = vmatprep.subr.mxu0 0.0
    %5770 = vmatpush1.msra.mxu0 0.0
    %5771 = vmatprep.subr.mxu0 0.0
    %5772 = vmatpush1.msra.mxu0 0.0
    %5773 = vmatprep.subr.mxu0 0.0
    %5774 = vmatpush1.msra.mxu0 0.0
    %5775 = vmatprep.subr.mxu0 0.0
    %5776 = vmatpush1.msra.mxu0 0.0
    %5777 = vmatprep.subr.mxu0 0.0
    %5778 = vmatpush1.msra.mxu0 0.0
    %5779 = vmatprep.subr.mxu0 0.0
    %5780 = vmatpush1.msra.mxu0 0.0
    %5781 = vmatprep.subr.mxu0 0.0
    %5782 = vmatpush1.msra.mxu0 0.0
    %5783 = vmatprep.subr.mxu0 0.0
    %5784 = vmatpush1.msra.mxu0 0.0
    %5785 = vmatprep.subr.mxu0 0.0
    %5786 = vmatpush1.msra.mxu0 0.0
    %5787 = vmatprep.subr.mxu0 0.0
    %5788 = vmatpush1.msra.mxu0 0.0
    %5789 = vmatprep.subr.mxu0 0.0
    %5790 = vmatpush1.msra.mxu0 0.0
    %5791 = vmatprep.subr.mxu0 0.0
    %5792 = vmatpush1.msra.mxu0 0.0
    %5793 = vmatprep.subr.mxu0 0.0
    %5794 = vmatpush1.msra.mxu0 0.0
    %5795 = vmatprep.subr.mxu0 0.0
    %5796 = vmatpush1.msra.mxu0 0.0
    %5797 = vmatprep.subr.mxu0 0.0
    %5798 = vmatpush1.msra.mxu0 0.0
    %5799 = vmatprep.subr.mxu0 0.0
    %5800 = vmatpush1.msra.mxu0 0.0
    %5801 = vmatprep.subr.mxu0 0.0
    %5802 = vmatpush1.msra.mxu0 0.0
    %5803 = vmatprep.subr.mxu0 0.0
    %5804 = vmatpush1.msra.mxu0 0.0
    %5805 = vmatprep.subr.mxu0 0.0
    %5806 = vmatpush1.msra.mxu0 0.0
    %5807 = vmatprep.subr.mxu0 0.0
    %5808 = vmatpush1.msra.mxu0 0.0
    %5809 = vmatprep.subr.mxu0 0.0
    %5810 = vmatpush1.msra.mxu0 0.0
    %5811 = vmatprep.subr.mxu0 0.0
    %5812 = vmatpush1.msra.mxu0 0.0
    %5813 = vmatprep.mubr.f32.mxu0 0.0
    %5814 = vmatmul.mubr.f32.gmra.mrb[0].mxu0 %v5744
    %v5815 = vpop.f32.mrb[0].mxu0
    %v5816 = vadd.f32 %v5742, %v5815
    %v5817 = vpop.f32.mrb[0].mxu0
    %5818 = vmatprep.mubr.f32.mxu0 0.0
    %5819 = vmatmul.mubr.f32.gmra.mrb[0].mxu0 %v5747
    %v5820 = vpop.f32.mrb[0].mxu0
    %v5821 = vadd.f32 %v5742, %v5820
    %v5822 = vpop.f32.mrb[0].mxu0
    %5823 = vdwg.mxu0
    %v5824 = vmax.f32 %v5816, 0.0
    %v5825 = vmax.f32 %v5821, 0.0
    %v5826 = vld [vmem:[#allocation2 + $0x118] sm:$0xff]
    %v5827 = vld [vmem:[#allocation2 + $0x120] sm:$0xff]
    %v5828 = vld [vmem:[#allocation2 + $0x128] sm:$0x1]
    %v5829 = vlaneseq
    %v5830 = vshrl.u32 %v5829, 7
    %v5831 = vsub.s32 0, %v5830
    %v5832 = vrot.slane %v5828, %v5831
    %v5834 = vsel %vm2392, %v5824, 0
    %v5837 = vsel %vm2392, %v5825, 0
    %5839 = vmatprep.subr.mxu0 0.0
    %5840 = vmatpush1.msra.mxu0 %v5826
    %5841 = vmatprep.subr.mxu0 0.0
    %5842 = vmatpush1.msra.mxu0 %v5827
    %5843 = vmatprep.subr.mxu0 0.0
    %5844 = vmatpush1.msra.mxu0 0.0
    %5845 = vmatprep.subr.mxu0 0.0
    %5846 = vmatpush1.msra.mxu0 0.0
    %5847 = vmatprep.subr.mxu0 0.0
    %5848 = vmatpush1.msra.mxu0 0.0
    %5849 = vmatprep.subr.mxu0 0.0
    %5850 = vmatpush1.msra.mxu0 0.0
    %5851 = vmatprep.subr.mxu0 0.0
    %5852 = vmatpush1.msra.mxu0 0.0
    %5853 = vmatprep.subr.mxu0 0.0
    %5854 = vmatpush1.msra.mxu0 0.0
    %5855 = vmatprep.subr.mxu0 0.0
    %5856 = vmatpush1.msra.mxu0 0.0
    %5857 = vmatprep.subr.mxu0 0.0
    %5858 = vmatpush1.msra.mxu0 0.0
    %5859 = vmatprep.subr.mxu0 0.0
    %5860 = vmatpush1.msra.mxu0 0.0
    %5861 = vmatprep.subr.mxu0 0.0
    %5862 = vmatpush1.msra.mxu0 0.0
    %5863 = vmatprep.subr.mxu0 0.0
    %5864 = vmatpush1.msra.mxu0 0.0
    %5865 = vmatprep.subr.mxu0 0.0
    %5866 = vmatpush1.msra.mxu0 0.0
    %5867 = vmatprep.subr.mxu0 0.0
    %5868 = vmatpush1.msra.mxu0 0.0
    %5869 = vmatprep.subr.mxu0 0.0
    %5870 = vmatpush1.msra.mxu0 0.0
    %5871 = vmatprep.subr.mxu0 0.0
    %5872 = vmatpush1.msra.mxu0 0.0
    %5873 = vmatprep.subr.mxu0 0.0
    %5874 = vmatpush1.msra.mxu0 0.0
    %5875 = vmatprep.subr.mxu0 0.0
    %5876 = vmatpush1.msra.mxu0 0.0
    %5877 = vmatprep.subr.mxu0 0.0
    %5878 = vmatpush1.msra.mxu0 0.0
    %5879 = vmatprep.subr.mxu0 0.0
    %5880 = vmatpush1.msra.mxu0 0.0
    %5881 = vmatprep.subr.mxu0 0.0
    %5882 = vmatpush1.msra.mxu0 0.0
    %5883 = vmatprep.subr.mxu0 0.0
    %5884 = vmatpush1.msra.mxu0 0.0
    %5885 = vmatprep.subr.mxu0 0.0
    %5886 = vmatpush1.msra.mxu0 0.0
    %5887 = vmatprep.subr.mxu0 0.0
    %5888 = vmatpush1.msra.mxu0 0.0
    %5889 = vmatprep.subr.mxu0 0.0
    %5890 = vmatpush1.msra.mxu0 0.0
    %5891 = vmatprep.subr.mxu0 0.0
    %5892 = vmatpush1.msra.mxu0 0.0
    %5893 = vmatprep.subr.mxu0 0.0
    %5894 = vmatpush1.msra.mxu0 0.0
    %5895 = vmatprep.subr.mxu0 0.0
    %5896 = vmatpush1.msra.mxu0 0.0
    %5897 = vmatprep.subr.mxu0 0.0
    %5898 = vmatpush1.msra.mxu0 0.0
    %5899 = vmatprep.subr.mxu0 0.0
    %5900 = vmatpush1.msra.mxu0 0.0
    %5901 = vmatprep.subr.mxu0 0.0
    %5902 = vmatpush1.msra.mxu0 0.0
    %5903 = vmatprep.mubr.f32.mxu0 0.0
    %5904 = vmatmul.mubr.f32.gmra.mrb[0].mxu0 %v5834
    %v5905 = vpop.f32.mrb[0].mxu0
    %v5906 = vadd.f32 %v5832, %v5905
    %v5907 = vpop.f32.mrb[0].mxu0
    %5908 = vmatprep.mubr.f32.mxu0 0.0
    %5909 = vmatmul.mubr.f32.gmra.mrb[0].mxu0 %v5837
    %v5910 = vpop.f32.mrb[0].mxu0
    %v5911 = vadd.f32 %v5832, %v5910
    %v5912 = vpop.f32.mrb[0].mxu0
    %5913 = vdwg.mxu0
    %5914 = vst [vmem:[#allocation5] sm:$0xff] %v5906
    %5915 = vst [vmem:[#allocation5 + $0x8] sm:$0xff] %v5911
    // Predicated region
    $region18: #{tpu_custom_call.1} parent=1 // pred_check
      _
    $region19: #{tpu_custom_call.1} parent=1 // pred_check_branch
      %5917 = sbr.rel (0) target = $region21
    $region20: #{tpu_custom_call.1} parent=1 // pred_region
      %s5919 = ssub.s32 256, 256
      %5920 = vsyncadd [#allocation4], %s5919
      %s5921 = sshll.u32 [#allocation5], 4
      %s5922 = int_to_ptr.vmem [resolvable:$true] %s5921
      %5927 = dma.vmem_to_hbm [thread:$0]  %s5922, 256, %s3, [#allocation4], 128, 128, 8
    $region21: #{tpu_custom_call.1} parent=1 // pred_fallthru
      _
    // Predicated region
    $region22: #{tpu_custom_call.1} parent=1 // pred_check
      _
    $region23: #{tpu_custom_call.1} parent=1 // pred_check_branch
      %5929 = sbr.rel (0) target = $region25
    $region24: #{tpu_custom_call.1} parent=1 // pred_region
      %5930 = dma.done [#allocation4], 256
    $region25: #{tpu_custom_call.1} parent=1 // pred_fallthru
      _
    %5931 = vsyncpa [#allocation3], 1
    %5932 = vsyncpa [#allocation4], 1

</llo_original>
